<compile_context>
chip_gen: v5e
topology: v5e:2x2
jax: 0.10.0
libtpu: 0.0.40
codegen_flags: <defaults>
</compile_context>

<pallas_src>
import functools

import jax
import jax.numpy as jnp
import numpy as np
from jax.experimental import pallas as pl
from jax.experimental.pallas import tpu as pltpu

_BN_EPS = 1e-5


# ------------------------------ Pallas kernel ------------------------------- #

def _conv3x3_relu(p_ref, w_ref, b_row, mask_l, mask_r, *, H, W, cin):
    """3x3 'SAME' conv + ReLU over a flattened image held in VMEM scratch.

    p_ref rows: [0, 2W) zero pad, [2W, 2W + H*W) image pixels (row major),
    [2W + H*W, 4W + H*W) zero pad.  Output pixel p = h*W + w gathers input
    row 2W + p + ky*W + kx for taps (ky, kx) in {-1,0,1}^2; reads that cross
    the left/right image edge are zeroed with the kx column masks.
    w_ref: (9*cin, cout) folded weights, tap-major (ky, kx, cin) rows, bf16.
    """
    HW = H * W
    cout = w_ref.shape[-1]
    acc = jnp.zeros((HW, cout), jnp.float32)
    for ky_idx in range(3):
        for kx_idx in range(3):
            start = (ky_idx + 1) * W + (kx_idx - 1)   # static Python int
            sl = p_ref[pl.ds(start, HW), :]           # (HW, cin) f32
            if kx_idx == 0:                           # kx = -1 -> left edge
                sl = sl * mask_l
            elif kx_idx == 2:                         # kx = +1 -> right edge
                sl = sl * mask_r
            t = ky_idx * 3 + kx_idx
            w_tap = w_ref[pl.ds(t * cin, cin), :]     # (cin, cout) bf16
            acc = acc + jnp.dot(sl.astype(jnp.bfloat16), w_tap,
                                preferred_element_type=jnp.float32)
    return jnp.maximum(acc + b_row, 0.0)


def _block35_kernel(x_ref, ws_ref, bs_ref, wa_ref, ba_ref, wb_ref, bb_ref,
                    wf_ref, bf_ref, ml_ref, mr_ref,
                    o_ref, pa_ref, pb_ref, *, H, W, scale):
    HW = H * W
    x = x_ref[...]                                    # (HW, 320) f32
    mask_l = ml_ref[...]                              # (HW, 1) f32
    mask_r = mr_ref[...]

    # Zero only the 2W-row top/bottom pad bands; the interior rows are fully
    # overwritten below (no full-buffer zeroing, no double-written interior).
    zpa = jnp.zeros((2 * W, pa_ref.shape[-1]), jnp.float32)
    zpb = jnp.zeros((2 * W, pb_ref.shape[-1]), jnp.float32)
    pa_ref[pl.ds(0, 2 * W), :] = zpa
    pa_ref[pl.ds(2 * W + HW, 2 * W), :] = zpa
    pb_ref[pl.ds(0, 2 * W), :] = zpb
    pb_ref[pl.ds(2 * W + HW, 2 * W), :] = zpb

    # Merged stem 1x1 convs (branch1.0 / branch2.0 / branch0): 320 -> 96,
    # output columns ordered [x1_0 | x2_0 | x0].
    stem = jnp.dot(x.astype(jnp.bfloat16), ws_ref[...],
                   preferred_element_type=jnp.float32)
    stem = jnp.maximum(stem + bs_ref[...], 0.0)       # (HW, 96) f32
    x0 = stem[:, 64:96]                               # (HW, 32)

    # Fused branch1 3x3 (32->32) + branch2a 3x3 (32->48) as ONE block-diagonal
    # 3x3 pass over the 64-wide [x1_0 | x2_0] slab: 9 dots of K=64, N=80.
    pa_ref[pl.ds(2 * W, HW), :] = stem[:, 0:64]       # aligned slab copy
    ya = _conv3x3_relu(pa_ref, wa_ref, ba_ref[...], mask_l, mask_r,
                       H=H, W=W, cin=64)              # (HW, 80)
    x1 = ya[:, 0:32]

    # branch2b 3x3 conv: 48 -> 64.
    pb_ref[pl.ds(2 * W, HW), :] = ya[:, 32:80]
    x2 = _conv3x3_relu(pb_ref, wb_ref, bb_ref[...], mask_l, mask_r,
                       H=H, W=W, cin=48)              # (HW, 64)

    # Final 1x1 conv as ONE K=128 dot over [x1 | x2 | x0] (weight rows were
    # reordered on the host to match), then bias + scale + residual + ReLU,
    # stored lane-dense (320 wide).
    cat = jnp.concatenate([x1, x2, x0], axis=-1).astype(jnp.bfloat16)
    y = jnp.dot(cat, wf_ref[...], preferred_element_type=jnp.float32)
    y = (y + bf_ref[...]) * scale + x
    o_ref[...] = jnp.maximum(y, 0.0).astype(o_ref.dtype)


# ------------------------------- JAX wrapper -------------------------------- #

def _fold_bn(w_oihw, gamma, beta, mean, var):
    """Fold inference BatchNorm into conv weight (OIHW) -> (matmul_w, bias)."""
    s = gamma / jnp.sqrt(var + _BN_EPS)               # (Cout,)
    w = w_oihw * s[:, None, None, None]
    b = beta - mean * s
    # OIHW -> (kh*kw*Cin, Cout), rows ordered (ky, kx, cin)
    w2d = jnp.transpose(w, (2, 3, 1, 0)).reshape(-1, w.shape[0])
    return w2d, b


def block35_pallas(x_nchw, params, scale):
    n, c, h, w = x_nchw.shape
    hw = h * w
    x = jnp.transpose(x_nchw, (0, 2, 3, 1)).reshape(n, hw, c)   # pixels x chans

    # Stem 1x1 convs merged, column order [x1_0 | x2_0 | x0].
    w10, b10 = _fold_bn(*params["b1_0"])
    w20, b20 = _fold_bn(*params["b2_0"])
    w0, b0 = _fold_bn(*params["b0"])
    w_stem = jnp.concatenate([w10, w20, w0], axis=1).astype(jnp.bfloat16)
    b_stem = jnp.concatenate([b10, b20, b0]).reshape(1, -1)

    # Block-diagonal merge of branch1 3x3 (32->32) and branch2a 3x3 (32->48):
    # per-tap (64, 80) weights; rows 0:32 act on x1_0, 32:64 on x2_0.
    w11, b11 = _fold_bn(*params["b1_1"])              # (9*32, 32)
    w21, b21 = _fold_bn(*params["b2_1"])              # (9*32, 48)
    wa = jnp.zeros((9, 64, 80), jnp.float32)
    wa = wa.at[:, 0:32, 0:32].set(w11.reshape(9, 32, 32))
    wa = wa.at[:, 32:64, 32:80].set(w21.reshape(9, 32, 48))
    wa = wa.reshape(9 * 64, 80).astype(jnp.bfloat16)
    ba = jnp.concatenate([b11, b21]).reshape(1, -1)

    w22, b22 = _fold_bn(*params["b2_2"])              # (9*48, 64)
    wb = w22.astype(jnp.bfloat16)
    bb = b22.reshape(1, -1)

    # Final 1x1 conv weight (128, 320); reorder rows to the kernel's concat
    # order [x1 | x2 | x0] (original row order is [x0 | x1 | x2]).
    w_fin, b_fin = params["conv2d"]
    wf2d = jnp.transpose(w_fin, (2, 3, 1, 0)).reshape(128, w_fin.shape[0])
    wf2d = jnp.concatenate([wf2d[32:64], wf2d[64:128], wf2d[0:32]],
                           axis=0).astype(jnp.bfloat16)
    bf_row = b_fin.reshape(1, -1)

    # Column masks for the left/right image edges of the shifted-slice conv
    # (host-precomputed; avoids in-kernel vector integer modulo).
    col = jnp.arange(hw, dtype=jnp.int32) % w
    mask_l = (col != 0).astype(jnp.float32).reshape(hw, 1)
    mask_r = (col != w - 1).astype(jnp.float32).reshape(hw, 1)

    def rep(a):
        zeros = (0,) * a.ndim
        return pl.BlockSpec(a.shape, lambda i, _z=zeros: _z)

    args = (x, w_stem, b_stem, wa, ba, wb, bb, wf2d, bf_row, mask_l, mask_r)

    kernel = functools.partial(_block35_kernel, H=h, W=w, scale=float(scale))
    out = pl.pallas_call(
        kernel,
        out_shape=jax.ShapeDtypeStruct((n, hw, c), jnp.float32),
        grid=(n,),
        in_specs=[pl.BlockSpec((None, hw, c), lambda i: (i, 0, 0))]
                 + [rep(a) for a in args[1:]],
        out_specs=pl.BlockSpec((None, hw, c), lambda i: (i, 0, 0)),
        scratch_shapes=[
            pltpu.VMEM((hw + 4 * w, 64), jnp.float32),   # padded [x1_0|x2_0]
            pltpu.VMEM((hw + 4 * w, 48), jnp.float32),   # padded branch2a out
        ],
        compiler_params=pltpu.CompilerParams(
            dimension_semantics=("parallel",)),
    )(*args)

    return jnp.transpose(out.reshape(n, h, w, c), (0, 3, 1, 2))   # -> NCHW


# ---------------------------- pure-JAX reference ---------------------------- #

def _ref_conv_bn_relu(x_nhwc, w_oihw, gamma, beta, mean, var):
    s = gamma / jnp.sqrt(var + _BN_EPS)
    w_hwio = jnp.transpose(w_oihw, (2, 3, 1, 0))
    y = jax.lax.conv_general_dilated(
        x_nhwc, w_hwio, (1, 1), "SAME",
        dimension_numbers=("NHWC", "HWIO", "NHWC"))
    y = y * s + (beta - mean * s)
    return jnp.maximum(y, 0.0)


def block35_reference(x_nchw, params, scale):
    x = jnp.transpose(x_nchw, (0, 2, 3, 1))
    x0 = _ref_conv_bn_relu(x, *params["b0"])
    x1 = _ref_conv_bn_relu(_ref_conv_bn_relu(x, *params["b1_0"]), *params["b1_1"])
    x2 = _ref_conv_bn_relu(x, *params["b2_0"])
    x2 = _ref_conv_bn_relu(x2, *params["b2_1"])
    x2 = _ref_conv_bn_relu(x2, *params["b2_2"])
    cat = jnp.concatenate([x0, x1, x2], axis=-1)
    w_fin, b_fin = params["conv2d"]
    w_hwio = jnp.transpose(w_fin, (2, 3, 1, 0))
    y = jax.lax.conv_general_dilated(
        cat, w_hwio, (1, 1), "SAME",
        dimension_numbers=("NHWC", "HWIO", "NHWC")) + b_fin
    out = jnp.maximum(y * scale + x, 0.0)
    return jnp.transpose(out, (0, 3, 1, 2))


# ------------------------------ param init --------------------------------- #

def make_params(key):
    def conv_bn(key, cout, cin, k):
        kw_, kg, kb, km, kv = jax.random.split(key, 5)
        w = 0.05 * jax.random.normal(kw_, (cout, cin, k, k), jnp.float32)
        gamma = 1.0 + 0.1 * jax.random.normal(kg, (cout,), jnp.float32)
        beta = 0.1 * jax.random.normal(kb, (cout,), jnp.float32)
        mean = 0.1 * jax.random.normal(km, (cout,), jnp.float32)
        var = jax.random.uniform(kv, (cout,), jnp.float32, 0.5, 1.5)
        return (w, gamma, beta, mean, var)

    keys = jax.random.split(key, 8)
    params = {
        "b0":   conv_bn(keys[0], 32, 320, 1),
        "b1_0": conv_bn(keys[1], 32, 320, 1),
        "b1_1": conv_bn(keys[2], 32, 32, 3),
        "b2_0": conv_bn(keys[3], 32, 320, 1),
        "b2_1": conv_bn(keys[4], 48, 32, 3),
        "b2_2": conv_bn(keys[5], 64, 48, 3),
    }
    w_fin = 0.05 * jax.random.normal(keys[6], (320, 128, 1, 1), jnp.float32)
    b_fin = 0.1 * jax.random.normal(keys[7], (320,), jnp.float32)
    params["conv2d"] = (w_fin, b_fin)
    return params


# ---------------------------------- main ------------------------------------ #

if __name__ == "__main__":
    key = jax.random.PRNGKey(0)
    kx, kp = jax.random.split(key)
    # Channel count (320) is fixed by the module; keep batch/spatial small.
    x = jax.random.normal(kx, (2, 320, 8, 8), jnp.float32)   # NCHW like PyTorch
    params = make_params(kp)
    scale = 0.17

    out = jax.block_until_ready(block35_pallas(x, params, scale))
    ref = jax.block_until_ready(block35_reference(x, params, scale))
    # bf16 MXU operands (f32 accumulation) vs. f32 reference -> relaxed tol.
    np.testing.assert_allclose(np.asarray(out), np.asarray(ref),
                               rtol=1e-2, atol=1e-2)
    print("KERNEL_OK")
</pallas_src>

<mosaic_0001>
module attributes {stable_mosaic.version = 11 : i64} {
  func.func @_block35_kernel(%arg0: i32, %arg1: memref<1x64x320xf32, #tpu.memory_space<vmem>>, %arg2: memref<320x96xbf16, #tpu.memory_space<vmem>>, %arg3: memref<1x96xf32, #tpu.memory_space<vmem>>, %arg4: memref<576x80xbf16, #tpu.memory_space<vmem>>, %arg5: memref<1x80xf32, #tpu.memory_space<vmem>>, %arg6: memref<432x64xbf16, #tpu.memory_space<vmem>>, %arg7: memref<1x64xf32, #tpu.memory_space<vmem>>, %arg8: memref<128x320xbf16, #tpu.memory_space<vmem>>, %arg9: memref<1x320xf32, #tpu.memory_space<vmem>>, %arg10: memref<64x1xf32, #tpu.memory_space<vmem>>, %arg11: memref<64x1xf32, #tpu.memory_space<vmem>>, %arg12: memref<1x64x320xf32, #tpu.memory_space<vmem>>, %arg13: memref<96x64xf32, #tpu.memory_space<vmem>>, %arg14: memref<96x48xf32, #tpu.memory_space<vmem>>) attributes {dimension_semantics = [#tpu.dimension_semantics<parallel>], iteration_bounds = array<i64: 2>, scalar_prefetch = 0 : i64, scratch_operands = 2 : i64, tpu.core_type = #tpu.core_type<tc>, window_params = [{transform_indices = @transform_0, window_bounds = array<i64: 1, 64, 320>}, {pipeline_mode = #tpu.pipeline_mode<synchronous>, transform_indices = @transform_1, window_bounds = array<i64: 320, 96>}, {pipeline_mode = #tpu.pipeline_mode<synchronous>, transform_indices = @transform_2, window_bounds = array<i64: 1, 96>}, {pipeline_mode = #tpu.pipeline_mode<synchronous>, transform_indices = @transform_3, window_bounds = array<i64: 576, 80>}, {pipeline_mode = #tpu.pipeline_mode<synchronous>, transform_indices = @transform_4, window_bounds = array<i64: 1, 80>}, {pipeline_mode = #tpu.pipeline_mode<synchronous>, transform_indices = @transform_5, window_bounds = array<i64: 432, 64>}, {pipeline_mode = #tpu.pipeline_mode<synchronous>, transform_indices = @transform_6, window_bounds = array<i64: 1, 64>}, {pipeline_mode = #tpu.pipeline_mode<synchronous>, transform_indices = @transform_7, window_bounds = array<i64: 128, 320>}, {pipeline_mode = #tpu.pipeline_mode<synchronous>, transform_indices = @transform_8, window_bounds = array<i64: 1, 320>}, {pipeline_mode = #tpu.pipeline_mode<synchronous>, transform_indices = @transform_9, window_bounds = array<i64: 64, 1>}, {pipeline_mode = #tpu.pipeline_mode<synchronous>, transform_indices = @transform_10, window_bounds = array<i64: 64, 1>}, {transform_indices = @transform_11, window_bounds = array<i64: 1, 64, 320>}]} {
    %c0 = arith.constant 0 : index
    %c0_0 = arith.constant 0 : index
    %c0_1 = arith.constant 0 : index
    %0 = vector.load %arg1[%c0, %c0_0, %c0_1] : memref<1x64x320xf32, #tpu.memory_space<vmem>>, vector<1x64x320xf32>
    %1 = vector.shape_cast %0 : vector<1x64x320xf32> to vector<64x320xf32>
    %c0_2 = arith.constant 0 : index
    %c0_3 = arith.constant 0 : index
    %2 = vector.load %arg10[%c0_2, %c0_3] : memref<64x1xf32, #tpu.memory_space<vmem>>, vector<64x1xf32>
    %c0_4 = arith.constant 0 : index
    %c0_5 = arith.constant 0 : index
    %3 = vector.load %arg11[%c0_4, %c0_5] : memref<64x1xf32, #tpu.memory_space<vmem>>, vector<64x1xf32>
    %cst = arith.constant 0.000000e+00 : f32
    %4 = vector.broadcast %cst : f32 to vector<16x64xf32>
    %cst_6 = arith.constant 0.000000e+00 : f32
    %5 = vector.broadcast %cst_6 : f32 to vector<16x48xf32>
    %c0_7 = arith.constant 0 : index
    %c0_8 = arith.constant 0 : index
    %6 = vector.load %arg13[%c0_7, %c0_8] : memref<96x64xf32, #tpu.memory_space<vmem>>, vector<16x64xf32>
    tpu.vector_store %arg13[%c0_7, %c0_8], %4 {strides = array<i32>} : memref<96x64xf32, #tpu.memory_space<vmem>>, vector<16x64xf32>,
    %c80 = arith.constant 80 : index
    %c0_9 = arith.constant 0 : index
    %7 = vector.load %arg13[%c80, %c0_9] : memref<96x64xf32, #tpu.memory_space<vmem>>, vector<16x64xf32>
    tpu.vector_store %arg13[%c80, %c0_9], %4 {strides = array<i32>} : memref<96x64xf32, #tpu.memory_space<vmem>>, vector<16x64xf32>,
    %c0_10 = arith.constant 0 : index
    %c0_11 = arith.constant 0 : index
    %8 = vector.load %arg14[%c0_10, %c0_11] : memref<96x48xf32, #tpu.memory_space<vmem>>, vector<16x48xf32>
    tpu.vector_store %arg14[%c0_10, %c0_11], %5 {strides = array<i32>} : memref<96x48xf32, #tpu.memory_space<vmem>>, vector<16x48xf32>,
    %c80_12 = arith.constant 80 : index
    %c0_13 = arith.constant 0 : index
    %9 = vector.load %arg14[%c80_12, %c0_13] : memref<96x48xf32, #tpu.memory_space<vmem>>, vector<16x48xf32>
    tpu.vector_store %arg14[%c80_12, %c0_13], %5 {strides = array<i32>} : memref<96x48xf32, #tpu.memory_space<vmem>>, vector<16x48xf32>,
    %10 = arith.truncf %1 : vector<64x320xf32> to vector<64x320xbf16>
    %c0_14 = arith.constant 0 : index
    %c0_15 = arith.constant 0 : index
    %11 = vector.load %arg2[%c0_14, %c0_15] : memref<320x96xbf16, #tpu.memory_space<vmem>>, vector<320x96xbf16>
    %cst_16 = arith.constant dense<0.000000e+00> : vector<64x96xf32>
    %12 = tpu.matmul %10, %11, %cst_16 {dimension_numbers = #tpu.dot_dimension_numbers<[1], [0], [0], [1], [0, 0, 1, 1], [], []>} : vector<64x320xbf16>, vector<320x96xbf16>, vector<64x96xf32> -> vector<64x96xf32>
    %c0_17 = arith.constant 0 : index
    %c0_18 = arith.constant 0 : index
    %13 = vector.load %arg3[%c0_17, %c0_18] : memref<1x96xf32, #tpu.memory_space<vmem>>, vector<1x96xf32>
    %14 = vector.broadcast %13 : vector<1x96xf32> to vector<64x96xf32>
    %15 = arith.addf %12, %14 : vector<64x96xf32>
    %cst_19 = arith.constant 0.000000e+00 : f32
    %16 = vector.broadcast %cst_19 : f32 to vector<64x96xf32>
    %17 = arith.maximumf %15, %16 : vector<64x96xf32>
    %18 = vector.extract_strided_slice %17 {offsets = [0, 64], sizes = [64, 32], strides = [1, 1]} : vector<64x96xf32> to vector<64x32xf32>
    %19 = vector.extract_strided_slice %17 {offsets = [0, 0], sizes = [64, 64], strides = [1, 1]} : vector<64x96xf32> to vector<64x64xf32>
    %c16 = arith.constant 16 : index
    %c0_20 = arith.constant 0 : index
    %20 = vector.load %arg13[%c16, %c0_20] : memref<96x64xf32, #tpu.memory_space<vmem>>, vector<64x64xf32>
    tpu.vector_store %arg13[%c16, %c0_20], %19 {strides = array<i32>} : memref<96x64xf32, #tpu.memory_space<vmem>>, vector<64x64xf32>,
    %c0_21 = arith.constant 0 : index
    %c0_22 = arith.constant 0 : index
    %21 = vector.load %arg5[%c0_21, %c0_22] : memref<1x80xf32, #tpu.memory_space<vmem>>, vector<1x80xf32>
    %cst_23 = arith.constant 0.000000e+00 : f32
    %22 = vector.broadcast %cst_23 : f32 to vector<64x80xf32>
    %c7 = arith.constant 7 : index
    %c0_24 = arith.constant 0 : index
    %23 = vector.load %arg13[%c7, %c0_24] : memref<96x64xf32, #tpu.memory_space<vmem>>, vector<64x64xf32>
    %24 = vector.broadcast %2 : vector<64x1xf32> to vector<64x64xf32>
    %25 = arith.mulf %23, %24 : vector<64x64xf32>
    %c0_25 = arith.constant 0 : index
    %c0_26 = arith.constant 0 : index
    %26 = vector.load %arg4[%c0_25, %c0_26] : memref<576x80xbf16, #tpu.memory_space<vmem>>, vector<64x80xbf16>
    %27 = arith.truncf %25 : vector<64x64xf32> to vector<64x64xbf16>
    %cst_27 = arith.constant dense<0.000000e+00> : vector<64x80xf32>
    %28 = tpu.matmul %27, %26, %cst_27 {dimension_numbers = #tpu.dot_dimension_numbers<[1], [0], [0], [1], [0, 0, 1, 1], [], []>} : vector<64x64xbf16>, vector<64x80xbf16>, vector<64x80xf32> -> vector<64x80xf32>
    %29 = arith.addf %22, %28 : vector<64x80xf32>
    %c8 = arith.constant 8 : index
    %c0_28 = arith.constant 0 : index
    %30 = vector.load %arg13[%c8, %c0_28] : memref<96x64xf32, #tpu.memory_space<vmem>>, vector<64x64xf32>
    %c64 = arith.constant 64 : index
    %c0_29 = arith.constant 0 : index
    %31 = vector.load %arg4[%c64, %c0_29] : memref<576x80xbf16, #tpu.memory_space<vmem>>, vector<64x80xbf16>
    %32 = arith.truncf %30 : vector<64x64xf32> to vector<64x64xbf16>
    %cst_30 = arith.constant dense<0.000000e+00> : vector<64x80xf32>
    %33 = tpu.matmul %32, %31, %cst_30 {dimension_numbers = #tpu.dot_dimension_numbers<[1], [0], [0], [1], [0, 0, 1, 1], [], []>} : vector<64x64xbf16>, vector<64x80xbf16>, vector<64x80xf32> -> vector<64x80xf32>
    %34 = arith.addf %29, %33 : vector<64x80xf32>
    %c9 = arith.constant 9 : index
    %c0_31 = arith.constant 0 : index
    %35 = vector.load %arg13[%c9, %c0_31] : memref<96x64xf32, #tpu.memory_space<vmem>>, vector<64x64xf32>
    %36 = vector.broadcast %3 : vector<64x1xf32> to vector<64x64xf32>
    %37 = arith.mulf %35, %36 : vector<64x64xf32>
    %c128 = arith.constant 128 : index
    %c0_32 = arith.constant 0 : index
    %38 = vector.load %arg4[%c128, %c0_32] : memref<576x80xbf16, #tpu.memory_space<vmem>>, vector<64x80xbf16>
    %39 = arith.truncf %37 : vector<64x64xf32> to vector<64x64xbf16>
    %cst_33 = arith.constant dense<0.000000e+00> : vector<64x80xf32>
    %40 = tpu.matmul %39, %38, %cst_33 {dimension_numbers = #tpu.dot_dimension_numbers<[1], [0], [0], [1], [0, 0, 1, 1], [], []>} : vector<64x64xbf16>, vector<64x80xbf16>, vector<64x80xf32> -> vector<64x80xf32>
    %41 = arith.addf %34, %40 : vector<64x80xf32>
    %c15 = arith.constant 15 : index
    %c0_34 = arith.constant 0 : index
    %42 = vector.load %arg13[%c15, %c0_34] : memref<96x64xf32, #tpu.memory_space<vmem>>, vector<64x64xf32>
    %43 = vector.broadcast %2 : vector<64x1xf32> to vector<64x64xf32>
    %44 = arith.mulf %42, %43 : vector<64x64xf32>
    %c192 = arith.constant 192 : index
    %c0_35 = arith.constant 0 : index
    %45 = vector.load %arg4[%c192, %c0_35] : memref<576x80xbf16, #tpu.memory_space<vmem>>, vector<64x80xbf16>
    %46 = arith.truncf %44 : vector<64x64xf32> to vector<64x64xbf16>
    %cst_36 = arith.constant dense<0.000000e+00> : vector<64x80xf32>
    %47 = tpu.matmul %46, %45, %cst_36 {dimension_numbers = #tpu.dot_dimension_numbers<[1], [0], [0], [1], [0, 0, 1, 1], [], []>} : vector<64x64xbf16>, vector<64x80xbf16>, vector<64x80xf32> -> vector<64x80xf32>
    %48 = arith.addf %41, %47 : vector<64x80xf32>
    %c16_37 = arith.constant 16 : index
    %c0_38 = arith.constant 0 : index
    %49 = vector.load %arg13[%c16_37, %c0_38] : memref<96x64xf32, #tpu.memory_space<vmem>>, vector<64x64xf32>
    %c256 = arith.constant 256 : index
    %c0_39 = arith.constant 0 : index
    %50 = vector.load %arg4[%c256, %c0_39] : memref<576x80xbf16, #tpu.memory_space<vmem>>, vector<64x80xbf16>
    %51 = arith.truncf %49 : vector<64x64xf32> to vector<64x64xbf16>
    %cst_40 = arith.constant dense<0.000000e+00> : vector<64x80xf32>
    %52 = tpu.matmul %51, %50, %cst_40 {dimension_numbers = #tpu.dot_dimension_numbers<[1], [0], [0], [1], [0, 0, 1, 1], [], []>} : vector<64x64xbf16>, vector<64x80xbf16>, vector<64x80xf32> -> vector<64x80xf32>
    %53 = arith.addf %48, %52 : vector<64x80xf32>
    %c17 = arith.constant 17 : index
    %c0_41 = arith.constant 0 : index
    %54 = vector.load %arg13[%c17, %c0_41] : memref<96x64xf32, #tpu.memory_space<vmem>>, vector<64x64xf32>
    %55 = vector.broadcast %3 : vector<64x1xf32> to vector<64x64xf32>
    %56 = arith.mulf %54, %55 : vector<64x64xf32>
    %c320 = arith.constant 320 : index
    %c0_42 = arith.constant 0 : index
    %57 = vector.load %arg4[%c320, %c0_42] : memref<576x80xbf16, #tpu.memory_space<vmem>>, vector<64x80xbf16>
    %58 = arith.truncf %56 : vector<64x64xf32> to vector<64x64xbf16>
    %cst_43 = arith.constant dense<0.000000e+00> : vector<64x80xf32>
    %59 = tpu.matmul %58, %57, %cst_43 {dimension_numbers = #tpu.dot_dimension_numbers<[1], [0], [0], [1], [0, 0, 1, 1], [], []>} : vector<64x64xbf16>, vector<64x80xbf16>, vector<64x80xf32> -> vector<64x80xf32>
    %60 = arith.addf %53, %59 : vector<64x80xf32>
    %c23 = arith.constant 23 : index
    %c0_44 = arith.constant 0 : index
    %61 = vector.load %arg13[%c23, %c0_44] : memref<96x64xf32, #tpu.memory_space<vmem>>, vector<64x64xf32>
    %62 = vector.broadcast %2 : vector<64x1xf32> to vector<64x64xf32>
    %63 = arith.mulf %61, %62 : vector<64x64xf32>
    %c384 = arith.constant 384 : index
    %c0_45 = arith.constant 0 : index
    %64 = vector.load %arg4[%c384, %c0_45] : memref<576x80xbf16, #tpu.memory_space<vmem>>, vector<64x80xbf16>
    %65 = arith.truncf %63 : vector<64x64xf32> to vector<64x64xbf16>
    %cst_46 = arith.constant dense<0.000000e+00> : vector<64x80xf32>
    %66 = tpu.matmul %65, %64, %cst_46 {dimension_numbers = #tpu.dot_dimension_numbers<[1], [0], [0], [1], [0, 0, 1, 1], [], []>} : vector<64x64xbf16>, vector<64x80xbf16>, vector<64x80xf32> -> vector<64x80xf32>
    %67 = arith.addf %60, %66 : vector<64x80xf32>
    %c24 = arith.constant 24 : index
    %c0_47 = arith.constant 0 : index
    %68 = vector.load %arg13[%c24, %c0_47] : memref<96x64xf32, #tpu.memory_space<vmem>>, vector<64x64xf32>
    %c448 = arith.constant 448 : index
    %c0_48 = arith.constant 0 : index
    %69 = vector.load %arg4[%c448, %c0_48] : memref<576x80xbf16, #tpu.memory_space<vmem>>, vector<64x80xbf16>
    %70 = arith.truncf %68 : vector<64x64xf32> to vector<64x64xbf16>
    %cst_49 = arith.constant dense<0.000000e+00> : vector<64x80xf32>
    %71 = tpu.matmul %70, %69, %cst_49 {dimension_numbers = #tpu.dot_dimension_numbers<[1], [0], [0], [1], [0, 0, 1, 1], [], []>} : vector<64x64xbf16>, vector<64x80xbf16>, vector<64x80xf32> -> vector<64x80xf32>
    %72 = arith.addf %67, %71 : vector<64x80xf32>
    %c25 = arith.constant 25 : index
    %c0_50 = arith.constant 0 : index
    %73 = vector.load %arg13[%c25, %c0_50] : memref<96x64xf32, #tpu.memory_space<vmem>>, vector<64x64xf32>
    %74 = vector.broadcast %3 : vector<64x1xf32> to vector<64x64xf32>
    %75 = arith.mulf %73, %74 : vector<64x64xf32>
    %c512 = arith.constant 512 : index
    %c0_51 = arith.constant 0 : index
    %76 = vector.load %arg4[%c512, %c0_51] : memref<576x80xbf16, #tpu.memory_space<vmem>>, vector<64x80xbf16>
    %77 = arith.truncf %75 : vector<64x64xf32> to vector<64x64xbf16>
    %cst_52 = arith.constant dense<0.000000e+00> : vector<64x80xf32>
    %78 = tpu.matmul %77, %76, %cst_52 {dimension_numbers = #tpu.dot_dimension_numbers<[1], [0], [0], [1], [0, 0, 1, 1], [], []>} : vector<64x64xbf16>, vector<64x80xbf16>, vector<64x80xf32> -> vector<64x80xf32>
    %79 = arith.addf %72, %78 : vector<64x80xf32>
    %80 = vector.broadcast %21 : vector<1x80xf32> to vector<64x80xf32>
    %81 = arith.addf %79, %80 : vector<64x80xf32>
    %cst_53 = arith.constant 0.000000e+00 : f32
    %82 = vector.broadcast %cst_53 : f32 to vector<64x80xf32>
    %83 = arith.maximumf %81, %82 : vector<64x80xf32>
    %84 = vector.extract_strided_slice %83 {offsets = [0, 0], sizes = [64, 32], strides = [1, 1]} : vector<64x80xf32> to vector<64x32xf32>
    %85 = vector.extract_strided_slice %83 {offsets = [0, 32], sizes = [64, 48], strides = [1, 1]} : vector<64x80xf32> to vector<64x48xf32>
    %c16_54 = arith.constant 16 : index
    %c0_55 = arith.constant 0 : index
    %86 = vector.load %arg14[%c16_54, %c0_55] : memref<96x48xf32, #tpu.memory_space<vmem>>, vector<64x48xf32>
    tpu.vector_store %arg14[%c16_54, %c0_55], %85 {strides = array<i32>} : memref<96x48xf32, #tpu.memory_space<vmem>>, vector<64x48xf32>,
    %c0_56 = arith.constant 0 : index
    %c0_57 = arith.constant 0 : index
    %87 = vector.load %arg7[%c0_56, %c0_57] : memref<1x64xf32, #tpu.memory_space<vmem>>, vector<1x64xf32>
    %cst_58 = arith.constant 0.000000e+00 : f32
    %88 = vector.broadcast %cst_58 : f32 to vector<64x64xf32>
    %c7_59 = arith.constant 7 : index
    %c0_60 = arith.constant 0 : index
    %89 = vector.load %arg14[%c7_59, %c0_60] : memref<96x48xf32, #tpu.memory_space<vmem>>, vector<64x48xf32>
    %90 = vector.broadcast %2 : vector<64x1xf32> to vector<64x48xf32>
    %91 = arith.mulf %89, %90 : vector<64x48xf32>
    %c0_61 = arith.constant 0 : index
    %c0_62 = arith.constant 0 : index
    %92 = vector.load %arg6[%c0_61, %c0_62] : memref<432x64xbf16, #tpu.memory_space<vmem>>, vector<48x64xbf16>
    %93 = arith.truncf %91 : vector<64x48xf32> to vector<64x48xbf16>
    %cst_63 = arith.constant dense<0.000000e+00> : vector<64x64xf32>
    %94 = tpu.matmul %93, %92, %cst_63 {dimension_numbers = #tpu.dot_dimension_numbers<[1], [0], [0], [1], [0, 0, 1, 1], [], []>} : vector<64x48xbf16>, vector<48x64xbf16>, vector<64x64xf32> -> vector<64x64xf32>
    %95 = arith.addf %88, %94 : vector<64x64xf32>
    %c8_64 = arith.constant 8 : index
    %c0_65 = arith.constant 0 : index
    %96 = vector.load %arg14[%c8_64, %c0_65] : memref<96x48xf32, #tpu.memory_space<vmem>>, vector<64x48xf32>
    %c48 = arith.constant 48 : index
    %c0_66 = arith.constant 0 : index
    %97 = vector.load %arg6[%c48, %c0_66] : memref<432x64xbf16, #tpu.memory_space<vmem>>, vector<48x64xbf16>
    %98 = arith.truncf %96 : vector<64x48xf32> to vector<64x48xbf16>
    %cst_67 = arith.constant dense<0.000000e+00> : vector<64x64xf32>
    %99 = tpu.matmul %98, %97, %cst_67 {dimension_numbers = #tpu.dot_dimension_numbers<[1], [0], [0], [1], [0, 0, 1, 1], [], []>} : vector<64x48xbf16>, vector<48x64xbf16>, vector<64x64xf32> -> vector<64x64xf32>
    %100 = arith.addf %95, %99 : vector<64x64xf32>
    %c9_68 = arith.constant 9 : index
    %c0_69 = arith.constant 0 : index
    %101 = vector.load %arg14[%c9_68, %c0_69] : memref<96x48xf32, #tpu.memory_space<vmem>>, vector<64x48xf32>
    %102 = vector.broadcast %3 : vector<64x1xf32> to vector<64x48xf32>
    %103 = arith.mulf %101, %102 : vector<64x48xf32>
    %c96 = arith.constant 96 : index
    %c0_70 = arith.constant 0 : index
    %104 = vector.load %arg6[%c96, %c0_70] : memref<432x64xbf16, #tpu.memory_space<vmem>>, vector<48x64xbf16>
    %105 = arith.truncf %103 : vector<64x48xf32> to vector<64x48xbf16>
    %cst_71 = arith.constant dense<0.000000e+00> : vector<64x64xf32>
    %106 = tpu.matmul %105, %104, %cst_71 {dimension_numbers = #tpu.dot_dimension_numbers<[1], [0], [0], [1], [0, 0, 1, 1], [], []>} : vector<64x48xbf16>, vector<48x64xbf16>, vector<64x64xf32> -> vector<64x64xf32>
    %107 = arith.addf %100, %106 : vector<64x64xf32>
    %c15_72 = arith.constant 15 : index
    %c0_73 = arith.constant 0 : index
    %108 = vector.load %arg14[%c15_72, %c0_73] : memref<96x48xf32, #tpu.memory_space<vmem>>, vector<64x48xf32>
    %109 = vector.broadcast %2 : vector<64x1xf32> to vector<64x48xf32>
    %110 = arith.mulf %108, %109 : vector<64x48xf32>
    %c144 = arith.constant 144 : index
    %c0_74 = arith.constant 0 : index
    %111 = vector.load %arg6[%c144, %c0_74] : memref<432x64xbf16, #tpu.memory_space<vmem>>, vector<48x64xbf16>
    %112 = arith.truncf %110 : vector<64x48xf32> to vector<64x48xbf16>
    %cst_75 = arith.constant dense<0.000000e+00> : vector<64x64xf32>
    %113 = tpu.matmul %112, %111, %cst_75 {dimension_numbers = #tpu.dot_dimension_numbers<[1], [0], [0], [1], [0, 0, 1, 1], [], []>} : vector<64x48xbf16>, vector<48x64xbf16>, vector<64x64xf32> -> vector<64x64xf32>
    %114 = arith.addf %107, %113 : vector<64x64xf32>
    %c16_76 = arith.constant 16 : index
    %c0_77 = arith.constant 0 : index
    %115 = vector.load %arg14[%c16_76, %c0_77] : memref<96x48xf32, #tpu.memory_space<vmem>>, vector<64x48xf32>
    %c192_78 = arith.constant 192 : index
    %c0_79 = arith.constant 0 : index
    %116 = vector.load %arg6[%c192_78, %c0_79] : memref<432x64xbf16, #tpu.memory_space<vmem>>, vector<48x64xbf16>
    %117 = arith.truncf %115 : vector<64x48xf32> to vector<64x48xbf16>
    %cst_80 = arith.constant dense<0.000000e+00> : vector<64x64xf32>
    %118 = tpu.matmul %117, %116, %cst_80 {dimension_numbers = #tpu.dot_dimension_numbers<[1], [0], [0], [1], [0, 0, 1, 1], [], []>} : vector<64x48xbf16>, vector<48x64xbf16>, vector<64x64xf32> -> vector<64x64xf32>
    %119 = arith.addf %114, %118 : vector<64x64xf32>
    %c17_81 = arith.constant 17 : index
    %c0_82 = arith.constant 0 : index
    %120 = vector.load %arg14[%c17_81, %c0_82] : memref<96x48xf32, #tpu.memory_space<vmem>>, vector<64x48xf32>
    %121 = vector.broadcast %3 : vector<64x1xf32> to vector<64x48xf32>
    %122 = arith.mulf %120, %121 : vector<64x48xf32>
    %c240 = arith.constant 240 : index
    %c0_83 = arith.constant 0 : index
    %123 = vector.load %arg6[%c240, %c0_83] : memref<432x64xbf16, #tpu.memory_space<vmem>>, vector<48x64xbf16>
    %124 = arith.truncf %122 : vector<64x48xf32> to vector<64x48xbf16>
    %cst_84 = arith.constant dense<0.000000e+00> : vector<64x64xf32>
    %125 = tpu.matmul %124, %123, %cst_84 {dimension_numbers = #tpu.dot_dimension_numbers<[1], [0], [0], [1], [0, 0, 1, 1], [], []>} : vector<64x48xbf16>, vector<48x64xbf16>, vector<64x64xf32> -> vector<64x64xf32>
    %126 = arith.addf %119, %125 : vector<64x64xf32>
    %c23_85 = arith.constant 23 : index
    %c0_86 = arith.constant 0 : index
    %127 = vector.load %arg14[%c23_85, %c0_86] : memref<96x48xf32, #tpu.memory_space<vmem>>, vector<64x48xf32>
    %128 = vector.broadcast %2 : vector<64x1xf32> to vector<64x48xf32>
    %129 = arith.mulf %127, %128 : vector<64x48xf32>
    %c288 = arith.constant 288 : index
    %c0_87 = arith.constant 0 : index
    %130 = vector.load %arg6[%c288, %c0_87] : memref<432x64xbf16, #tpu.memory_space<vmem>>, vector<48x64xbf16>
    %131 = arith.truncf %129 : vector<64x48xf32> to vector<64x48xbf16>
    %cst_88 = arith.constant dense<0.000000e+00> : vector<64x64xf32>
    %132 = tpu.matmul %131, %130, %cst_88 {dimension_numbers = #tpu.dot_dimension_numbers<[1], [0], [0], [1], [0, 0, 1, 1], [], []>} : vector<64x48xbf16>, vector<48x64xbf16>, vector<64x64xf32> -> vector<64x64xf32>
    %133 = arith.addf %126, %132 : vector<64x64xf32>
    %c24_89 = arith.constant 24 : index
    %c0_90 = arith.constant 0 : index
    %134 = vector.load %arg14[%c24_89, %c0_90] : memref<96x48xf32, #tpu.memory_space<vmem>>, vector<64x48xf32>
    %c336 = arith.constant 336 : index
    %c0_91 = arith.constant 0 : index
    %135 = vector.load %arg6[%c336, %c0_91] : memref<432x64xbf16, #tpu.memory_space<vmem>>, vector<48x64xbf16>
    %136 = arith.truncf %134 : vector<64x48xf32> to vector<64x48xbf16>
    %cst_92 = arith.constant dense<0.000000e+00> : vector<64x64xf32>
    %137 = tpu.matmul %136, %135, %cst_92 {dimension_numbers = #tpu.dot_dimension_numbers<[1], [0], [0], [1], [0, 0, 1, 1], [], []>} : vector<64x48xbf16>, vector<48x64xbf16>, vector<64x64xf32> -> vector<64x64xf32>
    %138 = arith.addf %133, %137 : vector<64x64xf32>
    %c25_93 = arith.constant 25 : index
    %c0_94 = arith.constant 0 : index
    %139 = vector.load %arg14[%c25_93, %c0_94] : memref<96x48xf32, #tpu.memory_space<vmem>>, vector<64x48xf32>
    %140 = vector.broadcast %3 : vector<64x1xf32> to vector<64x48xf32>
    %141 = arith.mulf %139, %140 : vector<64x48xf32>
    %c384_95 = arith.constant 384 : index
    %c0_96 = arith.constant 0 : index
    %142 = vector.load %arg6[%c384_95, %c0_96] : memref<432x64xbf16, #tpu.memory_space<vmem>>, vector<48x64xbf16>
    %143 = arith.truncf %141 : vector<64x48xf32> to vector<64x48xbf16>
    %cst_97 = arith.constant dense<0.000000e+00> : vector<64x64xf32>
    %144 = tpu.matmul %143, %142, %cst_97 {dimension_numbers = #tpu.dot_dimension_numbers<[1], [0], [0], [1], [0, 0, 1, 1], [], []>} : vector<64x48xbf16>, vector<48x64xbf16>, vector<64x64xf32> -> vector<64x64xf32>
    %145 = arith.addf %138, %144 : vector<64x64xf32>
    %146 = vector.broadcast %87 : vector<1x64xf32> to vector<64x64xf32>
    %147 = arith.addf %145, %146 : vector<64x64xf32>
    %cst_98 = arith.constant 0.000000e+00 : f32
    %148 = vector.broadcast %cst_98 : f32 to vector<64x64xf32>
    %149 = arith.maximumf %147, %148 : vector<64x64xf32>
    %150 = tpu.concatenate %84, %149, %18 in 1 : vector<64x32xf32>, vector<64x64xf32>, vector<64x32xf32> -> vector<64x128xf32>
    %151 = arith.truncf %150 : vector<64x128xf32> to vector<64x128xbf16>
    %c0_99 = arith.constant 0 : index
    %c0_100 = arith.constant 0 : index
    %152 = vector.load %arg8[%c0_99, %c0_100] : memref<128x320xbf16, #tpu.memory_space<vmem>>, vector<128x320xbf16>
    %cst_101 = arith.constant dense<0.000000e+00> : vector<64x320xf32>
    %153 = tpu.matmul %151, %152, %cst_101 {dimension_numbers = #tpu.dot_dimension_numbers<[1], [0], [0], [1], [0, 0, 1, 1], [], []>} : vector<64x128xbf16>, vector<128x320xbf16>, vector<64x320xf32> -> vector<64x320xf32>
    %c0_102 = arith.constant 0 : index
    %c0_103 = arith.constant 0 : index
    %154 = vector.load %arg9[%c0_102, %c0_103] : memref<1x320xf32, #tpu.memory_space<vmem>>, vector<1x320xf32>
    %155 = vector.broadcast %154 : vector<1x320xf32> to vector<64x320xf32>
    %156 = arith.addf %153, %155 : vector<64x320xf32>
    %cst_104 = arith.constant 1.700000e-01 : f32
    %157 = vector.broadcast %cst_104 : f32 to vector<64x320xf32>
    %158 = arith.mulf %156, %157 : vector<64x320xf32>
    %159 = arith.addf %158, %1 : vector<64x320xf32>
    %cst_105 = arith.constant 0.000000e+00 : f32
    %160 = vector.broadcast %cst_105 : f32 to vector<64x320xf32>
    %161 = arith.maximumf %159, %160 : vector<64x320xf32>
    %c0_106 = arith.constant 0 : index
    %c0_107 = arith.constant 0 : index
    %c0_108 = arith.constant 0 : index
    %162 = vector.load %arg12[%c0_106, %c0_107, %c0_108] : memref<1x64x320xf32, #tpu.memory_space<vmem>>, vector<1x64x320xf32>
    %163 = vector.shape_cast %162 : vector<1x64x320xf32> to vector<64x320xf32>
    %164 = vector.shape_cast %161 : vector<64x320xf32> to vector<1x64x320xf32>
    tpu.vector_store %arg12[%c0_106, %c0_107, %c0_108], %164 {strides = array<i32>} : memref<1x64x320xf32, #tpu.memory_space<vmem>>, vector<1x64x320xf32>,
    return
  }
  func.func @transform_0(%arg0: i32) -> (i32, i32, i32) {
    %c0_i32 = arith.constant 0 : i32
    %c0_i32_0 = arith.constant 0 : i32
    %c0_i32_1 = arith.constant 0 : i32
    return %arg0, %c0_i32, %c0_i32_0 : i32, i32, i32
  }
  func.func @transform_1(%arg0: i32) -> (i32, i32) {
    %c0_i32 = arith.constant 0 : i32
    %c0_i32_0 = arith.constant 0 : i32
    %c0_i32_1 = arith.constant 0 : i32
    return %c0_i32, %c0_i32_0 : i32, i32
  }
  func.func @transform_2(%arg0: i32) -> (i32, i32) {
    %c0_i32 = arith.constant 0 : i32
    %c0_i32_0 = arith.constant 0 : i32
    %c0_i32_1 = arith.constant 0 : i32
    return %c0_i32, %c0_i32_0 : i32, i32
  }
  func.func @transform_3(%arg0: i32) -> (i32, i32) {
    %c0_i32 = arith.constant 0 : i32
    %c0_i32_0 = arith.constant 0 : i32
    %c0_i32_1 = arith.constant 0 : i32
    return %c0_i32, %c0_i32_0 : i32, i32
  }
  func.func @transform_4(%arg0: i32) -> (i32, i32) {
    %c0_i32 = arith.constant 0 : i32
    %c0_i32_0 = arith.constant 0 : i32
    %c0_i32_1 = arith.constant 0 : i32
    return %c0_i32, %c0_i32_0 : i32, i32
  }
  func.func @transform_5(%arg0: i32) -> (i32, i32) {
    %c0_i32 = arith.constant 0 : i32
    %c0_i32_0 = arith.constant 0 : i32
    %c0_i32_1 = arith.constant 0 : i32
    return %c0_i32, %c0_i32_0 : i32, i32
  }
  func.func @transform_6(%arg0: i32) -> (i32, i32) {
    %c0_i32 = arith.constant 0 : i32
    %c0_i32_0 = arith.constant 0 : i32
    %c0_i32_1 = arith.constant 0 : i32
    return %c0_i32, %c0_i32_0 : i32, i32
  }
  func.func @transform_7(%arg0: i32) -> (i32, i32) {
    %c0_i32 = arith.constant 0 : i32
    %c0_i32_0 = arith.constant 0 : i32
    %c0_i32_1 = arith.constant 0 : i32
    return %c0_i32, %c0_i32_0 : i32, i32
  }
  func.func @transform_8(%arg0: i32) -> (i32, i32) {
    %c0_i32 = arith.constant 0 : i32
    %c0_i32_0 = arith.constant 0 : i32
    %c0_i32_1 = arith.constant 0 : i32
    return %c0_i32, %c0_i32_0 : i32, i32
  }
  func.func @transform_9(%arg0: i32) -> (i32, i32) {
    %c0_i32 = arith.constant 0 : i32
    %c0_i32_0 = arith.constant 0 : i32
    %c0_i32_1 = arith.constant 0 : i32
    return %c0_i32, %c0_i32_0 : i32, i32
  }
  func.func @transform_10(%arg0: i32) -> (i32, i32) {
    %c0_i32 = arith.constant 0 : i32
    %c0_i32_0 = arith.constant 0 : i32
    %c0_i32_1 = arith.constant 0 : i32
    return %c0_i32, %c0_i32_0 : i32, i32
  }
  func.func @transform_11(%arg0: i32) -> (i32, i32, i32) {
    %c0_i32 = arith.constant 0 : i32
    %c0_i32_0 = arith.constant 0 : i32
    %c0_i32_1 = arith.constant 0 : i32
    return %arg0, %c0_i32, %c0_i32_0 : i32, i32, i32
  }
}

</mosaic_0001>

<llo_original>
// kernel: tpu_custom_call.1
$region0: #{tpu_custom_call.1}
  #allocation0 [shape = 'u32[]', space=smem, size = 0x4, offset = 0x4, fixed_abs, tag = 'smem constant byte address 0x4 - core index']
  #allocation1 [shape = 'u32[72,128]{1,0:T(1,128)}', space=vmem, size = 0x9000, scoped, tag = 'internal scratch']
  #allocation2 [shape = 'f32[96,64]{1,0:T(8,128)}', space=vmem, size = 0xc000, scoped, tag = 'scratch operand']
  #allocation3 [shape = 'f32[96,48]{1,0:T(8,128)}', space=vmem, size = 0xc000, scoped, tag = 'scratch operand']
  %s0 = inlined_call_operand.vmem [shape: f32[2,64,320], index: 0, kind: input, shape index: {}]
  %s1 = inlined_call_operand.vmem [shape: bf16[320,96], index: 1, kind: input, shape index: {}]
  %s2 = inlined_call_operand.vmem [shape: f32[1,96], index: 2, kind: input, shape index: {}]
  %s3 = inlined_call_operand.vmem [shape: bf16[576,80], index: 3, kind: input, shape index: {}]
  %s4 = inlined_call_operand.vmem [shape: f32[1,80], index: 4, kind: input, shape index: {}]
  %s5 = inlined_call_operand.vmem [shape: bf16[432,64], index: 5, kind: input, shape index: {}]
  %s6 = inlined_call_operand.vmem [shape: f32[1,64], index: 6, kind: input, shape index: {}]
  %s7 = inlined_call_operand.vmem [shape: bf16[128,320], index: 7, kind: input, shape index: {}]
  %s8 = inlined_call_operand.vmem [shape: f32[1,320], index: 8, kind: input, shape index: {}]
  %s9 = inlined_call_operand.vmem [shape: f32[64,1], index: 9, kind: input, shape index: {}]
  %s10 = inlined_call_operand.vmem [shape: f32[64,1], index: 10, kind: input, shape index: {}]
  %s11 = inlined_call_operand.hbm [shape: f32[2,64,320], index: 11, kind: output, shape index: {}]
  %s12 = sld [smem:[#allocation0]]
  $region77: #{tpu_custom_call.1} parent=0
    _
  %s14 = ssub.s32 1, %s12
  %s15 = scalar_select 0, %s14, %s12
  $region1: #{tpu_custom_call.1} parent=0
    #allocation4 [shape = 'u8[196608]{0}', space=vmem, size = 0x30000, scoped, tag = 'output window, operand 0']
    #allocation5 [shape = 's32[2]{0}', space=sflag, size = 0x8, scoped, tag = 'scoped memory for tpu_custom_call.1']
    %16 = vsyncpa [#allocation5], 0
    %s17 = scalar_lea.sflag [#allocation5], 1
    %18 = vsyncpa %s17, 0
    loop: start=0, step=1, limit=4
    $region2: #{tpu_custom_call.1} parent=1 // loop_pre_header
      _
    $region3: #{tpu_custom_call.1} parent=1 // loop_header
      %s20 = sphi 0, %s24
      %p21 = scmp.ge.s32.totalorder %s20, 4
      %s30 = sphi 0, %s32
      %s33 = sphi 0, %s30
      %s34 = sphi 0, %s33
      %s50 = sphi 0, %s34
      %s54 = sphi 0, %s54
      %s56 = sphi 0, %s54
      %s57 = sphi 0, %s56
      %s71 = sphi 0, %s57
      %s75 = sphi 0, %s75
      %s77 = sphi 0, %s75
      %s78 = sphi 0, %s77
      %s92 = sphi 0, %s78
      %s96 = sphi 0, %s96
      %s98 = sphi 0, %s96
      %s99 = sphi 0, %s98
      %s113 = sphi 0, %s99
      %s117 = sphi 0, %s117
      %s119 = sphi 0, %s117
      %s120 = sphi 0, %s119
      %s134 = sphi 0, %s120
      %s138 = sphi 0, %s138
      %s140 = sphi 0, %s138
      %s141 = sphi 0, %s140
      %s155 = sphi 0, %s141
      %s159 = sphi 0, %s159
      %s161 = sphi 0, %s159
      %s162 = sphi 0, %s161
      %s176 = sphi 0, %s162
      %s180 = sphi 0, %s180
      %s182 = sphi 0, %s180
      %s183 = sphi 0, %s182
      %s197 = sphi 0, %s183
      %s201 = sphi 0, %s201
      %s203 = sphi 0, %s201
      %s204 = sphi 0, %s203
      %s218 = sphi 0, %s204
      %s222 = sphi 0, %s222
      %s224 = sphi 0, %s222
      %s225 = sphi 0, %s224
      %s239 = sphi 0, %s225
      %s243 = sphi 0, %s243
      %s245 = sphi 0, %s243
      %s246 = sphi 0, %s245
      %s260 = sphi 0, %s246
      %s266 = sphi 0, %s268
      %s269 = sphi 0, %s266
      %s270 = sphi 0, %s269
      %s286 = sphi 0, %s270
    $region4: #{tpu_custom_call.1} parent=1 // loop_header_branch
      %23 = sbr.rel (%p21) target = $region8
    $region5: #{tpu_custom_call.1} parent=1 // loop_body
      %s25 = ssub.s32 %s20, 1
      %s26 = ssub.s32 %s20, 2
      %s27 = sadd.s32 %s20, 1
      %s28 = ssub.s32 %s20, %s27
      %p29 = scmp.eq.s32.totalorder %s28, 0
      %s31 = sadd.s32 %s30, 1
      %s32 = scalar_select %p29, %s30, %s31
      %p35 = pneg %p29
      %p36 = scmp.eq.s32.totalorder %s20, 1
      %p37 = por %p35, %p36
      %p38 = scmp.ne.s32.totalorder %s30, %s33
      %p39 = scmp.eq.s32.totalorder %s20, 0
      %p40 = por %p38, %p39
      %p41 = scmp.ne.s32.totalorder %s30, %s33
      %p42 = scmp.eq.s32.totalorder %s25, 1
      %p43 = por %p41, %p42
      %p44 = scmp.ne.s32.totalorder %s33, %s34
      %p45 = scmp.eq.s32.totalorder %s25, 0
      %p46 = por %p44, %p45
      %p47 = scmp.ne.s32.totalorder %s33, %s34
      %p48 = scmp.eq.s32.totalorder %s26, 1
      %p49 = por %p47, %p48
      %p51 = scmp.ne.s32.totalorder %s34, %s50
      %p52 = scmp.eq.s32.totalorder %s26, 0
      %p53 = por %p51, %p52
      %s55 = sadd.s32 %s54, 1
      %p58 = scmp.eq.s32.totalorder %s20, 1
      %p59 = scmp.ne.s32.totalorder %s54, %s56
      %p60 = scmp.eq.s32.totalorder %s20, 0
      %p61 = por %p59, %p60
      %p62 = scmp.ne.s32.totalorder %s54, %s56
      %p63 = scmp.eq.s32.totalorder %s25, 1
      %p64 = por %p62, %p63
      %p65 = scmp.ne.s32.totalorder %s56, %s57
      %p66 = scmp.eq.s32.totalorder %s25, 0
      %p67 = por %p65, %p66
      %p68 = scmp.ne.s32.totalorder %s56, %s57
      %p69 = scmp.eq.s32.totalorder %s26, 1
      %p70 = por %p68, %p69
      %p72 = scmp.ne.s32.totalorder %s57, %s71
      %p73 = scmp.eq.s32.totalorder %s26, 0
      %p74 = por %p72, %p73
      %s76 = sadd.s32 %s75, 1
      %p79 = scmp.eq.s32.totalorder %s20, 1
      %p80 = scmp.ne.s32.totalorder %s75, %s77
      %p81 = scmp.eq.s32.totalorder %s20, 0
      %p82 = por %p80, %p81
      %p83 = scmp.ne.s32.totalorder %s75, %s77
      %p84 = scmp.eq.s32.totalorder %s25, 1
      %p85 = por %p83, %p84
      %p86 = scmp.ne.s32.totalorder %s77, %s78
      %p87 = scmp.eq.s32.totalorder %s25, 0
      %p88 = por %p86, %p87
      %p89 = scmp.ne.s32.totalorder %s77, %s78
      %p90 = scmp.eq.s32.totalorder %s26, 1
      %p91 = por %p89, %p90
      %p93 = scmp.ne.s32.totalorder %s78, %s92
      %p94 = scmp.eq.s32.totalorder %s26, 0
      %p95 = por %p93, %p94
      %s97 = sadd.s32 %s96, 1
      %p100 = scmp.eq.s32.totalorder %s20, 1
      %p101 = scmp.ne.s32.totalorder %s96, %s98
      %p102 = scmp.eq.s32.totalorder %s20, 0
      %p103 = por %p101, %p102
      %p104 = scmp.ne.s32.totalorder %s96, %s98
      %p105 = scmp.eq.s32.totalorder %s25, 1
      %p106 = por %p104, %p105
      %p107 = scmp.ne.s32.totalorder %s98, %s99
      %p108 = scmp.eq.s32.totalorder %s25, 0
      %p109 = por %p107, %p108
      %p110 = scmp.ne.s32.totalorder %s98, %s99
      %p111 = scmp.eq.s32.totalorder %s26, 1
      %p112 = por %p110, %p111
      %p114 = scmp.ne.s32.totalorder %s99, %s113
      %p115 = scmp.eq.s32.totalorder %s26, 0
      %p116 = por %p114, %p115
      %s118 = sadd.s32 %s117, 1
      %p121 = scmp.eq.s32.totalorder %s20, 1
      %p122 = scmp.ne.s32.totalorder %s117, %s119
      %p123 = scmp.eq.s32.totalorder %s20, 0
      %p124 = por %p122, %p123
      %p125 = scmp.ne.s32.totalorder %s117, %s119
      %p126 = scmp.eq.s32.totalorder %s25, 1
      %p127 = por %p125, %p126
      %p128 = scmp.ne.s32.totalorder %s119, %s120
      %p129 = scmp.eq.s32.totalorder %s25, 0
      %p130 = por %p128, %p129
      %p131 = scmp.ne.s32.totalorder %s119, %s120
      %p132 = scmp.eq.s32.totalorder %s26, 1
      %p133 = por %p131, %p132
      %p135 = scmp.ne.s32.totalorder %s120, %s134
      %p136 = scmp.eq.s32.totalorder %s26, 0
      %p137 = por %p135, %p136
      %s139 = sadd.s32 %s138, 1
      %p142 = scmp.eq.s32.totalorder %s20, 1
      %p143 = scmp.ne.s32.totalorder %s138, %s140
      %p144 = scmp.eq.s32.totalorder %s20, 0
      %p145 = por %p143, %p144
      %p146 = scmp.ne.s32.totalorder %s138, %s140
      %p147 = scmp.eq.s32.totalorder %s25, 1
      %p148 = por %p146, %p147
      %p149 = scmp.ne.s32.totalorder %s140, %s141
      %p150 = scmp.eq.s32.totalorder %s25, 0
      %p151 = por %p149, %p150
      %p152 = scmp.ne.s32.totalorder %s140, %s141
      %p153 = scmp.eq.s32.totalorder %s26, 1
      %p154 = por %p152, %p153
      %p156 = scmp.ne.s32.totalorder %s141, %s155
      %p157 = scmp.eq.s32.totalorder %s26, 0
      %p158 = por %p156, %p157
      %s160 = sadd.s32 %s159, 1
      %p163 = scmp.eq.s32.totalorder %s20, 1
      %p164 = scmp.ne.s32.totalorder %s159, %s161
      %p165 = scmp.eq.s32.totalorder %s20, 0
      %p166 = por %p164, %p165
      %p167 = scmp.ne.s32.totalorder %s159, %s161
      %p168 = scmp.eq.s32.totalorder %s25, 1
      %p169 = por %p167, %p168
      %p170 = scmp.ne.s32.totalorder %s161, %s162
      %p171 = scmp.eq.s32.totalorder %s25, 0
      %p172 = por %p170, %p171
      %p173 = scmp.ne.s32.totalorder %s161, %s162
      %p174 = scmp.eq.s32.totalorder %s26, 1
      %p175 = por %p173, %p174
      %p177 = scmp.ne.s32.totalorder %s162, %s176
      %p178 = scmp.eq.s32.totalorder %s26, 0
      %p179 = por %p177, %p178
      %s181 = sadd.s32 %s180, 1
      %p184 = scmp.eq.s32.totalorder %s20, 1
      %p185 = scmp.ne.s32.totalorder %s180, %s182
      %p186 = scmp.eq.s32.totalorder %s20, 0
      %p187 = por %p185, %p186
      %p188 = scmp.ne.s32.totalorder %s180, %s182
      %p189 = scmp.eq.s32.totalorder %s25, 1
      %p190 = por %p188, %p189
      %p191 = scmp.ne.s32.totalorder %s182, %s183
      %p192 = scmp.eq.s32.totalorder %s25, 0
      %p193 = por %p191, %p192
      %p194 = scmp.ne.s32.totalorder %s182, %s183
      %p195 = scmp.eq.s32.totalorder %s26, 1
      %p196 = por %p194, %p195
      %p198 = scmp.ne.s32.totalorder %s183, %s197
      %p199 = scmp.eq.s32.totalorder %s26, 0
      %p200 = por %p198, %p199
      %s202 = sadd.s32 %s201, 1
      %p205 = scmp.eq.s32.totalorder %s20, 1
      %p206 = scmp.ne.s32.totalorder %s201, %s203
      %p207 = scmp.eq.s32.totalorder %s20, 0
      %p208 = por %p206, %p207
      %p209 = scmp.ne.s32.totalorder %s201, %s203
      %p210 = scmp.eq.s32.totalorder %s25, 1
      %p211 = por %p209, %p210
      %p212 = scmp.ne.s32.totalorder %s203, %s204
      %p213 = scmp.eq.s32.totalorder %s25, 0
      %p214 = por %p212, %p213
      %p215 = scmp.ne.s32.totalorder %s203, %s204
      %p216 = scmp.eq.s32.totalorder %s26, 1
      %p217 = por %p215, %p216
      %p219 = scmp.ne.s32.totalorder %s204, %s218
      %p220 = scmp.eq.s32.totalorder %s26, 0
      %p221 = por %p219, %p220
      %s223 = sadd.s32 %s222, 1
      %p226 = scmp.eq.s32.totalorder %s20, 1
      %p227 = scmp.ne.s32.totalorder %s222, %s224
      %p228 = scmp.eq.s32.totalorder %s20, 0
      %p229 = por %p227, %p228
      %p230 = scmp.ne.s32.totalorder %s222, %s224
      %p231 = scmp.eq.s32.totalorder %s25, 1
      %p232 = por %p230, %p231
      %p233 = scmp.ne.s32.totalorder %s224, %s225
      %p234 = scmp.eq.s32.totalorder %s25, 0
      %p235 = por %p233, %p234
      %p236 = scmp.ne.s32.totalorder %s224, %s225
      %p237 = scmp.eq.s32.totalorder %s26, 1
      %p238 = por %p236, %p237
      %p240 = scmp.ne.s32.totalorder %s225, %s239
      %p241 = scmp.eq.s32.totalorder %s26, 0
      %p242 = por %p240, %p241
      %s244 = sadd.s32 %s243, 1
      %p247 = scmp.eq.s32.totalorder %s20, 1
      %p248 = scmp.ne.s32.totalorder %s243, %s245
      %p249 = scmp.eq.s32.totalorder %s20, 0
      %p250 = por %p248, %p249
      %p251 = scmp.ne.s32.totalorder %s243, %s245
      %p252 = scmp.eq.s32.totalorder %s25, 1
      %p253 = por %p251, %p252
      %p254 = scmp.ne.s32.totalorder %s245, %s246
      %p255 = scmp.eq.s32.totalorder %s25, 0
      %p256 = por %p254, %p255
      %p257 = scmp.ne.s32.totalorder %s245, %s246
      %p258 = scmp.eq.s32.totalorder %s26, 1
      %p259 = por %p257, %p258
      %p261 = scmp.ne.s32.totalorder %s246, %s260
      %p262 = scmp.eq.s32.totalorder %s26, 0
      %p263 = por %p261, %p262
      %s264 = ssub.s32 %s20, %s27
      %p265 = scmp.eq.s32.totalorder %s264, 0
      %s267 = sadd.s32 %s266, 1
      %s268 = scalar_select %p265, %s266, %s267
      %p271 = pneg %p265
      %p272 = scmp.eq.s32.totalorder %s20, 1
      %p273 = por %p271, %p272
      %p274 = scmp.ne.s32.totalorder %s266, %s269
      %p275 = scmp.eq.s32.totalorder %s20, 0
      %p276 = por %p274, %p275
      %p277 = scmp.ne.s32.totalorder %s266, %s269
      %p278 = scmp.eq.s32.totalorder %s25, 1
      %p279 = por %p277, %p278
      %p280 = scmp.ne.s32.totalorder %s269, %s270
      %p281 = scmp.eq.s32.totalorder %s25, 0
      %p282 = por %p280, %p281
      %p283 = scmp.ne.s32.totalorder %s269, %s270
      %p284 = scmp.eq.s32.totalorder %s26, 1
      %p285 = por %p283, %p284
      %p287 = scmp.ne.s32.totalorder %s270, %s286
      %p288 = scmp.eq.s32.totalorder %s26, 0
      %p289 = por %p287, %p288
      %p290 = scmp.le.s32.totalorder 1, %s20
      %p291 = scmp.lt.s32.totalorder %s20, 3
      %p292 = pnand %p290, %p291
      %p293 = pneg %p292
      // Predicated region
      $region9: #{tpu_custom_call.1} parent=5 // pred_check
        _
      $region10: #{tpu_custom_call.1} parent=5 // pred_check_branch
        %295 = sbr.rel (%p292) target = $region12
      $region11: #{tpu_custom_call.1} parent=5 // pred_region
        %s296 = ssub.s32 %s20, 1
        // Predicated region
        $region13: #{tpu_custom_call.1} parent=11 // pred_check
          %p297 = pneg %p67
        $region14: #{tpu_custom_call.1} parent=11 // pred_check_branch
          %299 = sbr.rel (%p297) target = $region16
        $region15: #{tpu_custom_call.1} parent=11 // pred_region
          _
        $region16: #{tpu_custom_call.1} parent=11 // pred_fallthru
          _
        // Predicated region
        $region17: #{tpu_custom_call.1} parent=11 // pred_check
          %p300 = pneg %p88
        $region18: #{tpu_custom_call.1} parent=11 // pred_check_branch
          %302 = sbr.rel (%p300) target = $region20
        $region19: #{tpu_custom_call.1} parent=11 // pred_region
          _
        $region20: #{tpu_custom_call.1} parent=11 // pred_fallthru
          _
        // Predicated region
        $region21: #{tpu_custom_call.1} parent=11 // pred_check
          %p303 = pneg %p109
        $region22: #{tpu_custom_call.1} parent=11 // pred_check_branch
          %305 = sbr.rel (%p303) target = $region24
        $region23: #{tpu_custom_call.1} parent=11 // pred_region
          _
        $region24: #{tpu_custom_call.1} parent=11 // pred_fallthru
          _
        // Predicated region
        $region25: #{tpu_custom_call.1} parent=11 // pred_check
          %p306 = pneg %p130
        $region26: #{tpu_custom_call.1} parent=11 // pred_check_branch
          %308 = sbr.rel (%p306) target = $region28
        $region27: #{tpu_custom_call.1} parent=11 // pred_region
          _
        $region28: #{tpu_custom_call.1} parent=11 // pred_fallthru
          _
        // Predicated region
        $region29: #{tpu_custom_call.1} parent=11 // pred_check
          %p309 = pneg %p151
        $region30: #{tpu_custom_call.1} parent=11 // pred_check_branch
          %311 = sbr.rel (%p309) target = $region32
        $region31: #{tpu_custom_call.1} parent=11 // pred_region
          _
        $region32: #{tpu_custom_call.1} parent=11 // pred_fallthru
          _
        // Predicated region
        $region33: #{tpu_custom_call.1} parent=11 // pred_check
          %p312 = pneg %p172
        $region34: #{tpu_custom_call.1} parent=11 // pred_check_branch
          %314 = sbr.rel (%p312) target = $region36
        $region35: #{tpu_custom_call.1} parent=11 // pred_region
          _
        $region36: #{tpu_custom_call.1} parent=11 // pred_fallthru
          _
        // Predicated region
        $region37: #{tpu_custom_call.1} parent=11 // pred_check
          %p315 = pneg %p193
        $region38: #{tpu_custom_call.1} parent=11 // pred_check_branch
          %317 = sbr.rel (%p315) target = $region40
        $region39: #{tpu_custom_call.1} parent=11 // pred_region
          _
        $region40: #{tpu_custom_call.1} parent=11 // pred_fallthru
          _
        // Predicated region
        $region41: #{tpu_custom_call.1} parent=11 // pred_check
          %p318 = pneg %p214
        $region42: #{tpu_custom_call.1} parent=11 // pred_check_branch
          %320 = sbr.rel (%p318) target = $region44
        $region43: #{tpu_custom_call.1} parent=11 // pred_region
          _
        $region44: #{tpu_custom_call.1} parent=11 // pred_fallthru
          _
        // Predicated region
        $region45: #{tpu_custom_call.1} parent=11 // pred_check
          %p321 = pneg %p235
        $region46: #{tpu_custom_call.1} parent=11 // pred_check_branch
          %323 = sbr.rel (%p321) target = $region48
        $region47: #{tpu_custom_call.1} parent=11 // pred_region
          _
        $region48: #{tpu_custom_call.1} parent=11 // pred_fallthru
          _
        // Predicated region
        $region49: #{tpu_custom_call.1} parent=11 // pred_check
          %p324 = pneg %p256
        $region50: #{tpu_custom_call.1} parent=11 // pred_check_branch
          %326 = sbr.rel (%p324) target = $region52
        $region51: #{tpu_custom_call.1} parent=11 // pred_region
          _
        $region52: #{tpu_custom_call.1} parent=11 // pred_fallthru
          _
      $region12: #{tpu_custom_call.1} parent=5 // pred_fallthru
        _
      %p327 = scmp.lt.s32.totalorder %s20, 2
      // Predicated region
      $region53: #{tpu_custom_call.1} parent=5 // pred_check
        %p328 = pneg %p327
      $region54: #{tpu_custom_call.1} parent=5 // pred_check_branch
        %330 = sbr.rel (%p328) target = $region56
      $region55: #{tpu_custom_call.1} parent=5 // pred_region
        // Predicated region
        $region57: #{tpu_custom_call.1} parent=55 // pred_check
          %p331 = pneg %p40
        $region58: #{tpu_custom_call.1} parent=55 // pred_check_branch
          %333 = sbr.rel (%p331) target = $region60
        $region59: #{tpu_custom_call.1} parent=55 // pred_region
          %p334 = scmp.lt.s32.totalorder %s20, 1
          %s335 = scalar_select %p334, %s20, 1
          %s336 = smul.addr %s335, 24
          %s337 = smul.addr %s336, 8
          %s338 = scalar_lea.vmem %s0, %s337
        $region60: #{tpu_custom_call.1} parent=55 // pred_fallthru
          _
      $region56: #{tpu_custom_call.1} parent=5 // pred_fallthru
        _
      %p339 = scmp.le.s32.totalorder 1, %s20
      %p340 = scmp.lt.s32.totalorder %s20, 3
      %p341 = pnand %p339, %p340
      %p342 = pneg %p341
      // Predicated region
      $region61: #{tpu_custom_call.1} parent=5 // pred_check
        _
      $region62: #{tpu_custom_call.1} parent=5 // pred_check_branch
        %344 = sbr.rel (%p341) target = $region64
      $region63: #{tpu_custom_call.1} parent=5 // pred_region
        %s345 = ssub.s32 %s20, 1
        %p346 = scmp.lt.s32.totalorder %s25, 1
        %s347 = scalar_select %p346, %s25, 1
        %s348 = smul.addr %s347, 24
        %s349 = smul.addr %s348, 8
        %s350 = scalar_lea.vmem %s0, %s349
        %p351 = pneg %p46
        %p352 = pneg %p43
        %p353 = pneg %p67
        %p354 = pneg %p64
        %p355 = pneg %p88
        %p356 = pneg %p85
        %p357 = pneg %p109
        %p358 = pneg %p106
        %p359 = pneg %p130
        %p360 = pneg %p127
        %p361 = pneg %p151
        %p362 = pneg %p148
        %p363 = pneg %p172
        %p364 = pneg %p169
        %p365 = pneg %p193
        %p366 = pneg %p190
        %p367 = pneg %p214
        %p368 = pneg %p211
        %p369 = pneg %p235
        %p370 = pneg %p232
        %p371 = pneg %p256
        %p372 = pneg %p253
        %p373 = pneg %p282
        %p374 = pneg %p279
        %s375 = sand.u32 %s269, 1
        %s376 = scalar_lea.sflag [#allocation5], %s375
        %s377 = sand.u32 %s269, 1
        %s378 = smul.addr %s377, 192
        %s379 = scalar_lea.vmem [#allocation4], %s378
        %p380 = scmp.lt.s32.totalorder %s25, 1
        %s381 = scalar_select %p380, %s25, 1
        %s382 = smul.addr %s381, 24
        %s383 = smul.addr %s382, 8
        %s384 = scalar_lea.vmem %s0, %s383
        %v386 = vld [vmem:[%s384] sm:$0xff]
        %v387 = vld [vmem:[%s384 + $0x8] sm:$0xff]
        %v388 = vld [vmem:[%s384 + $0x10] sm:$0xff]
        %v389 = vld [vmem:[%s384 + $0x18] sm:$0xff]
        %v390 = vld [vmem:[%s384 + $0x20] sm:$0xff]
        %v391 = vld [vmem:[%s384 + $0x28] sm:$0xff]
        %v392 = vld [vmem:[%s384 + $0x30] sm:$0xff]
        %v393 = vld [vmem:[%s384 + $0x38] sm:$0xff]
        %v394 = vld [vmem:[%s384 + $0x40] sm:$0xff]
        %v395 = vld [vmem:[%s384 + $0x48] sm:$0xff]
        %v396 = vld [vmem:[%s384 + $0x50] sm:$0xff]
        %v397 = vld [vmem:[%s384 + $0x58] sm:$0xff]
        %v398 = vld [vmem:[%s384 + $0x60] sm:$0xff]
        %v399 = vld [vmem:[%s384 + $0x68] sm:$0xff]
        %v400 = vld [vmem:[%s384 + $0x70] sm:$0xff]
        %v401 = vld [vmem:[%s384 + $0x78] sm:$0xff]
        %v402 = vld [vmem:[%s384 + $0x80] sm:$0xff]
        %v403 = vld [vmem:[%s384 + $0x88] sm:$0xff]
        %v404 = vld [vmem:[%s384 + $0x90] sm:$0xff]
        %v405 = vld [vmem:[%s384 + $0x98] sm:$0xff]
        %v406 = vld [vmem:[%s384 + $0xa0] sm:$0xff]
        %v407 = vld [vmem:[%s384 + $0xa8] sm:$0xff]
        %v408 = vld [vmem:[%s384 + $0xb0] sm:$0xff]
        %v409 = vld [vmem:[%s384 + $0xb8] sm:$0xff]
        %v410 = vld [vmem:[%s9] sm:$0xff]
        %v411 = vld [vmem:[%s9 + $0x8] sm:$0xff]
        %v412 = vld [vmem:[%s9 + $0x10] sm:$0xff]
        %v413 = vld [vmem:[%s9 + $0x18] sm:$0xff]
        %v414 = vld [vmem:[%s9 + $0x20] sm:$0xff]
        %v415 = vld [vmem:[%s9 + $0x28] sm:$0xff]
        %v416 = vld [vmem:[%s9 + $0x30] sm:$0xff]
        %v417 = vld [vmem:[%s9 + $0x38] sm:$0xff]
        %v418 = vld [vmem:[%s10] sm:$0xff]
        %v419 = vld [vmem:[%s10 + $0x8] sm:$0xff]
        %v420 = vld [vmem:[%s10 + $0x10] sm:$0xff]
        %v421 = vld [vmem:[%s10 + $0x18] sm:$0xff]
        %v422 = vld [vmem:[%s10 + $0x20] sm:$0xff]
        %v423 = vld [vmem:[%s10 + $0x28] sm:$0xff]
        %v424 = vld [vmem:[%s10 + $0x30] sm:$0xff]
        %v425 = vld [vmem:[%s10 + $0x38] sm:$0xff]
        %vm426 = vcmask 523264
        %427 = vst.msk [vmem:[#allocation2] sm:$0xff] %vm426, 0.0
        %428 = vst.msk [vmem:[#allocation2 + $0x8] sm:$0xff] %vm426, 0.0
        %429 = vst.msk [vmem:[#allocation2 + $0x50] sm:$0xff] %vm426, 0.0
        %430 = vst.msk [vmem:[#allocation2 + $0x58] sm:$0xff] %vm426, 0.0
        %vm431 = vcmask 392192
        %432 = vst.msk [vmem:[#allocation3] sm:$0xff] %vm431, 0.0
        %433 = vst.msk [vmem:[#allocation3 + $0x8] sm:$0xff] %vm431, 0.0
        %434 = vst.msk [vmem:[#allocation3 + $0x50] sm:$0xff] %vm431, 0.0
        %435 = vst.msk [vmem:[#allocation3 + $0x58] sm:$0xff] %vm431, 0.0
        %v436 = vpack.c.bf16 %v389, %v386
        %v437 = vpack.c.bf16 %v390, %v387
        %v438 = vpack.c.bf16 %v391, %v388
        %v439 = vpack.c.bf16 %v395, %v392
        %v440 = vpack.c.bf16 %v396, %v393
        %v441 = vpack.c.bf16 %v397, %v394
        %v442 = vpack.c.bf16 %v401, %v398
        %v443 = vpack.c.bf16 %v402, %v399
        %v444 = vpack.c.bf16 %v403, %v400
        %v445 = vpack.c.bf16 %v407, %v404
        %v446 = vpack.c.bf16 %v408, %v405
        %v447 = vpack.c.bf16 %v409, %v406
        %v448 = vld [vmem:[%s1] sm:$0xf]
        %v449 = vld [vmem:[%s1 + $0x4] sm:$0xf]
        %v450 = vld [vmem:[%s1 + $0x8] sm:$0xf]
        %v451 = vld [vmem:[%s1 + $0xc] sm:$0xf]
        %v452 = vld [vmem:[%s1 + $0x10] sm:$0xf]
        %v453 = vld [vmem:[%s1 + $0x14] sm:$0xf]
        %v454 = vld [vmem:[%s1 + $0x18] sm:$0xf]
        %v455 = vld [vmem:[%s1 + $0x1c] sm:$0xf]
        %v456 = vld [vmem:[%s1 + $0x20] sm:$0xf]
        %v457 = vld [vmem:[%s1 + $0x24] sm:$0xf]
        %v458 = vld [vmem:[%s1 + $0x28] sm:$0xf]
        %v459 = vld [vmem:[%s1 + $0x2c] sm:$0xf]
        %v460 = vld [vmem:[%s1 + $0x30] sm:$0xf]
        %v461 = vld [vmem:[%s1 + $0x34] sm:$0xf]
        %v462 = vld [vmem:[%s1 + $0x38] sm:$0xf]
        %v463 = vld [vmem:[%s1 + $0x3c] sm:$0xf]
        %v464 = vld [vmem:[%s1 + $0x40] sm:$0xf]
        %v465 = vld [vmem:[%s1 + $0x44] sm:$0xf]
        %v466 = vld [vmem:[%s1 + $0x48] sm:$0xf]
        %v467 = vld [vmem:[%s1 + $0x4c] sm:$0xf]
        %v468 = vld [vmem:[%s1 + $0x50] sm:$0xf]
        %v469 = vld [vmem:[%s1 + $0x54] sm:$0xf]
        %v470 = vld [vmem:[%s1 + $0x58] sm:$0xf]
        %v471 = vld [vmem:[%s1 + $0x5c] sm:$0xf]
        %v472 = vld [vmem:[%s1 + $0x60] sm:$0xf]
        %v473 = vld [vmem:[%s1 + $0x64] sm:$0xf]
        %v474 = vld [vmem:[%s1 + $0x68] sm:$0xf]
        %v475 = vld [vmem:[%s1 + $0x6c] sm:$0xf]
        %v476 = vld [vmem:[%s1 + $0x70] sm:$0xf]
        %v477 = vld [vmem:[%s1 + $0x74] sm:$0xf]
        %v478 = vld [vmem:[%s1 + $0x78] sm:$0xf]
        %v479 = vld [vmem:[%s1 + $0x7c] sm:$0xf]
        %v480 = vld [vmem:[%s1 + $0x80] sm:$0xf]
        %v481 = vld [vmem:[%s1 + $0x84] sm:$0xf]
        %v482 = vld [vmem:[%s1 + $0x88] sm:$0xf]
        %v483 = vld [vmem:[%s1 + $0x8c] sm:$0xf]
        %v484 = vld [vmem:[%s1 + $0x90] sm:$0xf]
        %v485 = vld [vmem:[%s1 + $0x94] sm:$0xf]
        %v486 = vld [vmem:[%s1 + $0x98] sm:$0xf]
        %v487 = vld [vmem:[%s1 + $0x9c] sm:$0xf]
        %v488 = vld [vmem:[%s2] sm:$0x1]
        %v490 = vperm.slane %v488, 0
        %v532 = vunpack.c.l.b16 %v448
        %v533 = vunpack.c.l.b16 %v449
        %v534 = vunpack.c.l.b16 %v450
        %v535 = vunpack.c.l.b16 %v451
        %v536 = vunpack.c.l.b16 %v452
        %v537 = vunpack.c.l.b16 %v453
        %v538 = vunpack.c.l.b16 %v454
        %v539 = vunpack.c.l.b16 %v455
        %v540 = vunpack.c.l.b16 %v456
        %v541 = vunpack.c.l.b16 %v457
        %v542 = vunpack.c.l.b16 %v458
        %v543 = vunpack.c.l.b16 %v459
        %v544 = vunpack.c.l.b16 %v460
        %v545 = vunpack.c.l.b16 %v461
        %v546 = vunpack.c.l.b16 %v462
        %v547 = vunpack.c.l.b16 %v463
        %v548 = vunpack.c.l.b16 %v464
        %v549 = vunpack.c.l.b16 %v465
        %v550 = vunpack.c.l.b16 %v466
        %v551 = vunpack.c.l.b16 %v467
        %v552 = vunpack.c.l.b16 %v468
        %v553 = vunpack.c.l.b16 %v469
        %v554 = vunpack.c.l.b16 %v470
        %v555 = vunpack.c.l.b16 %v471
        %v556 = vunpack.c.l.b16 %v472
        %v557 = vunpack.c.l.b16 %v473
        %v558 = vunpack.c.l.b16 %v474
        %v559 = vunpack.c.l.b16 %v475
        %v560 = vunpack.c.l.b16 %v476
        %v561 = vunpack.c.l.b16 %v477
        %v562 = vunpack.c.l.b16 %v478
        %v563 = vunpack.c.l.b16 %v479
        %v564 = vunpack.c.l.b16 %v480
        %v565 = vunpack.c.l.b16 %v481
        %v566 = vunpack.c.l.b16 %v482
        %v567 = vunpack.c.l.b16 %v483
        %v568 = vunpack.c.l.b16 %v484
        %v569 = vunpack.c.l.b16 %v485
        %v570 = vunpack.c.l.b16 %v486
        %v571 = vunpack.c.l.b16 %v487
        %v572 = vpack.c.b16 %v533, %v532
        %v573 = vpack.c.b16 %v535, %v534
        %v574 = vpack.c.b16 %v537, %v536
        %v575 = vpack.c.b16 %v539, %v538
        %v576 = vpack.c.b16 %v541, %v540
        %v577 = vpack.c.b16 %v543, %v542
        %v578 = vpack.c.b16 %v545, %v544
        %v579 = vpack.c.b16 %v547, %v546
        %v580 = vpack.c.b16 %v549, %v548
        %v581 = vpack.c.b16 %v551, %v550
        %v582 = vpack.c.b16 %v553, %v552
        %v583 = vpack.c.b16 %v555, %v554
        %v584 = vpack.c.b16 %v557, %v556
        %v585 = vpack.c.b16 %v559, %v558
        %v586 = vpack.c.b16 %v561, %v560
        %v587 = vpack.c.b16 %v563, %v562
        %v588 = vpack.c.b16 %v565, %v564
        %v589 = vpack.c.b16 %v567, %v566
        %v590 = vpack.c.b16 %v569, %v568
        %v591 = vpack.c.b16 %v571, %v570
        %v613 = vsel %vm426, %v438, 0
        %v616 = vsel %vm426, %v441, 0
        %v619 = vsel %vm426, %v444, 0
        %v622 = vsel %vm426, %v447, 0
        %624 = vmatpush.bf16.msra.mxu0 %v579
        %625 = vmatpush.bf16.msra.mxu0 %v578
        %626 = vmatpush.bf16.msra.mxu0 %v577
        %627 = vmatpush.bf16.msra.mxu0 %v576
        %628 = vmatpush.bf16.msra.mxu0 %v575
        %629 = vmatpush.bf16.msra.mxu0 %v574
        %630 = vmatpush.bf16.msra.mxu0 %v573
        %631 = vmatpush.bf16.msra.mxu0 %v572
        %632 = vmatmul.bf16.gmra.mxu0 %v436
        %v633 = vpop.f32.mrf.mxu0
        %v634 = vadd.f32 %v490, %v633
        %v635 = vpop.f32.mrf.mxu0
        %v636 = vadd.f32 %v490, %v635
        %637 = vmatmul.bf16.gmra.mxu0 %v439
        %v638 = vpop.f32.mrf.mxu0
        %v639 = vadd.f32 %v490, %v638
        %v640 = vpop.f32.mrf.mxu0
        %v641 = vadd.f32 %v490, %v640
        %642 = vmatmul.bf16.gmra.mxu0 %v442
        %v643 = vpop.f32.mrf.mxu0
        %v644 = vadd.f32 %v490, %v643
        %v645 = vpop.f32.mrf.mxu0
        %v646 = vadd.f32 %v490, %v645
        %647 = vmatmul.bf16.gmra.mxu0 %v445
        %v648 = vpop.f32.mrf.mxu0
        %v649 = vadd.f32 %v490, %v648
        %v650 = vpop.f32.mrf.mxu0
        %v651 = vadd.f32 %v490, %v650
        %652 = vdwg.mxu0
        %653 = vmatpush.bf16.msra.mxu0 %v587
        %654 = vmatpush.bf16.msra.mxu0 %v586
        %655 = vmatpush.bf16.msra.mxu0 %v585
        %656 = vmatpush.bf16.msra.mxu0 %v584
        %657 = vmatpush.bf16.msra.mxu0 %v583
        %658 = vmatpush.bf16.msra.mxu0 %v582
        %659 = vmatpush.bf16.msra.mxu0 %v581
        %660 = vmatpush.bf16.msra.mxu0 %v580
        %661 = vmatmul.bf16.gmra.mxu0 %v437
        %v662 = vpop.f32.mrf.mxu0
        %v663 = vadd.f32 %v634, %v662
        %v664 = vpop.f32.mrf.mxu0
        %v665 = vadd.f32 %v636, %v664
        %666 = vmatmul.bf16.gmra.mxu0 %v440
        %v667 = vpop.f32.mrf.mxu0
        %v668 = vadd.f32 %v639, %v667
        %v669 = vpop.f32.mrf.mxu0
        %v670 = vadd.f32 %v641, %v669
        %671 = vmatmul.bf16.gmra.mxu0 %v443
        %v672 = vpop.f32.mrf.mxu0
        %v673 = vadd.f32 %v644, %v672
        %v674 = vpop.f32.mrf.mxu0
        %v675 = vadd.f32 %v646, %v674
        %676 = vmatmul.bf16.gmra.mxu0 %v446
        %v677 = vpop.f32.mrf.mxu0
        %v678 = vadd.f32 %v649, %v677
        %v679 = vpop.f32.mrf.mxu0
        %v680 = vadd.f32 %v651, %v679
        %681 = vdwg.mxu0
        %682 = vmatpush.bf16.msra.mxu0 0
        %683 = vmatpush.bf16.msra.mxu0 0
        %684 = vmatpush.bf16.msra.mxu0 0
        %685 = vmatpush.bf16.msra.mxu0 0
        %686 = vmatpush.bf16.msra.mxu0 %v591
        %687 = vmatpush.bf16.msra.mxu0 %v590
        %688 = vmatpush.bf16.msra.mxu0 %v589
        %689 = vmatpush.bf16.msra.mxu0 %v588
        %690 = vmatmul.bf16.gmra.mxu0 %v613
        %v691 = vpop.f32.mrf.mxu0
        %v692 = vadd.f32 %v663, %v691
        %v693 = vpop.f32.mrf.mxu0
        %v694 = vadd.f32 %v665, %v693
        %695 = vmatmul.bf16.gmra.mxu0 %v616
        %v696 = vpop.f32.mrf.mxu0
        %v697 = vadd.f32 %v668, %v696
        %v698 = vpop.f32.mrf.mxu0
        %v699 = vadd.f32 %v670, %v698
        %700 = vmatmul.bf16.gmra.mxu0 %v619
        %v701 = vpop.f32.mrf.mxu0
        %v702 = vadd.f32 %v673, %v701
        %v703 = vpop.f32.mrf.mxu0
        %v704 = vadd.f32 %v675, %v703
        %705 = vmatmul.bf16.gmra.mxu0 %v622
        %v706 = vpop.f32.mrf.mxu0
        %v707 = vadd.f32 %v678, %v706
        %v708 = vpop.f32.mrf.mxu0
        %v709 = vadd.f32 %v680, %v708
        %710 = vdwg.mxu0
        %v711 = vmax.f32 %v692, 0.0
        %v712 = vmax.f32 %v694, 0.0
        %v713 = vmax.f32 %v697, 0.0
        %v714 = vmax.f32 %v699, 0.0
        %v715 = vmax.f32 %v702, 0.0
        %v716 = vmax.f32 %v704, 0.0
        %v717 = vmax.f32 %v707, 0.0
        %v718 = vmax.f32 %v709, 0.0
        %719 = vst.msk [vmem:[#allocation2 + $0x10] sm:$0xff] %vm426, %v711
        %720 = vst.msk [vmem:[#allocation2 + $0x18] sm:$0xff] %vm426, %v712
        %721 = vst.msk [vmem:[#allocation2 + $0x20] sm:$0xff] %vm426, %v713
        %722 = vst.msk [vmem:[#allocation2 + $0x28] sm:$0xff] %vm426, %v714
        %723 = vst.msk [vmem:[#allocation2 + $0x30] sm:$0xff] %vm426, %v715
        %724 = vst.msk [vmem:[#allocation2 + $0x38] sm:$0xff] %vm426, %v716
        %725 = vst.msk [vmem:[#allocation2 + $0x40] sm:$0xff] %vm426, %v717
        %726 = vst.msk [vmem:[#allocation2 + $0x48] sm:$0xff] %vm426, %v718
        %v727 = vld [vmem:[%s4] sm:$0x1]
        %v728 = vld [vmem:[#allocation2 + $0x7] sm:$0xff]
        %v729 = vld [vmem:[#allocation2 + $0xf] sm:$0xff]
        %v730 = vld [vmem:[#allocation2 + $0x17] sm:$0xff]
        %v731 = vld [vmem:[#allocation2 + $0x1f] sm:$0xff]
        %v732 = vld [vmem:[#allocation2 + $0x27] sm:$0xff]
        %v733 = vld [vmem:[#allocation2 + $0x2f] sm:$0xff]
        %v734 = vld [vmem:[#allocation2 + $0x37] sm:$0xff]
        %v735 = vld [vmem:[#allocation2 + $0x3f] sm:$0xff]
        %737 = vset.pattern.permute.xlu0 0
        %738 = vperm.xlu0 %737, %v410
        %v739 = vpop.permute.xlu0 %738
        %742 = vset.pattern.permute.xlu0 0
        %743 = vperm.xlu0 %742, %v411
        %v744 = vpop.permute.xlu0 %743
        %747 = vset.pattern.permute.xlu0 0
        %748 = vperm.xlu0 %747, %v412
        %v749 = vpop.permute.xlu0 %748
        %752 = vset.pattern.permute.xlu0 0
        %753 = vperm.xlu0 %752, %v413
        %v754 = vpop.permute.xlu0 %753
        %757 = vset.pattern.permute.xlu0 0
        %758 = vperm.xlu0 %757, %v414
        %v759 = vpop.permute.xlu0 %758
        %762 = vset.pattern.permute.xlu0 0
        %763 = vperm.xlu0 %762, %v415
        %v764 = vpop.permute.xlu0 %763
        %767 = vset.pattern.permute.xlu0 0
        %768 = vperm.xlu0 %767, %v416
        %v769 = vpop.permute.xlu0 %768
        %772 = vset.pattern.permute.xlu0 0
        %773 = vperm.xlu0 %772, %v417
        %v774 = vpop.permute.xlu0 %773
        %v776 = vmul.f32 %v728, %v739
        %v777 = vmul.f32 %v729, %v744
        %v778 = vmul.f32 %v730, %v749
        %v779 = vmul.f32 %v731, %v754
        %v780 = vmul.f32 %v732, %v759
        %v781 = vmul.f32 %v733, %v764
        %v782 = vmul.f32 %v734, %v769
        %v783 = vmul.f32 %v735, %v774
        %v784 = vld [vmem:[%s3] sm:$0xf]
        %v785 = vld [vmem:[%s3 + $0x4] sm:$0xf]
        %v786 = vld [vmem:[%s3 + $0x8] sm:$0xf]
        %v787 = vld [vmem:[%s3 + $0xc] sm:$0xf]
        %v788 = vld [vmem:[%s3 + $0x10] sm:$0xf]
        %v789 = vld [vmem:[%s3 + $0x14] sm:$0xf]
        %v790 = vld [vmem:[%s3 + $0x18] sm:$0xf]
        %v791 = vld [vmem:[%s3 + $0x1c] sm:$0xf]
        %v792 = vpack.c.bf16 %v777, %v776
        %v793 = vpack.c.bf16 %v779, %v778
        %v794 = vpack.c.bf16 %v781, %v780
        %v795 = vpack.c.bf16 %v783, %v782
        %v796 = vld [vmem:[#allocation2 + $0x8] sm:$0xff]
        %v797 = vld [vmem:[#allocation2 + $0x10] sm:$0xff]
        %v798 = vld [vmem:[#allocation2 + $0x18] sm:$0xff]
        %v799 = vld [vmem:[#allocation2 + $0x20] sm:$0xff]
        %v800 = vld [vmem:[#allocation2 + $0x28] sm:$0xff]
        %v801 = vld [vmem:[#allocation2 + $0x30] sm:$0xff]
        %v802 = vld [vmem:[#allocation2 + $0x38] sm:$0xff]
        %v803 = vld [vmem:[#allocation2 + $0x40] sm:$0xff]
        %v804 = vld [vmem:[%s3 + $0x20] sm:$0xf]
        %v805 = vld [vmem:[%s3 + $0x24] sm:$0xf]
        %v806 = vld [vmem:[%s3 + $0x28] sm:$0xf]
        %v807 = vld [vmem:[%s3 + $0x2c] sm:$0xf]
        %v808 = vld [vmem:[%s3 + $0x30] sm:$0xf]
        %v809 = vld [vmem:[%s3 + $0x34] sm:$0xf]
        %v810 = vld [vmem:[%s3 + $0x38] sm:$0xf]
        %v811 = vld [vmem:[%s3 + $0x3c] sm:$0xf]
        %v812 = vpack.c.bf16 %v797, %v796
        %v813 = vpack.c.bf16 %v799, %v798
        %v814 = vpack.c.bf16 %v801, %v800
        %v815 = vpack.c.bf16 %v803, %v802
        %v824 = vunpack.c.l.b16 %v804
        %v825 = vunpack.c.l.b16 %v805
        %v826 = vunpack.c.l.b16 %v806
        %v827 = vunpack.c.l.b16 %v807
        %v828 = vunpack.c.l.b16 %v808
        %v829 = vunpack.c.l.b16 %v809
        %v830 = vunpack.c.l.b16 %v810
        %v831 = vunpack.c.l.b16 %v811
        %v832 = vpack.c.b16 %v825, %v824
        %v833 = vpack.c.b16 %v827, %v826
        %v834 = vpack.c.b16 %v829, %v828
        %v835 = vpack.c.b16 %v831, %v830
        %v841 = vsel %vm426, %v812, 0
        %v844 = vsel %vm426, %v813, 0
        %v847 = vsel %vm426, %v814, 0
        %v850 = vsel %vm426, %v815, 0
        %852 = vmatpush.bf16.msra.mxu0 0
        %853 = vmatpush.bf16.msra.mxu0 0
        %854 = vmatpush.bf16.msra.mxu0 0
        %855 = vmatpush.bf16.msra.mxu0 0
        %856 = vmatpush.bf16.msra.mxu0 %v835
        %857 = vmatpush.bf16.msra.mxu0 %v834
        %858 = vmatpush.bf16.msra.mxu0 %v833
        %859 = vmatpush.bf16.msra.mxu0 %v832
        %860 = vmatmul.bf16.gmra.mxu0 %v841
        %v861 = vpop.f32.mrf.mxu0
        %v862 = vadd.f32 0.0, %v861
        %v863 = vpop.f32.mrf.mxu0
        %v864 = vadd.f32 0.0, %v863
        %865 = vmatmul.bf16.gmra.mxu0 %v844
        %v866 = vpop.f32.mrf.mxu0
        %v867 = vadd.f32 0.0, %v866
        %v868 = vpop.f32.mrf.mxu0
        %v869 = vadd.f32 0.0, %v868
        %870 = vmatmul.bf16.gmra.mxu0 %v847
        %v871 = vpop.f32.mrf.mxu0
        %v872 = vadd.f32 0.0, %v871
        %v873 = vpop.f32.mrf.mxu0
        %v874 = vadd.f32 0.0, %v873
        %875 = vmatmul.bf16.gmra.mxu0 %v850
        %v876 = vpop.f32.mrf.mxu0
        %v877 = vadd.f32 0.0, %v876
        %v878 = vpop.f32.mrf.mxu0
        %v879 = vadd.f32 0.0, %v878
        %880 = vdwg.mxu0
        %v889 = vunpack.c.l.b16 %v784
        %v890 = vunpack.c.l.b16 %v785
        %v891 = vunpack.c.l.b16 %v786
        %v892 = vunpack.c.l.b16 %v787
        %v893 = vunpack.c.l.b16 %v788
        %v894 = vunpack.c.l.b16 %v789
        %v895 = vunpack.c.l.b16 %v790
        %v896 = vunpack.c.l.b16 %v791
        %v897 = vpack.c.b16 %v890, %v889
        %v898 = vpack.c.b16 %v892, %v891
        %v899 = vpack.c.b16 %v894, %v893
        %v900 = vpack.c.b16 %v896, %v895
        %v906 = vsel %vm426, %v792, 0
        %v909 = vsel %vm426, %v793, 0
        %v912 = vsel %vm426, %v794, 0
        %v915 = vsel %vm426, %v795, 0
        %917 = vmatpush.bf16.msra.mxu0 0
        %918 = vmatpush.bf16.msra.mxu0 0
        %919 = vmatpush.bf16.msra.mxu0 0
        %920 = vmatpush.bf16.msra.mxu0 0
        %921 = vmatpush.bf16.msra.mxu0 %v900
        %922 = vmatpush.bf16.msra.mxu0 %v899
        %923 = vmatpush.bf16.msra.mxu0 %v898
        %924 = vmatpush.bf16.msra.mxu0 %v897
        %925 = vmatmul.bf16.gmra.mxu0 %v906
        %v926 = vpop.f32.mrf.mxu0
        %v927 = vadd.f32 %v862, %v926
        %v928 = vpop.f32.mrf.mxu0
        %v929 = vadd.f32 %v864, %v928
        %930 = vmatmul.bf16.gmra.mxu0 %v909
        %v931 = vpop.f32.mrf.mxu0
        %v932 = vadd.f32 %v867, %v931
        %v933 = vpop.f32.mrf.mxu0
        %v934 = vadd.f32 %v869, %v933
        %935 = vmatmul.bf16.gmra.mxu0 %v912
        %v936 = vpop.f32.mrf.mxu0
        %v937 = vadd.f32 %v872, %v936
        %v938 = vpop.f32.mrf.mxu0
        %v939 = vadd.f32 %v874, %v938
        %940 = vmatmul.bf16.gmra.mxu0 %v915
        %v941 = vpop.f32.mrf.mxu0
        %v942 = vadd.f32 %v877, %v941
        %v943 = vpop.f32.mrf.mxu0
        %v944 = vadd.f32 %v879, %v943
        %945 = vdwg.mxu0
        %v946 = vld [vmem:[#allocation2 + $0x9] sm:$0xff]
        %v947 = vld [vmem:[#allocation2 + $0x11] sm:$0xff]
        %v948 = vld [vmem:[#allocation2 + $0x19] sm:$0xff]
        %v949 = vld [vmem:[#allocation2 + $0x21] sm:$0xff]
        %v950 = vld [vmem:[#allocation2 + $0x29] sm:$0xff]
        %v951 = vld [vmem:[#allocation2 + $0x31] sm:$0xff]
        %v952 = vld [vmem:[#allocation2 + $0x39] sm:$0xff]
        %v953 = vld [vmem:[#allocation2 + $0x41] sm:$0xff]
        %955 = vset.pattern.permute.xlu0 0
        %956 = vperm.xlu0 %955, %v418
        %v957 = vpop.permute.xlu0 %956
        %960 = vset.pattern.permute.xlu0 0
        %961 = vperm.xlu0 %960, %v419
        %v962 = vpop.permute.xlu0 %961
        %965 = vset.pattern.permute.xlu0 0
        %966 = vperm.xlu0 %965, %v420
        %v967 = vpop.permute.xlu0 %966
        %970 = vset.pattern.permute.xlu0 0
        %971 = vperm.xlu0 %970, %v421
        %v972 = vpop.permute.xlu0 %971
        %975 = vset.pattern.permute.xlu0 0
        %976 = vperm.xlu0 %975, %v422
        %v977 = vpop.permute.xlu0 %976
        %980 = vset.pattern.permute.xlu0 0
        %981 = vperm.xlu0 %980, %v423
        %v982 = vpop.permute.xlu0 %981
        %985 = vset.pattern.permute.xlu0 0
        %986 = vperm.xlu0 %985, %v424
        %v987 = vpop.permute.xlu0 %986
        %990 = vset.pattern.permute.xlu0 0
        %991 = vperm.xlu0 %990, %v425
        %v992 = vpop.permute.xlu0 %991
        %v994 = vmul.f32 %v946, %v957
        %v995 = vmul.f32 %v947, %v962
        %v996 = vmul.f32 %v948, %v967
        %v997 = vmul.f32 %v949, %v972
        %v998 = vmul.f32 %v950, %v977
        %v999 = vmul.f32 %v951, %v982
        %v1000 = vmul.f32 %v952, %v987
        %v1001 = vmul.f32 %v953, %v992
        %v1002 = vld [vmem:[%s3 + $0x40] sm:$0xf]
        %v1003 = vld [vmem:[%s3 + $0x44] sm:$0xf]
        %v1004 = vld [vmem:[%s3 + $0x48] sm:$0xf]
        %v1005 = vld [vmem:[%s3 + $0x4c] sm:$0xf]
        %v1006 = vld [vmem:[%s3 + $0x50] sm:$0xf]
        %v1007 = vld [vmem:[%s3 + $0x54] sm:$0xf]
        %v1008 = vld [vmem:[%s3 + $0x58] sm:$0xf]
        %v1009 = vld [vmem:[%s3 + $0x5c] sm:$0xf]
        %v1010 = vpack.c.bf16 %v995, %v994
        %v1011 = vpack.c.bf16 %v997, %v996
        %v1012 = vpack.c.bf16 %v999, %v998
        %v1013 = vpack.c.bf16 %v1001, %v1000
        %v1022 = vunpack.c.l.b16 %v1002
        %v1023 = vunpack.c.l.b16 %v1003
        %v1024 = vunpack.c.l.b16 %v1004
        %v1025 = vunpack.c.l.b16 %v1005
        %v1026 = vunpack.c.l.b16 %v1006
        %v1027 = vunpack.c.l.b16 %v1007
        %v1028 = vunpack.c.l.b16 %v1008
        %v1029 = vunpack.c.l.b16 %v1009
        %v1030 = vpack.c.b16 %v1023, %v1022
        %v1031 = vpack.c.b16 %v1025, %v1024
        %v1032 = vpack.c.b16 %v1027, %v1026
        %v1033 = vpack.c.b16 %v1029, %v1028
        %v1039 = vsel %vm426, %v1010, 0
        %v1042 = vsel %vm426, %v1011, 0
        %v1045 = vsel %vm426, %v1012, 0
        %v1048 = vsel %vm426, %v1013, 0
        %1050 = vmatpush.bf16.msra.mxu0 0
        %1051 = vmatpush.bf16.msra.mxu0 0
        %1052 = vmatpush.bf16.msra.mxu0 0
        %1053 = vmatpush.bf16.msra.mxu0 0
        %1054 = vmatpush.bf16.msra.mxu0 %v1033
        %1055 = vmatpush.bf16.msra.mxu0 %v1032
        %1056 = vmatpush.bf16.msra.mxu0 %v1031
        %1057 = vmatpush.bf16.msra.mxu0 %v1030
        %1058 = vmatmul.bf16.gmra.mxu0 %v1039
        %v1059 = vpop.f32.mrf.mxu0
        %v1060 = vadd.f32 0.0, %v1059
        %v1061 = vpop.f32.mrf.mxu0
        %v1062 = vadd.f32 0.0, %v1061
        %1063 = vmatmul.bf16.gmra.mxu0 %v1042
        %v1064 = vpop.f32.mrf.mxu0
        %v1065 = vadd.f32 0.0, %v1064
        %v1066 = vpop.f32.mrf.mxu0
        %v1067 = vadd.f32 0.0, %v1066
        %1068 = vmatmul.bf16.gmra.mxu0 %v1045
        %v1069 = vpop.f32.mrf.mxu0
        %v1070 = vadd.f32 0.0, %v1069
        %v1071 = vpop.f32.mrf.mxu0
        %v1072 = vadd.f32 0.0, %v1071
        %1073 = vmatmul.bf16.gmra.mxu0 %v1048
        %v1074 = vpop.f32.mrf.mxu0
        %v1075 = vadd.f32 0.0, %v1074
        %v1076 = vpop.f32.mrf.mxu0
        %v1077 = vadd.f32 0.0, %v1076
        %1078 = vdwg.mxu0
        %v1079 = vadd.f32 %v927, %v1060
        %v1080 = vadd.f32 %v929, %v1062
        %v1081 = vadd.f32 %v932, %v1065
        %v1082 = vadd.f32 %v934, %v1067
        %v1083 = vadd.f32 %v937, %v1070
        %v1084 = vadd.f32 %v939, %v1072
        %v1085 = vadd.f32 %v942, %v1075
        %v1086 = vadd.f32 %v944, %v1077
        %v1087 = vld [vmem:[#allocation2 + $0xf] sm:$0xff]
        %v1088 = vld [vmem:[#allocation2 + $0x17] sm:$0xff]
        %v1089 = vld [vmem:[#allocation2 + $0x1f] sm:$0xff]
        %v1090 = vld [vmem:[#allocation2 + $0x27] sm:$0xff]
        %v1091 = vld [vmem:[#allocation2 + $0x2f] sm:$0xff]
        %v1092 = vld [vmem:[#allocation2 + $0x37] sm:$0xff]
        %v1093 = vld [vmem:[#allocation2 + $0x3f] sm:$0xff]
        %v1094 = vld [vmem:[#allocation2 + $0x47] sm:$0xff]
        %v1095 = vmul.f32 %v1087, %v739
        %v1096 = vmul.f32 %v1088, %v744
        %v1097 = vmul.f32 %v1089, %v749
        %v1098 = vmul.f32 %v1090, %v754
        %v1099 = vmul.f32 %v1091, %v759
        %v1100 = vmul.f32 %v1092, %v764
        %v1101 = vmul.f32 %v1093, %v769
        %v1102 = vmul.f32 %v1094, %v774
        %v1103 = vld [vmem:[%s3 + $0x60] sm:$0xf]
        %v1104 = vld [vmem:[%s3 + $0x64] sm:$0xf]
        %v1105 = vld [vmem:[%s3 + $0x68] sm:$0xf]
        %v1106 = vld [vmem:[%s3 + $0x6c] sm:$0xf]
        %v1107 = vld [vmem:[%s3 + $0x70] sm:$0xf]
        %v1108 = vld [vmem:[%s3 + $0x74] sm:$0xf]
        %v1109 = vld [vmem:[%s3 + $0x78] sm:$0xf]
        %v1110 = vld [vmem:[%s3 + $0x7c] sm:$0xf]
        %v1111 = vpack.c.bf16 %v1096, %v1095
        %v1112 = vpack.c.bf16 %v1098, %v1097
        %v1113 = vpack.c.bf16 %v1100, %v1099
        %v1114 = vpack.c.bf16 %v1102, %v1101
        %v1123 = vunpack.c.l.b16 %v1103
        %v1124 = vunpack.c.l.b16 %v1104
        %v1125 = vunpack.c.l.b16 %v1105
        %v1126 = vunpack.c.l.b16 %v1106
        %v1127 = vunpack.c.l.b16 %v1107
        %v1128 = vunpack.c.l.b16 %v1108
        %v1129 = vunpack.c.l.b16 %v1109
        %v1130 = vunpack.c.l.b16 %v1110
        %v1131 = vpack.c.b16 %v1124, %v1123
        %v1132 = vpack.c.b16 %v1126, %v1125
        %v1133 = vpack.c.b16 %v1128, %v1127
        %v1134 = vpack.c.b16 %v1130, %v1129
        %v1140 = vsel %vm426, %v1111, 0
        %v1143 = vsel %vm426, %v1112, 0
        %v1146 = vsel %vm426, %v1113, 0
        %v1149 = vsel %vm426, %v1114, 0
        %1151 = vmatpush.bf16.msra.mxu0 0
        %1152 = vmatpush.bf16.msra.mxu0 0
        %1153 = vmatpush.bf16.msra.mxu0 0
        %1154 = vmatpush.bf16.msra.mxu0 0
        %1155 = vmatpush.bf16.msra.mxu0 %v1134
        %1156 = vmatpush.bf16.msra.mxu0 %v1133
        %1157 = vmatpush.bf16.msra.mxu0 %v1132
        %1158 = vmatpush.bf16.msra.mxu0 %v1131
        %1159 = vmatmul.bf16.gmra.mxu0 %v1140
        %v1160 = vpop.f32.mrf.mxu0
        %v1161 = vadd.f32 0.0, %v1160
        %v1162 = vpop.f32.mrf.mxu0
        %v1163 = vadd.f32 0.0, %v1162
        %1164 = vmatmul.bf16.gmra.mxu0 %v1143
        %v1165 = vpop.f32.mrf.mxu0
        %v1166 = vadd.f32 0.0, %v1165
        %v1167 = vpop.f32.mrf.mxu0
        %v1168 = vadd.f32 0.0, %v1167
        %1169 = vmatmul.bf16.gmra.mxu0 %v1146
        %v1170 = vpop.f32.mrf.mxu0
        %v1171 = vadd.f32 0.0, %v1170
        %v1172 = vpop.f32.mrf.mxu0
        %v1173 = vadd.f32 0.0, %v1172
        %1174 = vmatmul.bf16.gmra.mxu0 %v1149
        %v1175 = vpop.f32.mrf.mxu0
        %v1176 = vadd.f32 0.0, %v1175
        %v1177 = vpop.f32.mrf.mxu0
        %v1178 = vadd.f32 0.0, %v1177
        %1179 = vdwg.mxu0
        %v1180 = vadd.f32 %v1079, %v1161
        %v1181 = vadd.f32 %v1080, %v1163
        %v1182 = vadd.f32 %v1081, %v1166
        %v1183 = vadd.f32 %v1082, %v1168
        %v1184 = vadd.f32 %v1083, %v1171
        %v1185 = vadd.f32 %v1084, %v1173
        %v1186 = vadd.f32 %v1085, %v1176
        %v1187 = vadd.f32 %v1086, %v1178
        %v1188 = vld [vmem:[#allocation2 + $0x10] sm:$0xff]
        %v1189 = vld [vmem:[#allocation2 + $0x18] sm:$0xff]
        %v1190 = vld [vmem:[#allocation2 + $0x20] sm:$0xff]
        %v1191 = vld [vmem:[#allocation2 + $0x28] sm:$0xff]
        %v1192 = vld [vmem:[#allocation2 + $0x30] sm:$0xff]
        %v1193 = vld [vmem:[#allocation2 + $0x38] sm:$0xff]
        %v1194 = vld [vmem:[#allocation2 + $0x40] sm:$0xff]
        %v1195 = vld [vmem:[#allocation2 + $0x48] sm:$0xff]
        %v1196 = vld [vmem:[%s3 + $0x80] sm:$0xf]
        %v1197 = vld [vmem:[%s3 + $0x84] sm:$0xf]
        %v1198 = vld [vmem:[%s3 + $0x88] sm:$0xf]
        %v1199 = vld [vmem:[%s3 + $0x8c] sm:$0xf]
        %v1200 = vld [vmem:[%s3 + $0x90] sm:$0xf]
        %v1201 = vld [vmem:[%s3 + $0x94] sm:$0xf]
        %v1202 = vld [vmem:[%s3 + $0x98] sm:$0xf]
        %v1203 = vld [vmem:[%s3 + $0x9c] sm:$0xf]
        %v1204 = vpack.c.bf16 %v1189, %v1188
        %v1205 = vpack.c.bf16 %v1191, %v1190
        %v1206 = vpack.c.bf16 %v1193, %v1192
        %v1207 = vpack.c.bf16 %v1195, %v1194
        %v1216 = vunpack.c.l.b16 %v1196
        %v1217 = vunpack.c.l.b16 %v1197
        %v1218 = vunpack.c.l.b16 %v1198
        %v1219 = vunpack.c.l.b16 %v1199
        %v1220 = vunpack.c.l.b16 %v1200
        %v1221 = vunpack.c.l.b16 %v1201
        %v1222 = vunpack.c.l.b16 %v1202
        %v1223 = vunpack.c.l.b16 %v1203
        %v1224 = vpack.c.b16 %v1217, %v1216
        %v1225 = vpack.c.b16 %v1219, %v1218
        %v1226 = vpack.c.b16 %v1221, %v1220
        %v1227 = vpack.c.b16 %v1223, %v1222
        %v1233 = vsel %vm426, %v1204, 0
        %v1236 = vsel %vm426, %v1205, 0
        %v1239 = vsel %vm426, %v1206, 0
        %v1242 = vsel %vm426, %v1207, 0
        %1244 = vmatpush.bf16.msra.mxu0 0
        %1245 = vmatpush.bf16.msra.mxu0 0
        %1246 = vmatpush.bf16.msra.mxu0 0
        %1247 = vmatpush.bf16.msra.mxu0 0
        %1248 = vmatpush.bf16.msra.mxu0 %v1227
        %1249 = vmatpush.bf16.msra.mxu0 %v1226
        %1250 = vmatpush.bf16.msra.mxu0 %v1225
        %1251 = vmatpush.bf16.msra.mxu0 %v1224
        %1252 = vmatmul.bf16.gmra.mxu0 %v1233
        %v1253 = vpop.f32.mrf.mxu0
        %v1254 = vadd.f32 0.0, %v1253
        %v1255 = vpop.f32.mrf.mxu0
        %v1256 = vadd.f32 0.0, %v1255
        %1257 = vmatmul.bf16.gmra.mxu0 %v1236
        %v1258 = vpop.f32.mrf.mxu0
        %v1259 = vadd.f32 0.0, %v1258
        %v1260 = vpop.f32.mrf.mxu0
        %v1261 = vadd.f32 0.0, %v1260
        %1262 = vmatmul.bf16.gmra.mxu0 %v1239
        %v1263 = vpop.f32.mrf.mxu0
        %v1264 = vadd.f32 0.0, %v1263
        %v1265 = vpop.f32.mrf.mxu0
        %v1266 = vadd.f32 0.0, %v1265
        %1267 = vmatmul.bf16.gmra.mxu0 %v1242
        %v1268 = vpop.f32.mrf.mxu0
        %v1269 = vadd.f32 0.0, %v1268
        %v1270 = vpop.f32.mrf.mxu0
        %v1271 = vadd.f32 0.0, %v1270
        %1272 = vdwg.mxu0
        %v1273 = vadd.f32 %v1180, %v1254
        %v1274 = vadd.f32 %v1181, %v1256
        %v1275 = vadd.f32 %v1182, %v1259
        %v1276 = vadd.f32 %v1183, %v1261
        %v1277 = vadd.f32 %v1184, %v1264
        %v1278 = vadd.f32 %v1185, %v1266
        %v1279 = vadd.f32 %v1186, %v1269
        %v1280 = vadd.f32 %v1187, %v1271
        %v1281 = vld [vmem:[#allocation2 + $0x11] sm:$0xff]
        %v1282 = vld [vmem:[#allocation2 + $0x19] sm:$0xff]
        %v1283 = vld [vmem:[#allocation2 + $0x21] sm:$0xff]
        %v1284 = vld [vmem:[#allocation2 + $0x29] sm:$0xff]
        %v1285 = vld [vmem:[#allocation2 + $0x31] sm:$0xff]
        %v1286 = vld [vmem:[#allocation2 + $0x39] sm:$0xff]
        %v1287 = vld [vmem:[#allocation2 + $0x41] sm:$0xff]
        %v1288 = vld [vmem:[#allocation2 + $0x49] sm:$0xff]
        %v1289 = vmul.f32 %v1281, %v957
        %v1290 = vmul.f32 %v1282, %v962
        %v1291 = vmul.f32 %v1283, %v967
        %v1292 = vmul.f32 %v1284, %v972
        %v1293 = vmul.f32 %v1285, %v977
        %v1294 = vmul.f32 %v1286, %v982
        %v1295 = vmul.f32 %v1287, %v987
        %v1296 = vmul.f32 %v1288, %v992
        %v1297 = vld [vmem:[%s3 + $0xa0] sm:$0xf]
        %v1298 = vld [vmem:[%s3 + $0xa4] sm:$0xf]
        %v1299 = vld [vmem:[%s3 + $0xa8] sm:$0xf]
        %v1300 = vld [vmem:[%s3 + $0xac] sm:$0xf]
        %v1301 = vld [vmem:[%s3 + $0xb0] sm:$0xf]
        %v1302 = vld [vmem:[%s3 + $0xb4] sm:$0xf]
        %v1303 = vld [vmem:[%s3 + $0xb8] sm:$0xf]
        %v1304 = vld [vmem:[%s3 + $0xbc] sm:$0xf]
        %v1305 = vpack.c.bf16 %v1290, %v1289
        %v1306 = vpack.c.bf16 %v1292, %v1291
        %v1307 = vpack.c.bf16 %v1294, %v1293
        %v1308 = vpack.c.bf16 %v1296, %v1295
        %v1317 = vunpack.c.l.b16 %v1297
        %v1318 = vunpack.c.l.b16 %v1298
        %v1319 = vunpack.c.l.b16 %v1299
        %v1320 = vunpack.c.l.b16 %v1300
        %v1321 = vunpack.c.l.b16 %v1301
        %v1322 = vunpack.c.l.b16 %v1302
        %v1323 = vunpack.c.l.b16 %v1303
        %v1324 = vunpack.c.l.b16 %v1304
        %v1325 = vpack.c.b16 %v1318, %v1317
        %v1326 = vpack.c.b16 %v1320, %v1319
        %v1327 = vpack.c.b16 %v1322, %v1321
        %v1328 = vpack.c.b16 %v1324, %v1323
        %v1334 = vsel %vm426, %v1305, 0
        %v1337 = vsel %vm426, %v1306, 0
        %v1340 = vsel %vm426, %v1307, 0
        %v1343 = vsel %vm426, %v1308, 0
        %1345 = vmatpush.bf16.msra.mxu0 0
        %1346 = vmatpush.bf16.msra.mxu0 0
        %1347 = vmatpush.bf16.msra.mxu0 0
        %1348 = vmatpush.bf16.msra.mxu0 0
        %1349 = vmatpush.bf16.msra.mxu0 %v1328
        %1350 = vmatpush.bf16.msra.mxu0 %v1327
        %1351 = vmatpush.bf16.msra.mxu0 %v1326
        %1352 = vmatpush.bf16.msra.mxu0 %v1325
        %1353 = vmatmul.bf16.gmra.mxu0 %v1334
        %v1354 = vpop.f32.mrf.mxu0
        %v1355 = vadd.f32 0.0, %v1354
        %v1356 = vpop.f32.mrf.mxu0
        %v1357 = vadd.f32 0.0, %v1356
        %1358 = vmatmul.bf16.gmra.mxu0 %v1337
        %v1359 = vpop.f32.mrf.mxu0
        %v1360 = vadd.f32 0.0, %v1359
        %v1361 = vpop.f32.mrf.mxu0
        %v1362 = vadd.f32 0.0, %v1361
        %1363 = vmatmul.bf16.gmra.mxu0 %v1340
        %v1364 = vpop.f32.mrf.mxu0
        %v1365 = vadd.f32 0.0, %v1364
        %v1366 = vpop.f32.mrf.mxu0
        %v1367 = vadd.f32 0.0, %v1366
        %1368 = vmatmul.bf16.gmra.mxu0 %v1343
        %v1369 = vpop.f32.mrf.mxu0
        %v1370 = vadd.f32 0.0, %v1369
        %v1371 = vpop.f32.mrf.mxu0
        %v1372 = vadd.f32 0.0, %v1371
        %1373 = vdwg.mxu0
        %v1374 = vadd.f32 %v1273, %v1355
        %v1375 = vadd.f32 %v1274, %v1357
        %v1376 = vadd.f32 %v1275, %v1360
        %v1377 = vadd.f32 %v1276, %v1362
        %v1378 = vadd.f32 %v1277, %v1365
        %v1379 = vadd.f32 %v1278, %v1367
        %v1380 = vadd.f32 %v1279, %v1370
        %v1381 = vadd.f32 %v1280, %v1372
        %v1382 = vld [vmem:[#allocation2 + $0x17] sm:$0xff]
        %v1383 = vld [vmem:[#allocation2 + $0x1f] sm:$0xff]
        %v1384 = vld [vmem:[#allocation2 + $0x27] sm:$0xff]
        %v1385 = vld [vmem:[#allocation2 + $0x2f] sm:$0xff]
        %v1386 = vld [vmem:[#allocation2 + $0x37] sm:$0xff]
        %v1387 = vld [vmem:[#allocation2 + $0x3f] sm:$0xff]
        %v1388 = vld [vmem:[#allocation2 + $0x47] sm:$0xff]
        %v1389 = vld [vmem:[#allocation2 + $0x4f] sm:$0xff]
        %v1390 = vmul.f32 %v1382, %v739
        %v1391 = vmul.f32 %v1383, %v744
        %v1392 = vmul.f32 %v1384, %v749
        %v1393 = vmul.f32 %v1385, %v754
        %v1394 = vmul.f32 %v1386, %v759
        %v1395 = vmul.f32 %v1387, %v764
        %v1396 = vmul.f32 %v1388, %v769
        %v1397 = vmul.f32 %v1389, %v774
        %v1398 = vld [vmem:[%s3 + $0xc0] sm:$0xf]
        %v1399 = vld [vmem:[%s3 + $0xc4] sm:$0xf]
        %v1400 = vld [vmem:[%s3 + $0xc8] sm:$0xf]
        %v1401 = vld [vmem:[%s3 + $0xcc] sm:$0xf]
        %v1402 = vld [vmem:[%s3 + $0xd0] sm:$0xf]
        %v1403 = vld [vmem:[%s3 + $0xd4] sm:$0xf]
        %v1404 = vld [vmem:[%s3 + $0xd8] sm:$0xf]
        %v1405 = vld [vmem:[%s3 + $0xdc] sm:$0xf]
        %v1406 = vpack.c.bf16 %v1391, %v1390
        %v1407 = vpack.c.bf16 %v1393, %v1392
        %v1408 = vpack.c.bf16 %v1395, %v1394
        %v1409 = vpack.c.bf16 %v1397, %v1396
        %v1418 = vunpack.c.l.b16 %v1398
        %v1419 = vunpack.c.l.b16 %v1399
        %v1420 = vunpack.c.l.b16 %v1400
        %v1421 = vunpack.c.l.b16 %v1401
        %v1422 = vunpack.c.l.b16 %v1402
        %v1423 = vunpack.c.l.b16 %v1403
        %v1424 = vunpack.c.l.b16 %v1404
        %v1425 = vunpack.c.l.b16 %v1405
        %v1426 = vpack.c.b16 %v1419, %v1418
        %v1427 = vpack.c.b16 %v1421, %v1420
        %v1428 = vpack.c.b16 %v1423, %v1422
        %v1429 = vpack.c.b16 %v1425, %v1424
        %v1435 = vsel %vm426, %v1406, 0
        %v1438 = vsel %vm426, %v1407, 0
        %v1441 = vsel %vm426, %v1408, 0
        %v1444 = vsel %vm426, %v1409, 0
        %1446 = vmatpush.bf16.msra.mxu0 0
        %1447 = vmatpush.bf16.msra.mxu0 0
        %1448 = vmatpush.bf16.msra.mxu0 0
        %1449 = vmatpush.bf16.msra.mxu0 0
        %1450 = vmatpush.bf16.msra.mxu0 %v1429
        %1451 = vmatpush.bf16.msra.mxu0 %v1428
        %1452 = vmatpush.bf16.msra.mxu0 %v1427
        %1453 = vmatpush.bf16.msra.mxu0 %v1426
        %1454 = vmatmul.bf16.gmra.mxu0 %v1435
        %v1455 = vpop.f32.mrf.mxu0
        %v1456 = vadd.f32 0.0, %v1455
        %v1457 = vpop.f32.mrf.mxu0
        %v1458 = vadd.f32 0.0, %v1457
        %1459 = vmatmul.bf16.gmra.mxu0 %v1438
        %v1460 = vpop.f32.mrf.mxu0
        %v1461 = vadd.f32 0.0, %v1460
        %v1462 = vpop.f32.mrf.mxu0
        %v1463 = vadd.f32 0.0, %v1462
        %1464 = vmatmul.bf16.gmra.mxu0 %v1441
        %v1465 = vpop.f32.mrf.mxu0
        %v1466 = vadd.f32 0.0, %v1465
        %v1467 = vpop.f32.mrf.mxu0
        %v1468 = vadd.f32 0.0, %v1467
        %1469 = vmatmul.bf16.gmra.mxu0 %v1444
        %v1470 = vpop.f32.mrf.mxu0
        %v1471 = vadd.f32 0.0, %v1470
        %v1472 = vpop.f32.mrf.mxu0
        %v1473 = vadd.f32 0.0, %v1472
        %1474 = vdwg.mxu0
        %v1475 = vadd.f32 %v1374, %v1456
        %v1476 = vadd.f32 %v1375, %v1458
        %v1477 = vadd.f32 %v1376, %v1461
        %v1478 = vadd.f32 %v1377, %v1463
        %v1479 = vadd.f32 %v1378, %v1466
        %v1480 = vadd.f32 %v1379, %v1468
        %v1481 = vadd.f32 %v1380, %v1471
        %v1482 = vadd.f32 %v1381, %v1473
        %v1483 = vld [vmem:[#allocation2 + $0x18] sm:$0xff]
        %v1484 = vld [vmem:[#allocation2 + $0x20] sm:$0xff]
        %v1485 = vld [vmem:[#allocation2 + $0x28] sm:$0xff]
        %v1486 = vld [vmem:[#allocation2 + $0x30] sm:$0xff]
        %v1487 = vld [vmem:[#allocation2 + $0x38] sm:$0xff]
        %v1488 = vld [vmem:[#allocation2 + $0x40] sm:$0xff]
        %v1489 = vld [vmem:[#allocation2 + $0x48] sm:$0xff]
        %v1490 = vld [vmem:[#allocation2 + $0x50] sm:$0xff]
        %v1491 = vld [vmem:[%s3 + $0xe0] sm:$0xf]
        %v1492 = vld [vmem:[%s3 + $0xe4] sm:$0xf]
        %v1493 = vld [vmem:[%s3 + $0xe8] sm:$0xf]
        %v1494 = vld [vmem:[%s3 + $0xec] sm:$0xf]
        %v1495 = vld [vmem:[%s3 + $0xf0] sm:$0xf]
        %v1496 = vld [vmem:[%s3 + $0xf4] sm:$0xf]
        %v1497 = vld [vmem:[%s3 + $0xf8] sm:$0xf]
        %v1498 = vld [vmem:[%s3 + $0xfc] sm:$0xf]
        %v1499 = vpack.c.bf16 %v1484, %v1483
        %v1500 = vpack.c.bf16 %v1486, %v1485
        %v1501 = vpack.c.bf16 %v1488, %v1487
        %v1502 = vpack.c.bf16 %v1490, %v1489
        %v1511 = vunpack.c.l.b16 %v1491
        %v1512 = vunpack.c.l.b16 %v1492
        %v1513 = vunpack.c.l.b16 %v1493
        %v1514 = vunpack.c.l.b16 %v1494
        %v1515 = vunpack.c.l.b16 %v1495
        %v1516 = vunpack.c.l.b16 %v1496
        %v1517 = vunpack.c.l.b16 %v1497
        %v1518 = vunpack.c.l.b16 %v1498
        %v1519 = vpack.c.b16 %v1512, %v1511
        %v1520 = vpack.c.b16 %v1514, %v1513
        %v1521 = vpack.c.b16 %v1516, %v1515
        %v1522 = vpack.c.b16 %v1518, %v1517
        %v1528 = vsel %vm426, %v1499, 0
        %v1531 = vsel %vm426, %v1500, 0
        %v1534 = vsel %vm426, %v1501, 0
        %v1537 = vsel %vm426, %v1502, 0
        %1539 = vmatpush.bf16.msra.mxu0 0
        %1540 = vmatpush.bf16.msra.mxu0 0
        %1541 = vmatpush.bf16.msra.mxu0 0
        %1542 = vmatpush.bf16.msra.mxu0 0
        %1543 = vmatpush.bf16.msra.mxu0 %v1522
        %1544 = vmatpush.bf16.msra.mxu0 %v1521
        %1545 = vmatpush.bf16.msra.mxu0 %v1520
        %1546 = vmatpush.bf16.msra.mxu0 %v1519
        %1547 = vmatmul.bf16.gmra.mxu0 %v1528
        %v1548 = vpop.f32.mrf.mxu0
        %v1549 = vadd.f32 0.0, %v1548
        %v1550 = vpop.f32.mrf.mxu0
        %v1551 = vadd.f32 0.0, %v1550
        %1552 = vmatmul.bf16.gmra.mxu0 %v1531
        %v1553 = vpop.f32.mrf.mxu0
        %v1554 = vadd.f32 0.0, %v1553
        %v1555 = vpop.f32.mrf.mxu0
        %v1556 = vadd.f32 0.0, %v1555
        %1557 = vmatmul.bf16.gmra.mxu0 %v1534
        %v1558 = vpop.f32.mrf.mxu0
        %v1559 = vadd.f32 0.0, %v1558
        %v1560 = vpop.f32.mrf.mxu0
        %v1561 = vadd.f32 0.0, %v1560
        %1562 = vmatmul.bf16.gmra.mxu0 %v1537
        %v1563 = vpop.f32.mrf.mxu0
        %v1564 = vadd.f32 0.0, %v1563
        %v1565 = vpop.f32.mrf.mxu0
        %v1566 = vadd.f32 0.0, %v1565
        %1567 = vdwg.mxu0
        %v1568 = vadd.f32 %v1475, %v1549
        %v1569 = vadd.f32 %v1476, %v1551
        %v1570 = vadd.f32 %v1477, %v1554
        %v1571 = vadd.f32 %v1478, %v1556
        %v1572 = vadd.f32 %v1479, %v1559
        %v1573 = vadd.f32 %v1480, %v1561
        %v1574 = vadd.f32 %v1481, %v1564
        %v1575 = vadd.f32 %v1482, %v1566
        %v1576 = vld [vmem:[#allocation2 + $0x19] sm:$0xff]
        %v1577 = vld [vmem:[#allocation2 + $0x21] sm:$0xff]
        %v1578 = vld [vmem:[#allocation2 + $0x29] sm:$0xff]
        %v1579 = vld [vmem:[#allocation2 + $0x31] sm:$0xff]
        %v1580 = vld [vmem:[#allocation2 + $0x39] sm:$0xff]
        %v1581 = vld [vmem:[#allocation2 + $0x41] sm:$0xff]
        %v1582 = vld [vmem:[#allocation2 + $0x49] sm:$0xff]
        %v1583 = vld [vmem:[#allocation2 + $0x51] sm:$0xff]
        %v1584 = vmul.f32 %v1576, %v957
        %v1585 = vmul.f32 %v1577, %v962
        %v1586 = vmul.f32 %v1578, %v967
        %v1587 = vmul.f32 %v1579, %v972
        %v1588 = vmul.f32 %v1580, %v977
        %v1589 = vmul.f32 %v1581, %v982
        %v1590 = vmul.f32 %v1582, %v987
        %v1591 = vmul.f32 %v1583, %v992
        %v1592 = vld [vmem:[%s3 + $0x100] sm:$0xf]
        %v1593 = vld [vmem:[%s3 + $0x104] sm:$0xf]
        %v1594 = vld [vmem:[%s3 + $0x108] sm:$0xf]
        %v1595 = vld [vmem:[%s3 + $0x10c] sm:$0xf]
        %v1596 = vld [vmem:[%s3 + $0x110] sm:$0xf]
        %v1597 = vld [vmem:[%s3 + $0x114] sm:$0xf]
        %v1598 = vld [vmem:[%s3 + $0x118] sm:$0xf]
        %v1599 = vld [vmem:[%s3 + $0x11c] sm:$0xf]
        %v1600 = vpack.c.bf16 %v1585, %v1584
        %v1601 = vpack.c.bf16 %v1587, %v1586
        %v1602 = vpack.c.bf16 %v1589, %v1588
        %v1603 = vpack.c.bf16 %v1591, %v1590
        %v1612 = vunpack.c.l.b16 %v1592
        %v1613 = vunpack.c.l.b16 %v1593
        %v1614 = vunpack.c.l.b16 %v1594
        %v1615 = vunpack.c.l.b16 %v1595
        %v1616 = vunpack.c.l.b16 %v1596
        %v1617 = vunpack.c.l.b16 %v1597
        %v1618 = vunpack.c.l.b16 %v1598
        %v1619 = vunpack.c.l.b16 %v1599
        %v1620 = vpack.c.b16 %v1613, %v1612
        %v1621 = vpack.c.b16 %v1615, %v1614
        %v1622 = vpack.c.b16 %v1617, %v1616
        %v1623 = vpack.c.b16 %v1619, %v1618
        %v1629 = vsel %vm426, %v1600, 0
        %v1632 = vsel %vm426, %v1601, 0
        %v1635 = vsel %vm426, %v1602, 0
        %v1638 = vsel %vm426, %v1603, 0
        %1640 = vmatpush.bf16.msra.mxu0 0
        %1641 = vmatpush.bf16.msra.mxu0 0
        %1642 = vmatpush.bf16.msra.mxu0 0
        %1643 = vmatpush.bf16.msra.mxu0 0
        %1644 = vmatpush.bf16.msra.mxu0 %v1623
        %1645 = vmatpush.bf16.msra.mxu0 %v1622
        %1646 = vmatpush.bf16.msra.mxu0 %v1621
        %1647 = vmatpush.bf16.msra.mxu0 %v1620
        %1648 = vmatmul.bf16.gmra.mxu0 %v1629
        %v1649 = vpop.f32.mrf.mxu0
        %v1650 = vadd.f32 0.0, %v1649
        %v1651 = vpop.f32.mrf.mxu0
        %v1652 = vadd.f32 0.0, %v1651
        %1653 = vmatmul.bf16.gmra.mxu0 %v1632
        %v1654 = vpop.f32.mrf.mxu0
        %v1655 = vadd.f32 0.0, %v1654
        %v1656 = vpop.f32.mrf.mxu0
        %v1657 = vadd.f32 0.0, %v1656
        %1658 = vmatmul.bf16.gmra.mxu0 %v1635
        %v1659 = vpop.f32.mrf.mxu0
        %v1660 = vadd.f32 0.0, %v1659
        %v1661 = vpop.f32.mrf.mxu0
        %v1662 = vadd.f32 0.0, %v1661
        %1663 = vmatmul.bf16.gmra.mxu0 %v1638
        %v1664 = vpop.f32.mrf.mxu0
        %v1665 = vadd.f32 0.0, %v1664
        %v1666 = vpop.f32.mrf.mxu0
        %v1667 = vadd.f32 0.0, %v1666
        %1668 = vdwg.mxu0
        %v1669 = vadd.f32 %v1568, %v1650
        %v1670 = vadd.f32 %v1569, %v1652
        %v1671 = vadd.f32 %v1570, %v1655
        %v1672 = vadd.f32 %v1571, %v1657
        %v1673 = vadd.f32 %v1572, %v1660
        %v1674 = vadd.f32 %v1573, %v1662
        %v1675 = vadd.f32 %v1574, %v1665
        %v1676 = vadd.f32 %v1575, %v1667
        %v1678 = vperm.slane %v727, 0
        %v1680 = vadd.f32 %v1669, %v1678
        %v1681 = vadd.f32 %v1670, %v1678
        %v1682 = vadd.f32 %v1671, %v1678
        %v1683 = vadd.f32 %v1672, %v1678
        %v1684 = vadd.f32 %v1673, %v1678
        %v1685 = vadd.f32 %v1674, %v1678
        %v1686 = vadd.f32 %v1675, %v1678
        %v1687 = vadd.f32 %v1676, %v1678
        %v1688 = vmax.f32 %v1680, 0.0
        %v1689 = vmax.f32 %v1681, 0.0
        %v1690 = vmax.f32 %v1682, 0.0
        %v1691 = vmax.f32 %v1683, 0.0
        %v1692 = vmax.f32 %v1684, 0.0
        %v1693 = vmax.f32 %v1685, 0.0
        %v1694 = vmax.f32 %v1686, 0.0
        %v1695 = vmax.f32 %v1687, 0.0
        %1704 = vrot.lane.b32.xlu0 %v1688, 96
        %v1705 = vpop.permute.xlu0 %1704
        %1706 = vrot.lane.b32.xlu0 %v1689, 96
        %v1707 = vpop.permute.xlu0 %1706
        %1708 = vrot.lane.b32.xlu0 %v1690, 96
        %v1709 = vpop.permute.xlu0 %1708
        %1710 = vrot.lane.b32.xlu0 %v1691, 96
        %v1711 = vpop.permute.xlu0 %1710
        %1712 = vrot.lane.b32.xlu0 %v1692, 96
        %v1713 = vpop.permute.xlu0 %1712
        %1714 = vrot.lane.b32.xlu0 %v1693, 96
        %v1715 = vpop.permute.xlu0 %1714
        %1716 = vrot.lane.b32.xlu0 %v1694, 96
        %v1717 = vpop.permute.xlu0 %1716
        %1718 = vrot.lane.b32.xlu0 %v1695, 96
        %v1719 = vpop.permute.xlu0 %1718
        %1728 = vst.msk [vmem:[#allocation3 + $0x10] sm:$0xff] %vm431, %v1705
        %1729 = vst.msk [vmem:[#allocation3 + $0x18] sm:$0xff] %vm431, %v1707
        %1730 = vst.msk [vmem:[#allocation3 + $0x20] sm:$0xff] %vm431, %v1709
        %1731 = vst.msk [vmem:[#allocation3 + $0x28] sm:$0xff] %vm431, %v1711
        %1732 = vst.msk [vmem:[#allocation3 + $0x30] sm:$0xff] %vm431, %v1713
        %1733 = vst.msk [vmem:[#allocation3 + $0x38] sm:$0xff] %vm431, %v1715
        %1734 = vst.msk [vmem:[#allocation3 + $0x40] sm:$0xff] %vm431, %v1717
        %1735 = vst.msk [vmem:[#allocation3 + $0x48] sm:$0xff] %vm431, %v1719
        %v1736 = vld [vmem:[%s6] sm:$0x1]
        %v1737 = vld [vmem:[#allocation3 + $0x7] sm:$0xff]
        %v1738 = vld [vmem:[#allocation3 + $0xf] sm:$0xff]
        %v1739 = vld [vmem:[#allocation3 + $0x17] sm:$0xff]
        %v1740 = vld [vmem:[#allocation3 + $0x1f] sm:$0xff]
        %v1741 = vld [vmem:[#allocation3 + $0x27] sm:$0xff]
        %v1742 = vld [vmem:[#allocation3 + $0x2f] sm:$0xff]
        %v1743 = vld [vmem:[#allocation3 + $0x37] sm:$0xff]
        %v1744 = vld [vmem:[#allocation3 + $0x3f] sm:$0xff]
        %v1745 = vmul.f32 %v1737, %v739
        %v1746 = vmul.f32 %v1738, %v744
        %v1747 = vmul.f32 %v1739, %v749
        %v1748 = vmul.f32 %v1740, %v754
        %v1749 = vmul.f32 %v1741, %v759
        %v1750 = vmul.f32 %v1742, %v764
        %v1751 = vmul.f32 %v1743, %v769
        %v1752 = vmul.f32 %v1744, %v774
        %v1753 = vld [vmem:[%s5] sm:$0xf]
        %v1754 = vld [vmem:[%s5 + $0x4] sm:$0xf]
        %v1755 = vld [vmem:[%s5 + $0x8] sm:$0xf]
        %v1756 = vld [vmem:[%s5 + $0xc] sm:$0xf]
        %v1757 = vld [vmem:[%s5 + $0x10] sm:$0xf]
        %v1758 = vld [vmem:[%s5 + $0x14] sm:$0xf]
        %v1759 = vpack.c.bf16 %v1746, %v1745
        %v1760 = vpack.c.bf16 %v1748, %v1747
        %v1761 = vpack.c.bf16 %v1750, %v1749
        %v1762 = vpack.c.bf16 %v1752, %v1751
        %v1763 = vld [vmem:[#allocation3 + $0x8] sm:$0xff]
        %v1764 = vld [vmem:[#allocation3 + $0x10] sm:$0xff]
        %v1765 = vld [vmem:[#allocation3 + $0x18] sm:$0xff]
        %v1766 = vld [vmem:[#allocation3 + $0x20] sm:$0xff]
        %v1767 = vld [vmem:[#allocation3 + $0x28] sm:$0xff]
        %v1768 = vld [vmem:[#allocation3 + $0x30] sm:$0xff]
        %v1769 = vld [vmem:[#allocation3 + $0x38] sm:$0xff]
        %v1770 = vld [vmem:[#allocation3 + $0x40] sm:$0xff]
        %v1771 = vld [vmem:[%s5 + $0x18] sm:$0xf]
        %v1772 = vld [vmem:[%s5 + $0x1c] sm:$0xf]
        %v1773 = vld [vmem:[%s5 + $0x20] sm:$0xf]
        %v1774 = vld [vmem:[%s5 + $0x24] sm:$0xf]
        %v1775 = vld [vmem:[%s5 + $0x28] sm:$0xf]
        %v1776 = vld [vmem:[%s5 + $0x2c] sm:$0xf]
        %v1777 = vpack.c.bf16 %v1764, %v1763
        %v1778 = vpack.c.bf16 %v1766, %v1765
        %v1779 = vpack.c.bf16 %v1768, %v1767
        %v1780 = vpack.c.bf16 %v1770, %v1769
        %v1787 = vunpack.c.l.b16 %v1771
        %v1788 = vunpack.c.l.b16 %v1772
        %v1789 = vunpack.c.l.b16 %v1773
        %v1790 = vunpack.c.l.b16 %v1774
        %v1791 = vunpack.c.l.b16 %v1775
        %v1792 = vunpack.c.l.b16 %v1776
        %v1793 = vpack.c.b16 %v1788, %v1787
        %v1794 = vpack.c.b16 %v1790, %v1789
        %v1795 = vpack.c.b16 %v1792, %v1791
        %v1800 = vsel %vm431, %v1777, 0
        %v1803 = vsel %vm431, %v1778, 0
        %v1806 = vsel %vm431, %v1779, 0
        %v1809 = vsel %vm431, %v1780, 0
        %1811 = vmatpush.bf16.msra.mxu0 0
        %1812 = vmatpush.bf16.msra.mxu0 0
        %1813 = vmatpush.bf16.msra.mxu0 0
        %1814 = vmatpush.bf16.msra.mxu0 0
        %1815 = vmatpush.bf16.msra.mxu0 0
        %1816 = vmatpush.bf16.msra.mxu0 %v1795
        %1817 = vmatpush.bf16.msra.mxu0 %v1794
        %1818 = vmatpush.bf16.msra.mxu0 %v1793
        %1819 = vmatmul.bf16.gmra.mxu0 %v1800
        %v1820 = vpop.f32.mrf.mxu0
        %v1821 = vadd.f32 0.0, %v1820
        %v1822 = vpop.f32.mrf.mxu0
        %v1823 = vadd.f32 0.0, %v1822
        %1824 = vmatmul.bf16.gmra.mxu0 %v1803
        %v1825 = vpop.f32.mrf.mxu0
        %v1826 = vadd.f32 0.0, %v1825
        %v1827 = vpop.f32.mrf.mxu0
        %v1828 = vadd.f32 0.0, %v1827
        %1829 = vmatmul.bf16.gmra.mxu0 %v1806
        %v1830 = vpop.f32.mrf.mxu0
        %v1831 = vadd.f32 0.0, %v1830
        %v1832 = vpop.f32.mrf.mxu0
        %v1833 = vadd.f32 0.0, %v1832
        %1834 = vmatmul.bf16.gmra.mxu0 %v1809
        %v1835 = vpop.f32.mrf.mxu0
        %v1836 = vadd.f32 0.0, %v1835
        %v1837 = vpop.f32.mrf.mxu0
        %v1838 = vadd.f32 0.0, %v1837
        %1839 = vdwg.mxu0
        %v1846 = vunpack.c.l.b16 %v1753
        %v1847 = vunpack.c.l.b16 %v1754
        %v1848 = vunpack.c.l.b16 %v1755
        %v1849 = vunpack.c.l.b16 %v1756
        %v1850 = vunpack.c.l.b16 %v1757
        %v1851 = vunpack.c.l.b16 %v1758
        %v1852 = vpack.c.b16 %v1847, %v1846
        %v1853 = vpack.c.b16 %v1849, %v1848
        %v1854 = vpack.c.b16 %v1851, %v1850
        %v1859 = vsel %vm431, %v1759, 0
        %v1862 = vsel %vm431, %v1760, 0
        %v1865 = vsel %vm431, %v1761, 0
        %v1868 = vsel %vm431, %v1762, 0
        %1870 = vmatpush.bf16.msra.mxu0 0
        %1871 = vmatpush.bf16.msra.mxu0 0
        %1872 = vmatpush.bf16.msra.mxu0 0
        %1873 = vmatpush.bf16.msra.mxu0 0
        %1874 = vmatpush.bf16.msra.mxu0 0
        %1875 = vmatpush.bf16.msra.mxu0 %v1854
        %1876 = vmatpush.bf16.msra.mxu0 %v1853
        %1877 = vmatpush.bf16.msra.mxu0 %v1852
        %1878 = vmatmul.bf16.gmra.mxu0 %v1859
        %v1879 = vpop.f32.mrf.mxu0
        %v1880 = vadd.f32 %v1821, %v1879
        %v1881 = vpop.f32.mrf.mxu0
        %v1882 = vadd.f32 %v1823, %v1881
        %1883 = vmatmul.bf16.gmra.mxu0 %v1862
        %v1884 = vpop.f32.mrf.mxu0
        %v1885 = vadd.f32 %v1826, %v1884
        %v1886 = vpop.f32.mrf.mxu0
        %v1887 = vadd.f32 %v1828, %v1886
        %1888 = vmatmul.bf16.gmra.mxu0 %v1865
        %v1889 = vpop.f32.mrf.mxu0
        %v1890 = vadd.f32 %v1831, %v1889
        %v1891 = vpop.f32.mrf.mxu0
        %v1892 = vadd.f32 %v1833, %v1891
        %1893 = vmatmul.bf16.gmra.mxu0 %v1868
        %v1894 = vpop.f32.mrf.mxu0
        %v1895 = vadd.f32 %v1836, %v1894
        %v1896 = vpop.f32.mrf.mxu0
        %v1897 = vadd.f32 %v1838, %v1896
        %1898 = vdwg.mxu0
        %v1899 = vld [vmem:[#allocation3 + $0x9] sm:$0xff]
        %v1900 = vld [vmem:[#allocation3 + $0x11] sm:$0xff]
        %v1901 = vld [vmem:[#allocation3 + $0x19] sm:$0xff]
        %v1902 = vld [vmem:[#allocation3 + $0x21] sm:$0xff]
        %v1903 = vld [vmem:[#allocation3 + $0x29] sm:$0xff]
        %v1904 = vld [vmem:[#allocation3 + $0x31] sm:$0xff]
        %v1905 = vld [vmem:[#allocation3 + $0x39] sm:$0xff]
        %v1906 = vld [vmem:[#allocation3 + $0x41] sm:$0xff]
        %v1907 = vmul.f32 %v1899, %v957
        %v1908 = vmul.f32 %v1900, %v962
        %v1909 = vmul.f32 %v1901, %v967
        %v1910 = vmul.f32 %v1902, %v972
        %v1911 = vmul.f32 %v1903, %v977
        %v1912 = vmul.f32 %v1904, %v982
        %v1913 = vmul.f32 %v1905, %v987
        %v1914 = vmul.f32 %v1906, %v992
        %v1915 = vld [vmem:[%s5 + $0x30] sm:$0xf]
        %v1916 = vld [vmem:[%s5 + $0x34] sm:$0xf]
        %v1917 = vld [vmem:[%s5 + $0x38] sm:$0xf]
        %v1918 = vld [vmem:[%s5 + $0x3c] sm:$0xf]
        %v1919 = vld [vmem:[%s5 + $0x40] sm:$0xf]
        %v1920 = vld [vmem:[%s5 + $0x44] sm:$0xf]
        %v1921 = vpack.c.bf16 %v1908, %v1907
        %v1922 = vpack.c.bf16 %v1910, %v1909
        %v1923 = vpack.c.bf16 %v1912, %v1911
        %v1924 = vpack.c.bf16 %v1914, %v1913
        %v1931 = vunpack.c.l.b16 %v1915
        %v1932 = vunpack.c.l.b16 %v1916
        %v1933 = vunpack.c.l.b16 %v1917
        %v1934 = vunpack.c.l.b16 %v1918
        %v1935 = vunpack.c.l.b16 %v1919
        %v1936 = vunpack.c.l.b16 %v1920
        %v1937 = vpack.c.b16 %v1932, %v1931
        %v1938 = vpack.c.b16 %v1934, %v1933
        %v1939 = vpack.c.b16 %v1936, %v1935
        %v1944 = vsel %vm431, %v1921, 0
        %v1947 = vsel %vm431, %v1922, 0
        %v1950 = vsel %vm431, %v1923, 0
        %v1953 = vsel %vm431, %v1924, 0
        %1955 = vmatpush.bf16.msra.mxu0 0
        %1956 = vmatpush.bf16.msra.mxu0 0
        %1957 = vmatpush.bf16.msra.mxu0 0
        %1958 = vmatpush.bf16.msra.mxu0 0
        %1959 = vmatpush.bf16.msra.mxu0 0
        %1960 = vmatpush.bf16.msra.mxu0 %v1939
        %1961 = vmatpush.bf16.msra.mxu0 %v1938
        %1962 = vmatpush.bf16.msra.mxu0 %v1937
        %1963 = vmatmul.bf16.gmra.mxu0 %v1944
        %v1964 = vpop.f32.mrf.mxu0
        %v1965 = vadd.f32 0.0, %v1964
        %v1966 = vpop.f32.mrf.mxu0
        %v1967 = vadd.f32 0.0, %v1966
        %1968 = vmatmul.bf16.gmra.mxu0 %v1947
        %v1969 = vpop.f32.mrf.mxu0
        %v1970 = vadd.f32 0.0, %v1969
        %v1971 = vpop.f32.mrf.mxu0
        %v1972 = vadd.f32 0.0, %v1971
        %1973 = vmatmul.bf16.gmra.mxu0 %v1950
        %v1974 = vpop.f32.mrf.mxu0
        %v1975 = vadd.f32 0.0, %v1974
        %v1976 = vpop.f32.mrf.mxu0
        %v1977 = vadd.f32 0.0, %v1976
        %1978 = vmatmul.bf16.gmra.mxu0 %v1953
        %v1979 = vpop.f32.mrf.mxu0
        %v1980 = vadd.f32 0.0, %v1979
        %v1981 = vpop.f32.mrf.mxu0
        %v1982 = vadd.f32 0.0, %v1981
        %1983 = vdwg.mxu0
        %v1984 = vadd.f32 %v1880, %v1965
        %v1985 = vadd.f32 %v1882, %v1967
        %v1986 = vadd.f32 %v1885, %v1970
        %v1987 = vadd.f32 %v1887, %v1972
        %v1988 = vadd.f32 %v1890, %v1975
        %v1989 = vadd.f32 %v1892, %v1977
        %v1990 = vadd.f32 %v1895, %v1980
        %v1991 = vadd.f32 %v1897, %v1982
        %v1992 = vld [vmem:[#allocation3 + $0xf] sm:$0xff]
        %v1993 = vld [vmem:[#allocation3 + $0x17] sm:$0xff]
        %v1994 = vld [vmem:[#allocation3 + $0x1f] sm:$0xff]
        %v1995 = vld [vmem:[#allocation3 + $0x27] sm:$0xff]
        %v1996 = vld [vmem:[#allocation3 + $0x2f] sm:$0xff]
        %v1997 = vld [vmem:[#allocation3 + $0x37] sm:$0xff]
        %v1998 = vld [vmem:[#allocation3 + $0x3f] sm:$0xff]
        %v1999 = vld [vmem:[#allocation3 + $0x47] sm:$0xff]
        %v2000 = vmul.f32 %v1992, %v739
        %v2001 = vmul.f32 %v1993, %v744
        %v2002 = vmul.f32 %v1994, %v749
        %v2003 = vmul.f32 %v1995, %v754
        %v2004 = vmul.f32 %v1996, %v759
        %v2005 = vmul.f32 %v1997, %v764
        %v2006 = vmul.f32 %v1998, %v769
        %v2007 = vmul.f32 %v1999, %v774
        %v2008 = vld [vmem:[%s5 + $0x48] sm:$0xf]
        %v2009 = vld [vmem:[%s5 + $0x4c] sm:$0xf]
        %v2010 = vld [vmem:[%s5 + $0x50] sm:$0xf]
        %v2011 = vld [vmem:[%s5 + $0x54] sm:$0xf]
        %v2012 = vld [vmem:[%s5 + $0x58] sm:$0xf]
        %v2013 = vld [vmem:[%s5 + $0x5c] sm:$0xf]
        %v2014 = vpack.c.bf16 %v2001, %v2000
        %v2015 = vpack.c.bf16 %v2003, %v2002
        %v2016 = vpack.c.bf16 %v2005, %v2004
        %v2017 = vpack.c.bf16 %v2007, %v2006
        %v2024 = vunpack.c.l.b16 %v2008
        %v2025 = vunpack.c.l.b16 %v2009
        %v2026 = vunpack.c.l.b16 %v2010
        %v2027 = vunpack.c.l.b16 %v2011
        %v2028 = vunpack.c.l.b16 %v2012
        %v2029 = vunpack.c.l.b16 %v2013
        %v2030 = vpack.c.b16 %v2025, %v2024
        %v2031 = vpack.c.b16 %v2027, %v2026
        %v2032 = vpack.c.b16 %v2029, %v2028
        %v2037 = vsel %vm431, %v2014, 0
        %v2040 = vsel %vm431, %v2015, 0
        %v2043 = vsel %vm431, %v2016, 0
        %v2046 = vsel %vm431, %v2017, 0
        %2048 = vmatpush.bf16.msra.mxu0 0
        %2049 = vmatpush.bf16.msra.mxu0 0
        %2050 = vmatpush.bf16.msra.mxu0 0
        %2051 = vmatpush.bf16.msra.mxu0 0
        %2052 = vmatpush.bf16.msra.mxu0 0
        %2053 = vmatpush.bf16.msra.mxu0 %v2032
        %2054 = vmatpush.bf16.msra.mxu0 %v2031
        %2055 = vmatpush.bf16.msra.mxu0 %v2030
        %2056 = vmatmul.bf16.gmra.mxu0 %v2037
        %v2057 = vpop.f32.mrf.mxu0
        %v2058 = vadd.f32 0.0, %v2057
        %v2059 = vpop.f32.mrf.mxu0
        %v2060 = vadd.f32 0.0, %v2059
        %2061 = vmatmul.bf16.gmra.mxu0 %v2040
        %v2062 = vpop.f32.mrf.mxu0
        %v2063 = vadd.f32 0.0, %v2062
        %v2064 = vpop.f32.mrf.mxu0
        %v2065 = vadd.f32 0.0, %v2064
        %2066 = vmatmul.bf16.gmra.mxu0 %v2043
        %v2067 = vpop.f32.mrf.mxu0
        %v2068 = vadd.f32 0.0, %v2067
        %v2069 = vpop.f32.mrf.mxu0
        %v2070 = vadd.f32 0.0, %v2069
        %2071 = vmatmul.bf16.gmra.mxu0 %v2046
        %v2072 = vpop.f32.mrf.mxu0
        %v2073 = vadd.f32 0.0, %v2072
        %v2074 = vpop.f32.mrf.mxu0
        %v2075 = vadd.f32 0.0, %v2074
        %2076 = vdwg.mxu0
        %v2077 = vadd.f32 %v1984, %v2058
        %v2078 = vadd.f32 %v1985, %v2060
        %v2079 = vadd.f32 %v1986, %v2063
        %v2080 = vadd.f32 %v1987, %v2065
        %v2081 = vadd.f32 %v1988, %v2068
        %v2082 = vadd.f32 %v1989, %v2070
        %v2083 = vadd.f32 %v1990, %v2073
        %v2084 = vadd.f32 %v1991, %v2075
        %v2085 = vld [vmem:[#allocation3 + $0x10] sm:$0xff]
        %v2086 = vld [vmem:[#allocation3 + $0x18] sm:$0xff]
        %v2087 = vld [vmem:[#allocation3 + $0x20] sm:$0xff]
        %v2088 = vld [vmem:[#allocation3 + $0x28] sm:$0xff]
        %v2089 = vld [vmem:[#allocation3 + $0x30] sm:$0xff]
        %v2090 = vld [vmem:[#allocation3 + $0x38] sm:$0xff]
        %v2091 = vld [vmem:[#allocation3 + $0x40] sm:$0xff]
        %v2092 = vld [vmem:[#allocation3 + $0x48] sm:$0xff]
        %v2093 = vld [vmem:[%s5 + $0x60] sm:$0xf]
        %v2094 = vld [vmem:[%s5 + $0x64] sm:$0xf]
        %v2095 = vld [vmem:[%s5 + $0x68] sm:$0xf]
        %v2096 = vld [vmem:[%s5 + $0x6c] sm:$0xf]
        %v2097 = vld [vmem:[%s5 + $0x70] sm:$0xf]
        %v2098 = vld [vmem:[%s5 + $0x74] sm:$0xf]
        %v2099 = vpack.c.bf16 %v2086, %v2085
        %v2100 = vpack.c.bf16 %v2088, %v2087
        %v2101 = vpack.c.bf16 %v2090, %v2089
        %v2102 = vpack.c.bf16 %v2092, %v2091
        %v2109 = vunpack.c.l.b16 %v2093
        %v2110 = vunpack.c.l.b16 %v2094
        %v2111 = vunpack.c.l.b16 %v2095
        %v2112 = vunpack.c.l.b16 %v2096
        %v2113 = vunpack.c.l.b16 %v2097
        %v2114 = vunpack.c.l.b16 %v2098
        %v2115 = vpack.c.b16 %v2110, %v2109
        %v2116 = vpack.c.b16 %v2112, %v2111
        %v2117 = vpack.c.b16 %v2114, %v2113
        %v2122 = vsel %vm431, %v2099, 0
        %v2125 = vsel %vm431, %v2100, 0
        %v2128 = vsel %vm431, %v2101, 0
        %v2131 = vsel %vm431, %v2102, 0
        %2133 = vmatpush.bf16.msra.mxu0 0
        %2134 = vmatpush.bf16.msra.mxu0 0
        %2135 = vmatpush.bf16.msra.mxu0 0
        %2136 = vmatpush.bf16.msra.mxu0 0
        %2137 = vmatpush.bf16.msra.mxu0 0
        %2138 = vmatpush.bf16.msra.mxu0 %v2117
        %2139 = vmatpush.bf16.msra.mxu0 %v2116
        %2140 = vmatpush.bf16.msra.mxu0 %v2115
        %2141 = vmatmul.bf16.gmra.mxu0 %v2122
        %v2142 = vpop.f32.mrf.mxu0
        %v2143 = vadd.f32 0.0, %v2142
        %v2144 = vpop.f32.mrf.mxu0
        %v2145 = vadd.f32 0.0, %v2144
        %2146 = vmatmul.bf16.gmra.mxu0 %v2125
        %v2147 = vpop.f32.mrf.mxu0
        %v2148 = vadd.f32 0.0, %v2147
        %v2149 = vpop.f32.mrf.mxu0
        %v2150 = vadd.f32 0.0, %v2149
        %2151 = vmatmul.bf16.gmra.mxu0 %v2128
        %v2152 = vpop.f32.mrf.mxu0
        %v2153 = vadd.f32 0.0, %v2152
        %v2154 = vpop.f32.mrf.mxu0
        %v2155 = vadd.f32 0.0, %v2154
        %2156 = vmatmul.bf16.gmra.mxu0 %v2131
        %v2157 = vpop.f32.mrf.mxu0
        %v2158 = vadd.f32 0.0, %v2157
        %v2159 = vpop.f32.mrf.mxu0
        %v2160 = vadd.f32 0.0, %v2159
        %2161 = vdwg.mxu0
        %v2162 = vadd.f32 %v2077, %v2143
        %v2163 = vadd.f32 %v2078, %v2145
        %v2164 = vadd.f32 %v2079, %v2148
        %v2165 = vadd.f32 %v2080, %v2150
        %v2166 = vadd.f32 %v2081, %v2153
        %v2167 = vadd.f32 %v2082, %v2155
        %v2168 = vadd.f32 %v2083, %v2158
        %v2169 = vadd.f32 %v2084, %v2160
        %v2170 = vld [vmem:[#allocation3 + $0x11] sm:$0xff]
        %v2171 = vld [vmem:[#allocation3 + $0x19] sm:$0xff]
        %v2172 = vld [vmem:[#allocation3 + $0x21] sm:$0xff]
        %v2173 = vld [vmem:[#allocation3 + $0x29] sm:$0xff]
        %v2174 = vld [vmem:[#allocation3 + $0x31] sm:$0xff]
        %v2175 = vld [vmem:[#allocation3 + $0x39] sm:$0xff]
        %v2176 = vld [vmem:[#allocation3 + $0x41] sm:$0xff]
        %v2177 = vld [vmem:[#allocation3 + $0x49] sm:$0xff]
        %v2178 = vmul.f32 %v2170, %v957
        %v2179 = vmul.f32 %v2171, %v962
        %v2180 = vmul.f32 %v2172, %v967
        %v2181 = vmul.f32 %v2173, %v972
        %v2182 = vmul.f32 %v2174, %v977
        %v2183 = vmul.f32 %v2175, %v982
        %v2184 = vmul.f32 %v2176, %v987
        %v2185 = vmul.f32 %v2177, %v992
        %v2186 = vld [vmem:[%s5 + $0x78] sm:$0xf]
        %v2187 = vld [vmem:[%s5 + $0x7c] sm:$0xf]
        %v2188 = vld [vmem:[%s5 + $0x80] sm:$0xf]
        %v2189 = vld [vmem:[%s5 + $0x84] sm:$0xf]
        %v2190 = vld [vmem:[%s5 + $0x88] sm:$0xf]
        %v2191 = vld [vmem:[%s5 + $0x8c] sm:$0xf]
        %v2192 = vpack.c.bf16 %v2179, %v2178
        %v2193 = vpack.c.bf16 %v2181, %v2180
        %v2194 = vpack.c.bf16 %v2183, %v2182
        %v2195 = vpack.c.bf16 %v2185, %v2184
        %v2202 = vunpack.c.l.b16 %v2186
        %v2203 = vunpack.c.l.b16 %v2187
        %v2204 = vunpack.c.l.b16 %v2188
        %v2205 = vunpack.c.l.b16 %v2189
        %v2206 = vunpack.c.l.b16 %v2190
        %v2207 = vunpack.c.l.b16 %v2191
        %v2208 = vpack.c.b16 %v2203, %v2202
        %v2209 = vpack.c.b16 %v2205, %v2204
        %v2210 = vpack.c.b16 %v2207, %v2206
        %v2215 = vsel %vm431, %v2192, 0
        %v2218 = vsel %vm431, %v2193, 0
        %v2221 = vsel %vm431, %v2194, 0
        %v2224 = vsel %vm431, %v2195, 0
        %2226 = vmatpush.bf16.msra.mxu0 0
        %2227 = vmatpush.bf16.msra.mxu0 0
        %2228 = vmatpush.bf16.msra.mxu0 0
        %2229 = vmatpush.bf16.msra.mxu0 0
        %2230 = vmatpush.bf16.msra.mxu0 0
        %2231 = vmatpush.bf16.msra.mxu0 %v2210
        %2232 = vmatpush.bf16.msra.mxu0 %v2209
        %2233 = vmatpush.bf16.msra.mxu0 %v2208
        %2234 = vmatmul.bf16.gmra.mxu0 %v2215
        %v2235 = vpop.f32.mrf.mxu0
        %v2236 = vadd.f32 0.0, %v2235
        %v2237 = vpop.f32.mrf.mxu0
        %v2238 = vadd.f32 0.0, %v2237
        %2239 = vmatmul.bf16.gmra.mxu0 %v2218
        %v2240 = vpop.f32.mrf.mxu0
        %v2241 = vadd.f32 0.0, %v2240
        %v2242 = vpop.f32.mrf.mxu0
        %v2243 = vadd.f32 0.0, %v2242
        %2244 = vmatmul.bf16.gmra.mxu0 %v2221
        %v2245 = vpop.f32.mrf.mxu0
        %v2246 = vadd.f32 0.0, %v2245
        %v2247 = vpop.f32.mrf.mxu0
        %v2248 = vadd.f32 0.0, %v2247
        %2249 = vmatmul.bf16.gmra.mxu0 %v2224
        %v2250 = vpop.f32.mrf.mxu0
        %v2251 = vadd.f32 0.0, %v2250
        %v2252 = vpop.f32.mrf.mxu0
        %v2253 = vadd.f32 0.0, %v2252
        %2254 = vdwg.mxu0
        %v2255 = vadd.f32 %v2162, %v2236
        %v2256 = vadd.f32 %v2163, %v2238
        %v2257 = vadd.f32 %v2164, %v2241
        %v2258 = vadd.f32 %v2165, %v2243
        %v2259 = vadd.f32 %v2166, %v2246
        %v2260 = vadd.f32 %v2167, %v2248
        %v2261 = vadd.f32 %v2168, %v2251
        %v2262 = vadd.f32 %v2169, %v2253
        %v2263 = vld [vmem:[#allocation3 + $0x17] sm:$0xff]
        %v2264 = vld [vmem:[#allocation3 + $0x1f] sm:$0xff]
        %v2265 = vld [vmem:[#allocation3 + $0x27] sm:$0xff]
        %v2266 = vld [vmem:[#allocation3 + $0x2f] sm:$0xff]
        %v2267 = vld [vmem:[#allocation3 + $0x37] sm:$0xff]
        %v2268 = vld [vmem:[#allocation3 + $0x3f] sm:$0xff]
        %v2269 = vld [vmem:[#allocation3 + $0x47] sm:$0xff]
        %v2270 = vld [vmem:[#allocation3 + $0x4f] sm:$0xff]
        %v2271 = vmul.f32 %v2263, %v739
        %v2272 = vmul.f32 %v2264, %v744
        %v2273 = vmul.f32 %v2265, %v749
        %v2274 = vmul.f32 %v2266, %v754
        %v2275 = vmul.f32 %v2267, %v759
        %v2276 = vmul.f32 %v2268, %v764
        %v2277 = vmul.f32 %v2269, %v769
        %v2278 = vmul.f32 %v2270, %v774
        %v2279 = vld [vmem:[%s5 + $0x90] sm:$0xf]
        %v2280 = vld [vmem:[%s5 + $0x94] sm:$0xf]
        %v2281 = vld [vmem:[%s5 + $0x98] sm:$0xf]
        %v2282 = vld [vmem:[%s5 + $0x9c] sm:$0xf]
        %v2283 = vld [vmem:[%s5 + $0xa0] sm:$0xf]
        %v2284 = vld [vmem:[%s5 + $0xa4] sm:$0xf]
        %v2285 = vpack.c.bf16 %v2272, %v2271
        %v2286 = vpack.c.bf16 %v2274, %v2273
        %v2287 = vpack.c.bf16 %v2276, %v2275
        %v2288 = vpack.c.bf16 %v2278, %v2277
        %v2295 = vunpack.c.l.b16 %v2279
        %v2296 = vunpack.c.l.b16 %v2280
        %v2297 = vunpack.c.l.b16 %v2281
        %v2298 = vunpack.c.l.b16 %v2282
        %v2299 = vunpack.c.l.b16 %v2283
        %v2300 = vunpack.c.l.b16 %v2284
        %v2301 = vpack.c.b16 %v2296, %v2295
        %v2302 = vpack.c.b16 %v2298, %v2297
        %v2303 = vpack.c.b16 %v2300, %v2299
        %v2308 = vsel %vm431, %v2285, 0
        %v2311 = vsel %vm431, %v2286, 0
        %v2314 = vsel %vm431, %v2287, 0
        %v2317 = vsel %vm431, %v2288, 0
        %2319 = vmatpush.bf16.msra.mxu0 0
        %2320 = vmatpush.bf16.msra.mxu0 0
        %2321 = vmatpush.bf16.msra.mxu0 0
        %2322 = vmatpush.bf16.msra.mxu0 0
        %2323 = vmatpush.bf16.msra.mxu0 0
        %2324 = vmatpush.bf16.msra.mxu0 %v2303
        %2325 = vmatpush.bf16.msra.mxu0 %v2302
        %2326 = vmatpush.bf16.msra.mxu0 %v2301
        %2327 = vmatmul.bf16.gmra.mxu0 %v2308
        %v2328 = vpop.f32.mrf.mxu0
        %v2329 = vadd.f32 0.0, %v2328
        %v2330 = vpop.f32.mrf.mxu0
        %v2331 = vadd.f32 0.0, %v2330
        %2332 = vmatmul.bf16.gmra.mxu0 %v2311
        %v2333 = vpop.f32.mrf.mxu0
        %v2334 = vadd.f32 0.0, %v2333
        %v2335 = vpop.f32.mrf.mxu0
        %v2336 = vadd.f32 0.0, %v2335
        %2337 = vmatmul.bf16.gmra.mxu0 %v2314
        %v2338 = vpop.f32.mrf.mxu0
        %v2339 = vadd.f32 0.0, %v2338
        %v2340 = vpop.f32.mrf.mxu0
        %v2341 = vadd.f32 0.0, %v2340
        %2342 = vmatmul.bf16.gmra.mxu0 %v2317
        %v2343 = vpop.f32.mrf.mxu0
        %v2344 = vadd.f32 0.0, %v2343
        %v2345 = vpop.f32.mrf.mxu0
        %v2346 = vadd.f32 0.0, %v2345
        %2347 = vdwg.mxu0
        %v2348 = vadd.f32 %v2255, %v2329
        %v2349 = vadd.f32 %v2256, %v2331
        %v2350 = vadd.f32 %v2257, %v2334
        %v2351 = vadd.f32 %v2258, %v2336
        %v2352 = vadd.f32 %v2259, %v2339
        %v2353 = vadd.f32 %v2260, %v2341
        %v2354 = vadd.f32 %v2261, %v2344
        %v2355 = vadd.f32 %v2262, %v2346
        %v2356 = vld [vmem:[#allocation3 + $0x18] sm:$0xff]
        %v2357 = vld [vmem:[#allocation3 + $0x20] sm:$0xff]
        %v2358 = vld [vmem:[#allocation3 + $0x28] sm:$0xff]
        %v2359 = vld [vmem:[#allocation3 + $0x30] sm:$0xff]
        %v2360 = vld [vmem:[#allocation3 + $0x38] sm:$0xff]
        %v2361 = vld [vmem:[#allocation3 + $0x40] sm:$0xff]
        %v2362 = vld [vmem:[#allocation3 + $0x48] sm:$0xff]
        %v2363 = vld [vmem:[#allocation3 + $0x50] sm:$0xff]
        %v2364 = vld [vmem:[%s5 + $0xa8] sm:$0xf]
        %v2365 = vld [vmem:[%s5 + $0xac] sm:$0xf]
        %v2366 = vld [vmem:[%s5 + $0xb0] sm:$0xf]
        %v2367 = vld [vmem:[%s5 + $0xb4] sm:$0xf]
        %v2368 = vld [vmem:[%s5 + $0xb8] sm:$0xf]
        %v2369 = vld [vmem:[%s5 + $0xbc] sm:$0xf]
        %v2370 = vpack.c.bf16 %v2357, %v2356
        %v2371 = vpack.c.bf16 %v2359, %v2358
        %v2372 = vpack.c.bf16 %v2361, %v2360
        %v2373 = vpack.c.bf16 %v2363, %v2362
        %v2380 = vunpack.c.l.b16 %v2364
        %v2381 = vunpack.c.l.b16 %v2365
        %v2382 = vunpack.c.l.b16 %v2366
        %v2383 = vunpack.c.l.b16 %v2367
        %v2384 = vunpack.c.l.b16 %v2368
        %v2385 = vunpack.c.l.b16 %v2369
        %v2386 = vpack.c.b16 %v2381, %v2380
        %v2387 = vpack.c.b16 %v2383, %v2382
        %v2388 = vpack.c.b16 %v2385, %v2384
        %v2393 = vsel %vm431, %v2370, 0
        %v2396 = vsel %vm431, %v2371, 0
        %v2399 = vsel %vm431, %v2372, 0
        %v2402 = vsel %vm431, %v2373, 0
        %2404 = vmatpush.bf16.msra.mxu0 0
        %2405 = vmatpush.bf16.msra.mxu0 0
        %2406 = vmatpush.bf16.msra.mxu0 0
        %2407 = vmatpush.bf16.msra.mxu0 0
        %2408 = vmatpush.bf16.msra.mxu0 0
        %2409 = vmatpush.bf16.msra.mxu0 %v2388
        %2410 = vmatpush.bf16.msra.mxu0 %v2387
        %2411 = vmatpush.bf16.msra.mxu0 %v2386
        %2412 = vmatmul.bf16.gmra.mxu0 %v2393
        %v2413 = vpop.f32.mrf.mxu0
        %v2414 = vadd.f32 0.0, %v2413
        %v2415 = vpop.f32.mrf.mxu0
        %v2416 = vadd.f32 0.0, %v2415
        %2417 = vmatmul.bf16.gmra.mxu0 %v2396
        %v2418 = vpop.f32.mrf.mxu0
        %v2419 = vadd.f32 0.0, %v2418
        %v2420 = vpop.f32.mrf.mxu0
        %v2421 = vadd.f32 0.0, %v2420
        %2422 = vmatmul.bf16.gmra.mxu0 %v2399
        %v2423 = vpop.f32.mrf.mxu0
        %v2424 = vadd.f32 0.0, %v2423
        %v2425 = vpop.f32.mrf.mxu0
        %v2426 = vadd.f32 0.0, %v2425
        %2427 = vmatmul.bf16.gmra.mxu0 %v2402
        %v2428 = vpop.f32.mrf.mxu0
        %v2429 = vadd.f32 0.0, %v2428
        %v2430 = vpop.f32.mrf.mxu0
        %v2431 = vadd.f32 0.0, %v2430
        %2432 = vdwg.mxu0
        %v2433 = vadd.f32 %v2348, %v2414
        %v2434 = vadd.f32 %v2349, %v2416
        %v2435 = vadd.f32 %v2350, %v2419
        %v2436 = vadd.f32 %v2351, %v2421
        %v2437 = vadd.f32 %v2352, %v2424
        %v2438 = vadd.f32 %v2353, %v2426
        %v2439 = vadd.f32 %v2354, %v2429
        %v2440 = vadd.f32 %v2355, %v2431
        %v2441 = vld [vmem:[#allocation3 + $0x19] sm:$0xff]
        %v2442 = vld [vmem:[#allocation3 + $0x21] sm:$0xff]
        %v2443 = vld [vmem:[#allocation3 + $0x29] sm:$0xff]
        %v2444 = vld [vmem:[#allocation3 + $0x31] sm:$0xff]
        %v2445 = vld [vmem:[#allocation3 + $0x39] sm:$0xff]
        %v2446 = vld [vmem:[#allocation3 + $0x41] sm:$0xff]
        %v2447 = vld [vmem:[#allocation3 + $0x49] sm:$0xff]
        %v2448 = vld [vmem:[#allocation3 + $0x51] sm:$0xff]
        %v2449 = vmul.f32 %v2441, %v957
        %v2450 = vmul.f32 %v2442, %v962
        %v2451 = vmul.f32 %v2443, %v967
        %v2452 = vmul.f32 %v2444, %v972
        %v2453 = vmul.f32 %v2445, %v977
        %v2454 = vmul.f32 %v2446, %v982
        %v2455 = vmul.f32 %v2447, %v987
        %v2456 = vmul.f32 %v2448, %v992
        %v2457 = vld [vmem:[%s5 + $0xc0] sm:$0xf]
        %v2458 = vld [vmem:[%s5 + $0xc4] sm:$0xf]
        %v2459 = vld [vmem:[%s5 + $0xc8] sm:$0xf]
        %v2460 = vld [vmem:[%s5 + $0xcc] sm:$0xf]
        %v2461 = vld [vmem:[%s5 + $0xd0] sm:$0xf]
        %v2462 = vld [vmem:[%s5 + $0xd4] sm:$0xf]
        %v2463 = vpack.c.bf16 %v2450, %v2449
        %v2464 = vpack.c.bf16 %v2452, %v2451
        %v2465 = vpack.c.bf16 %v2454, %v2453
        %v2466 = vpack.c.bf16 %v2456, %v2455
        %v2473 = vunpack.c.l.b16 %v2457
        %v2474 = vunpack.c.l.b16 %v2458
        %v2475 = vunpack.c.l.b16 %v2459
        %v2476 = vunpack.c.l.b16 %v2460
        %v2477 = vunpack.c.l.b16 %v2461
        %v2478 = vunpack.c.l.b16 %v2462
        %v2479 = vpack.c.b16 %v2474, %v2473
        %v2480 = vpack.c.b16 %v2476, %v2475
        %v2481 = vpack.c.b16 %v2478, %v2477
        %v2486 = vsel %vm431, %v2463, 0
        %v2489 = vsel %vm431, %v2464, 0
        %v2492 = vsel %vm431, %v2465, 0
        %v2495 = vsel %vm431, %v2466, 0
        %2497 = vmatpush.bf16.msra.mxu0 0
        %2498 = vmatpush.bf16.msra.mxu0 0
        %2499 = vmatpush.bf16.msra.mxu0 0
        %2500 = vmatpush.bf16.msra.mxu0 0
        %2501 = vmatpush.bf16.msra.mxu0 0
        %2502 = vmatpush.bf16.msra.mxu0 %v2481
        %2503 = vmatpush.bf16.msra.mxu0 %v2480
        %2504 = vmatpush.bf16.msra.mxu0 %v2479
        %2505 = vmatmul.bf16.gmra.mxu0 %v2486
        %v2506 = vpop.f32.mrf.mxu0
        %v2507 = vadd.f32 0.0, %v2506
        %v2508 = vpop.f32.mrf.mxu0
        %v2509 = vadd.f32 0.0, %v2508
        %2510 = vmatmul.bf16.gmra.mxu0 %v2489
        %v2511 = vpop.f32.mrf.mxu0
        %v2512 = vadd.f32 0.0, %v2511
        %v2513 = vpop.f32.mrf.mxu0
        %v2514 = vadd.f32 0.0, %v2513
        %2515 = vmatmul.bf16.gmra.mxu0 %v2492
        %v2516 = vpop.f32.mrf.mxu0
        %v2517 = vadd.f32 0.0, %v2516
        %v2518 = vpop.f32.mrf.mxu0
        %v2519 = vadd.f32 0.0, %v2518
        %2520 = vmatmul.bf16.gmra.mxu0 %v2495
        %v2521 = vpop.f32.mrf.mxu0
        %v2522 = vadd.f32 0.0, %v2521
        %v2523 = vpop.f32.mrf.mxu0
        %v2524 = vadd.f32 0.0, %v2523
        %2525 = vdwg.mxu0
        %v2526 = vadd.f32 %v2433, %v2507
        %v2527 = vadd.f32 %v2434, %v2509
        %v2528 = vadd.f32 %v2435, %v2512
        %v2529 = vadd.f32 %v2436, %v2514
        %v2530 = vadd.f32 %v2437, %v2517
        %v2531 = vadd.f32 %v2438, %v2519
        %v2532 = vadd.f32 %v2439, %v2522
        %v2533 = vadd.f32 %v2440, %v2524
        %v2535 = vperm.slane %v1736, 0
        %v2537 = vadd.f32 %v2526, %v2535
        %v2538 = vadd.f32 %v2527, %v2535
        %v2539 = vadd.f32 %v2528, %v2535
        %v2540 = vadd.f32 %v2529, %v2535
        %v2541 = vadd.f32 %v2530, %v2535
        %v2542 = vadd.f32 %v2531, %v2535
        %v2543 = vadd.f32 %v2532, %v2535
        %v2544 = vadd.f32 %v2533, %v2535
        %v2545 = vmax.f32 %v2537, 0.0
        %v2546 = vmax.f32 %v2538, 0.0
        %v2547 = vmax.f32 %v2539, 0.0
        %v2548 = vmax.f32 %v2540, 0.0
        %v2549 = vmax.f32 %v2541, 0.0
        %v2550 = vmax.f32 %v2542, 0.0
        %v2551 = vmax.f32 %v2543, 0.0
        %v2552 = vmax.f32 %v2544, 0.0
        %2561 = vrot.lane.b32.xlu0 %v2545, 32
        %v2562 = vpop.permute.xlu0 %2561
        %2563 = vrot.lane.b32.xlu0 %v2546, 32
        %v2564 = vpop.permute.xlu0 %2563
        %2565 = vrot.lane.b32.xlu0 %v2547, 32
        %v2566 = vpop.permute.xlu0 %2565
        %2567 = vrot.lane.b32.xlu0 %v2548, 32
        %v2568 = vpop.permute.xlu0 %2567
        %2569 = vrot.lane.b32.xlu0 %v2549, 32
        %v2570 = vpop.permute.xlu0 %2569
        %2571 = vrot.lane.b32.xlu0 %v2550, 32
        %v2572 = vpop.permute.xlu0 %2571
        %2573 = vrot.lane.b32.xlu0 %v2551, 32
        %v2574 = vpop.permute.xlu0 %2573
        %2575 = vrot.lane.b32.xlu0 %v2552, 32
        %v2576 = vpop.permute.xlu0 %2575
        %2593 = vrot.lane.b32.xlu0 %v711, 32
        %v2594 = vpop.permute.xlu0 %2593
        %2595 = vrot.lane.b32.xlu0 %v712, 32
        %v2596 = vpop.permute.xlu0 %2595
        %2597 = vrot.lane.b32.xlu0 %v713, 32
        %v2598 = vpop.permute.xlu0 %2597
        %2599 = vrot.lane.b32.xlu0 %v714, 32
        %v2600 = vpop.permute.xlu0 %2599
        %2601 = vrot.lane.b32.xlu0 %v715, 32
        %v2602 = vpop.permute.xlu0 %2601
        %2603 = vrot.lane.b32.xlu0 %v716, 32
        %v2604 = vpop.permute.xlu0 %2603
        %2605 = vrot.lane.b32.xlu0 %v717, 32
        %v2606 = vpop.permute.xlu0 %2605
        %2607 = vrot.lane.b32.xlu0 %v718, 32
        %v2608 = vpop.permute.xlu0 %2607
        %vm2617 = vcmask 261120
        %v2618 = vsel %vm2617, %v1688, %v2562
        %v2619 = vsel %vm2617, %v1689, %v2564
        %v2620 = vsel %vm2617, %v1690, %v2566
        %v2621 = vsel %vm2617, %v1691, %v2568
        %v2622 = vsel %vm2617, %v1692, %v2570
        %v2623 = vsel %vm2617, %v1693, %v2572
        %v2624 = vsel %vm2617, %v1694, %v2574
        %v2625 = vsel %vm2617, %v1695, %v2576
        %vm2626 = vcmask 785408
        %v2627 = vsel %vm2626, %v2618, %v2594
        %v2628 = vsel %vm2626, %v2619, %v2596
        %v2629 = vsel %vm2626, %v2620, %v2598
        %v2630 = vsel %vm2626, %v2621, %v2600
        %v2631 = vsel %vm2626, %v2622, %v2602
        %v2632 = vsel %vm2626, %v2623, %v2604
        %v2633 = vsel %vm2626, %v2624, %v2606
        %v2634 = vsel %vm2626, %v2625, %v2608
        %v2635 = vpack.c.bf16 %v2628, %v2627
        %v2636 = vpack.c.bf16 %v2630, %v2629
        %v2637 = vpack.c.bf16 %v2632, %v2631
        %v2638 = vpack.c.bf16 %v2634, %v2633
        %v2639 = vld [vmem:[%s7] sm:$0xff]
        %v2640 = vld [vmem:[%s7 + $0x8] sm:$0xf]
        %v2641 = vld [vmem:[%s7 + $0xc] sm:$0xff]
        %v2642 = vld [vmem:[%s7 + $0x14] sm:$0xf]
        %v2643 = vld [vmem:[%s7 + $0x18] sm:$0xff]
        %v2644 = vld [vmem:[%s7 + $0x20] sm:$0xf]
        %v2645 = vld [vmem:[%s7 + $0x24] sm:$0xff]
        %v2646 = vld [vmem:[%s7 + $0x2c] sm:$0xf]
        %v2647 = vld [vmem:[%s7 + $0x30] sm:$0xff]
        %v2648 = vld [vmem:[%s7 + $0x38] sm:$0xf]
        %v2649 = vld [vmem:[%s7 + $0x3c] sm:$0xff]
        %v2650 = vld [vmem:[%s7 + $0x44] sm:$0xf]
        %v2651 = vld [vmem:[%s7 + $0x48] sm:$0xff]
        %v2652 = vld [vmem:[%s7 + $0x50] sm:$0xf]
        %v2653 = vld [vmem:[%s7 + $0x54] sm:$0xff]
        %v2654 = vld [vmem:[%s7 + $0x5c] sm:$0xf]
        %v2655 = vld [vmem:[%s7 + $0x60] sm:$0xff]
        %v2656 = vld [vmem:[%s7 + $0x68] sm:$0xf]
        %v2657 = vld [vmem:[%s7 + $0x6c] sm:$0xff]
        %v2658 = vld [vmem:[%s7 + $0x74] sm:$0xf]
        %v2659 = vld [vmem:[%s7 + $0x78] sm:$0xff]
        %v2660 = vld [vmem:[%s7 + $0x80] sm:$0xf]
        %v2661 = vld [vmem:[%s7 + $0x84] sm:$0xff]
        %v2662 = vld [vmem:[%s7 + $0x8c] sm:$0xf]
        %v2663 = vld [vmem:[%s7 + $0x90] sm:$0xff]
        %v2664 = vld [vmem:[%s7 + $0x98] sm:$0xf]
        %v2665 = vld [vmem:[%s7 + $0x9c] sm:$0xff]
        %v2666 = vld [vmem:[%s7 + $0xa4] sm:$0xf]
        %v2667 = vld [vmem:[%s7 + $0xa8] sm:$0xff]
        %v2668 = vld [vmem:[%s7 + $0xb0] sm:$0xf]
        %v2669 = vld [vmem:[%s7 + $0xb4] sm:$0xff]
        %v2670 = vld [vmem:[%s7 + $0xbc] sm:$0xf]
        %v2671 = vld [vmem:[%s8] sm:$0x7]
        %v2673 = vperm.slane %v2671, 0
        %v2674 = vperm.slane %v2671, 1
        %v2675 = vperm.slane %v2671, 2
        %v2711 = vunpack.c.l.b16 %v2639
        %v2712 = vunpack.c.h.b16 %v2639
        %v2713 = vunpack.c.l.b16 %v2640
        %v2714 = vunpack.c.l.b16 %v2641
        %v2715 = vunpack.c.h.b16 %v2641
        %v2716 = vunpack.c.l.b16 %v2642
        %v2717 = vunpack.c.l.b16 %v2643
        %v2718 = vunpack.c.h.b16 %v2643
        %v2719 = vunpack.c.l.b16 %v2644
        %v2720 = vunpack.c.l.b16 %v2645
        %v2721 = vunpack.c.h.b16 %v2645
        %v2722 = vunpack.c.l.b16 %v2646
        %v2723 = vunpack.c.l.b16 %v2647
        %v2724 = vunpack.c.h.b16 %v2647
        %v2725 = vunpack.c.l.b16 %v2648
        %v2726 = vunpack.c.l.b16 %v2649
        %v2727 = vunpack.c.h.b16 %v2649
        %v2728 = vunpack.c.l.b16 %v2650
        %v2729 = vunpack.c.l.b16 %v2651
        %v2730 = vunpack.c.h.b16 %v2651
        %v2731 = vunpack.c.l.b16 %v2652
        %v2732 = vunpack.c.l.b16 %v2653
        %v2733 = vunpack.c.h.b16 %v2653
        %v2734 = vunpack.c.l.b16 %v2654
        %v2735 = vunpack.c.l.b16 %v2655
        %v2736 = vunpack.c.h.b16 %v2655
        %v2737 = vunpack.c.l.b16 %v2656
        %v2738 = vunpack.c.l.b16 %v2657
        %v2739 = vunpack.c.h.b16 %v2657
        %v2740 = vunpack.c.l.b16 %v2658
        %v2741 = vunpack.c.l.b16 %v2659
        %v2742 = vunpack.c.h.b16 %v2659
        %v2743 = vunpack.c.l.b16 %v2660
        %v2744 = vunpack.c.l.b16 %v2661
        %v2745 = vunpack.c.h.b16 %v2661
        %v2746 = vunpack.c.l.b16 %v2662
        %v2747 = vunpack.c.l.b16 %v2663
        %v2748 = vunpack.c.h.b16 %v2663
        %v2749 = vunpack.c.l.b16 %v2664
        %v2750 = vunpack.c.l.b16 %v2665
        %v2751 = vunpack.c.h.b16 %v2665
        %v2752 = vunpack.c.l.b16 %v2666
        %v2753 = vunpack.c.l.b16 %v2667
        %v2754 = vunpack.c.h.b16 %v2667
        %v2755 = vunpack.c.l.b16 %v2668
        %v2756 = vunpack.c.l.b16 %v2669
        %v2757 = vunpack.c.h.b16 %v2669
        %v2758 = vunpack.c.l.b16 %v2670
        %v2759 = vpack.c.b16 %v2714, %v2711
        %v2760 = vpack.c.b16 %v2715, %v2712
        %v2761 = vpack.c.b16 %v2716, %v2713
        %v2762 = vpack.c.b16 %v2720, %v2717
        %v2763 = vpack.c.b16 %v2721, %v2718
        %v2764 = vpack.c.b16 %v2722, %v2719
        %v2765 = vpack.c.b16 %v2726, %v2723
        %v2766 = vpack.c.b16 %v2727, %v2724
        %v2767 = vpack.c.b16 %v2728, %v2725
        %v2768 = vpack.c.b16 %v2732, %v2729
        %v2769 = vpack.c.b16 %v2733, %v2730
        %v2770 = vpack.c.b16 %v2734, %v2731
        %v2771 = vpack.c.b16 %v2738, %v2735
        %v2772 = vpack.c.b16 %v2739, %v2736
        %v2773 = vpack.c.b16 %v2740, %v2737
        %v2774 = vpack.c.b16 %v2744, %v2741
        %v2775 = vpack.c.b16 %v2745, %v2742
        %v2776 = vpack.c.b16 %v2746, %v2743
        %v2777 = vpack.c.b16 %v2750, %v2747
        %v2778 = vpack.c.b16 %v2751, %v2748
        %v2779 = vpack.c.b16 %v2752, %v2749
        %v2780 = vpack.c.b16 %v2756, %v2753
        %v2781 = vpack.c.b16 %v2757, %v2754
        %v2782 = vpack.c.b16 %v2758, %v2755
        %2807 = vmatpush.bf16.msra.mxu0 %v2780
        %2808 = vmatpush.bf16.msra.mxu0 %v2777
        %2809 = vmatpush.bf16.msra.mxu0 %v2774
        %2810 = vmatpush.bf16.msra.mxu0 %v2771
        %2811 = vmatpush.bf16.msra.mxu0 %v2768
        %2812 = vmatpush.bf16.msra.mxu0 %v2765
        %2813 = vmatpush.bf16.msra.mxu0 %v2762
        %2814 = vmatpush.bf16.msra.mxu0 %v2759
        %2815 = vmatmul.bf16.gmra.mxu0 %v2635
        %v2816 = vpop.f32.mrf.mxu0
        %v2817 = vadd.f32 %v2673, %v2816
        %v2818 = vpop.f32.mrf.mxu0
        %v2819 = vadd.f32 %v2673, %v2818
        %2820 = vmatmul.bf16.gmra.mxu0 %v2636
        %v2821 = vpop.f32.mrf.mxu0
        %v2822 = vadd.f32 %v2673, %v2821
        %v2823 = vpop.f32.mrf.mxu0
        %v2824 = vadd.f32 %v2673, %v2823
        %2825 = vmatmul.bf16.gmra.mxu0 %v2637
        %v2826 = vpop.f32.mrf.mxu0
        %v2827 = vadd.f32 %v2673, %v2826
        %v2828 = vpop.f32.mrf.mxu0
        %v2829 = vadd.f32 %v2673, %v2828
        %2830 = vmatmul.bf16.gmra.mxu0 %v2638
        %v2831 = vpop.f32.mrf.mxu0
        %v2832 = vadd.f32 %v2673, %v2831
        %v2833 = vpop.f32.mrf.mxu0
        %v2834 = vadd.f32 %v2673, %v2833
        %2835 = vdwg.mxu0
        %2836 = vmatpush.bf16.msra.mxu0 %v2781
        %2837 = vmatpush.bf16.msra.mxu0 %v2778
        %2838 = vmatpush.bf16.msra.mxu0 %v2775
        %2839 = vmatpush.bf16.msra.mxu0 %v2772
        %2840 = vmatpush.bf16.msra.mxu0 %v2769
        %2841 = vmatpush.bf16.msra.mxu0 %v2766
        %2842 = vmatpush.bf16.msra.mxu0 %v2763
        %2843 = vmatpush.bf16.msra.mxu0 %v2760
        %2844 = vmatmul.bf16.gmra.mxu0 %v2635
        %v2845 = vpop.f32.mrf.mxu0
        %v2846 = vadd.f32 %v2674, %v2845
        %v2847 = vpop.f32.mrf.mxu0
        %v2848 = vadd.f32 %v2674, %v2847
        %2849 = vmatmul.bf16.gmra.mxu0 %v2636
        %v2850 = vpop.f32.mrf.mxu0
        %v2851 = vadd.f32 %v2674, %v2850
        %v2852 = vpop.f32.mrf.mxu0
        %v2853 = vadd.f32 %v2674, %v2852
        %2854 = vmatmul.bf16.gmra.mxu0 %v2637
        %v2855 = vpop.f32.mrf.mxu0
        %v2856 = vadd.f32 %v2674, %v2855
        %v2857 = vpop.f32.mrf.mxu0
        %v2858 = vadd.f32 %v2674, %v2857
        %2859 = vmatmul.bf16.gmra.mxu0 %v2638
        %v2860 = vpop.f32.mrf.mxu0
        %v2861 = vadd.f32 %v2674, %v2860
        %v2862 = vpop.f32.mrf.mxu0
        %v2863 = vadd.f32 %v2674, %v2862
        %2864 = vdwg.mxu0
        %2865 = vmatpush.bf16.msra.mxu0 %v2782
        %2866 = vmatpush.bf16.msra.mxu0 %v2779
        %2867 = vmatpush.bf16.msra.mxu0 %v2776
        %2868 = vmatpush.bf16.msra.mxu0 %v2773
        %2869 = vmatpush.bf16.msra.mxu0 %v2770
        %2870 = vmatpush.bf16.msra.mxu0 %v2767
        %2871 = vmatpush.bf16.msra.mxu0 %v2764
        %2872 = vmatpush.bf16.msra.mxu0 %v2761
        %2873 = vmatmul.bf16.gmra.mxu0 %v2635
        %v2874 = vpop.f32.mrf.mxu0
        %v2875 = vadd.f32 %v2675, %v2874
        %v2876 = vpop.f32.mrf.mxu0
        %v2877 = vadd.f32 %v2675, %v2876
        %2878 = vmatmul.bf16.gmra.mxu0 %v2636
        %v2879 = vpop.f32.mrf.mxu0
        %v2880 = vadd.f32 %v2675, %v2879
        %v2881 = vpop.f32.mrf.mxu0
        %v2882 = vadd.f32 %v2675, %v2881
        %2883 = vmatmul.bf16.gmra.mxu0 %v2637
        %v2884 = vpop.f32.mrf.mxu0
        %v2885 = vadd.f32 %v2675, %v2884
        %v2886 = vpop.f32.mrf.mxu0
        %v2887 = vadd.f32 %v2675, %v2886
        %2888 = vmatmul.bf16.gmra.mxu0 %v2638
        %v2889 = vpop.f32.mrf.mxu0
        %v2890 = vadd.f32 %v2675, %v2889
        %v2891 = vpop.f32.mrf.mxu0
        %v2892 = vadd.f32 %v2675, %v2891
        %2893 = vdwg.mxu0
        %v2894 = vmul.f32 %v2817, 0.17
        %v2895 = vmul.f32 %v2846, 0.17
        %v2896 = vmul.f32 %v2875, 0.17
        %v2897 = vmul.f32 %v2819, 0.17
        %v2898 = vmul.f32 %v2848, 0.17
        %v2899 = vmul.f32 %v2877, 0.17
        %v2900 = vmul.f32 %v2822, 0.17
        %v2901 = vmul.f32 %v2851, 0.17
        %v2902 = vmul.f32 %v2880, 0.17
        %v2903 = vmul.f32 %v2824, 0.17
        %v2904 = vmul.f32 %v2853, 0.17
        %v2905 = vmul.f32 %v2882, 0.17
        %v2906 = vmul.f32 %v2827, 0.17
        %v2907 = vmul.f32 %v2856, 0.17
        %v2908 = vmul.f32 %v2885, 0.17
        %v2909 = vmul.f32 %v2829, 0.17
        %v2910 = vmul.f32 %v2858, 0.17
        %v2911 = vmul.f32 %v2887, 0.17
        %v2912 = vmul.f32 %v2832, 0.17
        %v2913 = vmul.f32 %v2861, 0.17
        %v2914 = vmul.f32 %v2890, 0.17
        %v2915 = vmul.f32 %v2834, 0.17
        %v2916 = vmul.f32 %v2863, 0.17
        %v2917 = vmul.f32 %v2892, 0.17
        %v2918 = vadd.f32 %v2894, %v386
        %v2919 = vadd.f32 %v2895, %v387
        %v2920 = vadd.f32 %v2896, %v388
        %v2921 = vadd.f32 %v2897, %v389
        %v2922 = vadd.f32 %v2898, %v390
        %v2923 = vadd.f32 %v2899, %v391
        %v2924 = vadd.f32 %v2900, %v392
        %v2925 = vadd.f32 %v2901, %v393
        %v2926 = vadd.f32 %v2902, %v394
        %v2927 = vadd.f32 %v2903, %v395
        %v2928 = vadd.f32 %v2904, %v396
        %v2929 = vadd.f32 %v2905, %v397
        %v2930 = vadd.f32 %v2906, %v398
        %v2931 = vadd.f32 %v2907, %v399
        %v2932 = vadd.f32 %v2908, %v400
        %v2933 = vadd.f32 %v2909, %v401
        %v2934 = vadd.f32 %v2910, %v402
        %v2935 = vadd.f32 %v2911, %v403
        %v2936 = vadd.f32 %v2912, %v404
        %v2937 = vadd.f32 %v2913, %v405
        %v2938 = vadd.f32 %v2914, %v406
        %v2939 = vadd.f32 %v2915, %v407
        %v2940 = vadd.f32 %v2916, %v408
        %v2941 = vadd.f32 %v2917, %v409
        %v2942 = vmax.f32 %v2918, 0.0
        %v2943 = vmax.f32 %v2919, 0.0
        %v2944 = vmax.f32 %v2920, 0.0
        %v2945 = vmax.f32 %v2921, 0.0
        %v2946 = vmax.f32 %v2922, 0.0
        %v2947 = vmax.f32 %v2923, 0.0
        %v2948 = vmax.f32 %v2924, 0.0
        %v2949 = vmax.f32 %v2925, 0.0
        %v2950 = vmax.f32 %v2926, 0.0
        %v2951 = vmax.f32 %v2927, 0.0
        %v2952 = vmax.f32 %v2928, 0.0
        %v2953 = vmax.f32 %v2929, 0.0
        %v2954 = vmax.f32 %v2930, 0.0
        %v2955 = vmax.f32 %v2931, 0.0
        %v2956 = vmax.f32 %v2932, 0.0
        %v2957 = vmax.f32 %v2933, 0.0
        %v2958 = vmax.f32 %v2934, 0.0
        %v2959 = vmax.f32 %v2935, 0.0
        %v2960 = vmax.f32 %v2936, 0.0
        %v2961 = vmax.f32 %v2937, 0.0
        %v2962 = vmax.f32 %v2938, 0.0
        %v2963 = vmax.f32 %v2939, 0.0
        %v2964 = vmax.f32 %v2940, 0.0
        %v2965 = vmax.f32 %v2941, 0.0
        %2966 = vst [vmem:[%s379] sm:$0xff] %v2942
        %2967 = vst [vmem:[%s379 + $0x8] sm:$0xff] %v2943
        %2968 = vst.msk [vmem:[%s379 + $0x10] sm:$0xff] %vm426, %v2944
        %2969 = vst [vmem:[%s379 + $0x18] sm:$0xff] %v2945
        %2970 = vst [vmem:[%s379 + $0x20] sm:$0xff] %v2946
        %2971 = vst.msk [vmem:[%s379 + $0x28] sm:$0xff] %vm426, %v2947
        %2972 = vst [vmem:[%s379 + $0x30] sm:$0xff] %v2948
        %2973 = vst [vmem:[%s379 + $0x38] sm:$0xff] %v2949
        %2974 = vst.msk [vmem:[%s379 + $0x40] sm:$0xff] %vm426, %v2950
        %2975 = vst [vmem:[%s379 + $0x48] sm:$0xff] %v2951
        %2976 = vst [vmem:[%s379 + $0x50] sm:$0xff] %v2952
        %2977 = vst.msk [vmem:[%s379 + $0x58] sm:$0xff] %vm426, %v2953
        %2978 = vst [vmem:[%s379 + $0x60] sm:$0xff] %v2954
        %2979 = vst [vmem:[%s379 + $0x68] sm:$0xff] %v2955
        %2980 = vst.msk [vmem:[%s379 + $0x70] sm:$0xff] %vm426, %v2956
        %2981 = vst [vmem:[%s379 + $0x78] sm:$0xff] %v2957
        %2982 = vst [vmem:[%s379 + $0x80] sm:$0xff] %v2958
        %2983 = vst.msk [vmem:[%s379 + $0x88] sm:$0xff] %vm426, %v2959
        %2984 = vst [vmem:[%s379 + $0x90] sm:$0xff] %v2960
        %2985 = vst [vmem:[%s379 + $0x98] sm:$0xff] %v2961
        %2986 = vst.msk [vmem:[%s379 + $0xa0] sm:$0xff] %vm426, %v2962
        %2987 = vst [vmem:[%s379 + $0xa8] sm:$0xff] %v2963
        %2988 = vst [vmem:[%s379 + $0xb0] sm:$0xff] %v2964
        %2989 = vst.msk [vmem:[%s379 + $0xb8] sm:$0xff] %vm426, %v2965
        %s2990 = sand.u32 %s269, 1
        %s2991 = scalar_lea.sflag [#allocation5], %s2990
        %s2992 = sand.u32 %s269, 1
        %s2993 = smul.addr %s2992, 192
        %s2994 = scalar_lea.vmem [#allocation4], %s2993
        // Predicated region
        $region65: #{tpu_custom_call.1} parent=63 // pred_check
          %p2995 = pneg %p279
        $region66: #{tpu_custom_call.1} parent=63 // pred_check_branch
          %2997 = sbr.rel (%p2995) target = $region68
        $region67: #{tpu_custom_call.1} parent=63 // pred_region
          %2999 = vsyncadd %s2991, 0
          %s3000 = smul.addr %s25, 24
          %s3001 = smul.addr %s3000, 8
          %s3002 = scalar_lea.hbm %s11, %s3001
          %s3003 = sshll.u32 %s2994, 4
          %s3004 = int_to_ptr.vmem [resolvable:$true] %s3003
          %s3005 = sshll.u32 %s3002, 4
          %s3006 = int_to_ptr.hbm [resolvable:$true] %s3005
          %3011 = dma.vmem_to_hbm [thread:$0]  %s3004, 3072, %s3006, %s2991, 384, 384, 24
        $region68: #{tpu_custom_call.1} parent=63 // pred_fallthru
          _
      $region64: #{tpu_custom_call.1} parent=5 // pred_fallthru
        _
      %p3012 = scmp.le.s32.totalorder 2, %s20
      // Predicated region
      $region69: #{tpu_custom_call.1} parent=5 // pred_check
        %p3013 = pneg %p3012
      $region70: #{tpu_custom_call.1} parent=5 // pred_check_branch
        %3015 = sbr.rel (%p3013) target = $region72
      $region71: #{tpu_custom_call.1} parent=5 // pred_region
        %s3016 = ssub.s32 %s20, 2
        // Predicated region
        $region73: #{tpu_custom_call.1} parent=71 // pred_check
          %p3017 = pneg %p285
        $region74: #{tpu_custom_call.1} parent=71 // pred_check_branch
          %3019 = sbr.rel (%p3017) target = $region76
        $region75: #{tpu_custom_call.1} parent=71 // pred_region
          %s3020 = sand.u32 %s270, 1
          %s3021 = scalar_lea.sflag [#allocation5], %s3020
          %s3022 = sand.u32 %s270, 1
          %s3023 = smul.addr %s3022, 192
          %s3024 = scalar_lea.vmem [#allocation4], %s3023
          %3026 = dma.done %s3021, 3072
        $region76: #{tpu_custom_call.1} parent=71 // pred_fallthru
          _
      $region72: #{tpu_custom_call.1} parent=5 // pred_fallthru
        _
    $region6: #{tpu_custom_call.1} parent=1 // loop_footer
      %s24 = sadd.s32 1, %s20
    $region7: #{tpu_custom_call.1} parent=1 // loop_footer_branch
      %19 = sbr.rel target = $region3
    $region8: #{tpu_custom_call.1} parent=1 // loop_exit
      _
    %3027 = vsyncpa [#allocation5], 1
    %s3028 = scalar_lea.sflag [#allocation5], 1
    %3029 = vsyncpa %s3028, 1

</llo_original>
